<compile_context>
chip_gen: v7x
topology: tpu7x:2x2x1
jax: 0.10.0
libtpu: 0.0.40
codegen_flags: <defaults>
</compile_context>

<pallas_src>
import functools

import jax
import jax.numpy as jnp
from jax.experimental import pallas as pl
from jax.experimental.pallas import tpu as pltpu

OUT_DIM = 50                       # logical output width of the final Linear
OUT_PAD = 128                      # lane-dense padded output width
TM_MAX = 1024                      # max batch tile (multiple of 16)
VMEM_LIMIT = 32 * 1024 * 1024      # raise v5e's 16 MiB default; <= v6e/v7x default


def _round_up(n, m):
    return ((n + m - 1) // m) * m


def mlp_kernel(x_ref,
               w1_ref, b1_ref,
               w2_ref, b2_ref,
               w3_ref, b3_ref,
               w4_ref, b4_ref,
               o_ref):
    # Cast the activation tile to bf16 inside the kernel (no extra XLA pass
    # over x in HBM); all matmuls feed the MXU in bf16, accumulate in f32.
    h = x_ref[...].astype(jnp.bfloat16)

    h = jnp.dot(h, w1_ref[...], preferred_element_type=jnp.float32)
    h = jnp.maximum(h + b1_ref[...], 0.0).astype(jnp.bfloat16)

    h = jnp.dot(h, w2_ref[...], preferred_element_type=jnp.float32)
    h = jnp.maximum(h + b2_ref[...], 0.0).astype(jnp.bfloat16)

    h = jnp.dot(h, w3_ref[...], preferred_element_type=jnp.float32)
    h = jnp.maximum(h + b3_ref[...], 0.0).astype(jnp.bfloat16)

    h = jnp.dot(h, w4_ref[...], preferred_element_type=jnp.float32)
    o_ref[...] = (h + b4_ref[...]).astype(o_ref.dtype)   # lane-dense [tm, 128]


def _choose_tile(B):
    """Batch tile (multiple of 16), padded batch, and number of grid tiles."""
    tm = min(TM_MAX, _round_up(B, 16))
    # v7x has two TensorCores sharded over the "parallel" batch axis: make
    # sure there are >= 2 grid tiles whenever the batch is big enough to
    # split.  Harmless on single-TC v5e/v6e.
    if _round_up(B, tm) // tm == 1 and tm >= 32:
        tm = _round_up((tm + 1) // 2, 16)
    B_pad = _round_up(B, tm)
    return tm, B_pad, B_pad // tm


@functools.partial(jax.jit, static_argnames=("weights_single_buffered",))
def _mlp_forward_impl(x, packed_params, *, weights_single_buffered=True):
    B, D_in = x.shape
    tm, B_pad, num_tiles = _choose_tile(B)
    if B_pad != B:
        x = jnp.pad(x, ((0, B_pad - B), (0, 0)))
    out_pad = packed_params[-1][0].shape[1]   # 128

    # Weights/biases: constant block index -> fetched once and VMEM-resident
    # across all batch tiles.  Single-buffer them (no useless second copy).
    if weights_single_buffered:
        wb_kwargs = dict(pipeline_mode=pl.Buffered(1))
    else:
        wb_kwargs = {}

    flat_args = [x]
    in_specs = [pl.BlockSpec((tm, D_in), lambda i: (i, 0))]
    for (w, b) in packed_params:
        flat_args += [w, b]
        in_specs += [
            pl.BlockSpec(w.shape, lambda i: (0, 0), **wb_kwargs),
            pl.BlockSpec(b.shape, lambda i: (0, 0), **wb_kwargs),
        ]

    out = pl.pallas_call(
        mlp_kernel,
        out_shape=jax.ShapeDtypeStruct((B_pad, out_pad), jnp.float32),
        grid=(num_tiles,),
        in_specs=in_specs,
        out_specs=pl.BlockSpec((tm, out_pad), lambda i: (i, 0)),
        compiler_params=pltpu.CompilerParams(
            dimension_semantics=("parallel",),
            vmem_limit_bytes=VMEM_LIMIT),
    )(*flat_args)

    # Strip batch padding and the 50->128 lane padding.  (Downstream
    # consumers that tolerate the padded [B_pad, 128] buffer may skip this.)
    return out[:B, :OUT_DIM]


_WEIGHTS_SINGLE_BUFFERED = True   # flipped off if pl.Buffered(1) is rejected


def mlp_forward(x, packed_params):
    """x: [B, 768] float32 (or bfloat16).  packed_params: list of
    (W[in,out] bf16, b[1,out] f32), last layer padded to OUT_PAD lanes.
    Returns [B, 50] float32."""
    global _WEIGHTS_SINGLE_BUFFERED
    if _WEIGHTS_SINGLE_BUFFERED:
        try:
            return _mlp_forward_impl(x, packed_params,
                                     weights_single_buffered=True)
        except Exception:
            # JAX version without BlockSpec pipeline_mode / pl.Buffered(1)
            # support: fall back to default (double-buffered) weights.
            _WEIGHTS_SINGLE_BUFFERED = False
    return _mlp_forward_impl(x, packed_params, weights_single_buffered=False)


def init_params(key):
    """Deterministic init mimicking PyTorch Linear default U[-1/sqrt(fan_in), +...].
    Returns f32 'master' params, stored as (W[in,out], b[1,out])."""
    dims = [(768, 512), (512, 256), (256, 128), (128, OUT_DIM)]
    params = []
    for fan_in, fan_out in dims:
        kw, kb, key = jax.random.split(key, 3)
        bound = 1.0 / jnp.sqrt(fan_in)
        w = jax.random.uniform(kw, (fan_in, fan_out), jnp.float32, -bound, bound)
        b = jax.random.uniform(kb, (1, fan_out), jnp.float32, -bound, bound)
        params.append((w, b))
    return params


def pack_params(params):
    """Cast weights to bf16 and zero-pad the final layer to OUT_PAD lanes."""
    packed = []
    last = len(params) - 1
    for i, (w, b) in enumerate(params):
        if i == last:
            w = jnp.pad(w, ((0, 0), (0, OUT_PAD - w.shape[1])))
            b = jnp.pad(b, ((0, 0), (0, OUT_PAD - b.shape[1])))
        packed.append((w.astype(jnp.bfloat16), b.astype(jnp.float32)))
    return packed


def reference_forward_mixed(x, packed_params):
    """Plain-JAX reference using the same bf16 weights / f32 accumulation."""
    h = x.astype(jnp.bfloat16)
    n = len(packed_params)
    for i, (w, b) in enumerate(packed_params):
        h = jnp.dot(h, w, preferred_element_type=jnp.float32) + b
        if i < n - 1:
            h = jnp.maximum(h, 0.0).astype(jnp.bfloat16)
    return h[:, :OUT_DIM]


def reference_forward_f32(x, params):
    """Full-precision reference matching the original PyTorch semantics."""
    h = x
    n = len(params)
    for i, (w, b) in enumerate(params):
        h = h @ w + b
        if i < n - 1:
            h = jnp.maximum(h, 0.0)
    return h


if __name__ == "__main__":
    key = jax.random.PRNGKey(0)
    kx, kp = jax.random.split(key)

    B = 8  # small batch
    x = jax.random.normal(kx, (B, 768), jnp.float32)

    params = init_params(kp)          # f32 master weights
    packed = pack_params(params)      # bf16 + last-layer padding for the kernel

    out = mlp_forward(x, packed)
    out = jax.block_until_ready(out)
    assert out.shape == (B, OUT_DIM), out.shape

    # Exact-path check against a plain-JAX reference using the same bf16 math.
    ref_mixed = reference_forward_mixed(x, packed)
    assert jnp.allclose(out, ref_mixed, atol=1e-2, rtol=1e-2), \
        "mismatch vs bf16 reference"

    # Loose check against the full-f32 PyTorch-equivalent semantics
    # (bf16 weight quantization introduces ~0.4% relative error).
    ref_f32 = reference_forward_f32(x, params)
    assert jnp.allclose(out, ref_f32, atol=5e-2, rtol=5e-2), \
        "mismatch vs f32 reference"

    print("KERNEL_OK")
</pallas_src>

<mosaic_0001>
module attributes {stable_mosaic.version = 11 : i64} {
  func.func @mlp_kernel(%arg0: i32, %arg1: memref<16x768xf32, #tpu.memory_space<vmem>>, %arg2: memref<768x512xbf16, #tpu.memory_space<vmem>>, %arg3: memref<1x512xf32, #tpu.memory_space<vmem>>, %arg4: memref<512x256xbf16, #tpu.memory_space<vmem>>, %arg5: memref<1x256xf32, #tpu.memory_space<vmem>>, %arg6: memref<256x128xbf16, #tpu.memory_space<vmem>>, %arg7: memref<1x128xf32, #tpu.memory_space<vmem>>, %arg8: memref<128x128xbf16, #tpu.memory_space<vmem>>, %arg9: memref<1x128xf32, #tpu.memory_space<vmem>>, %arg10: memref<16x128xf32, #tpu.memory_space<vmem>>) attributes {dimension_semantics = [#tpu.dimension_semantics<parallel>], iteration_bounds = array<i64: 1>, scalar_prefetch = 0 : i64, scratch_operands = 0 : i64, tpu.core_type = #tpu.core_type<tc>, window_params = [{transform_indices = @transform_0, window_bounds = array<i64: 16, 768>}, {pipeline_mode = #tpu.pipeline_mode<synchronous>, transform_indices = @transform_1, window_bounds = array<i64: 768, 512>}, {pipeline_mode = #tpu.pipeline_mode<synchronous>, transform_indices = @transform_2, window_bounds = array<i64: 1, 512>}, {pipeline_mode = #tpu.pipeline_mode<synchronous>, transform_indices = @transform_3, window_bounds = array<i64: 512, 256>}, {pipeline_mode = #tpu.pipeline_mode<synchronous>, transform_indices = @transform_4, window_bounds = array<i64: 1, 256>}, {pipeline_mode = #tpu.pipeline_mode<synchronous>, transform_indices = @transform_5, window_bounds = array<i64: 256, 128>}, {pipeline_mode = #tpu.pipeline_mode<synchronous>, transform_indices = @transform_6, window_bounds = array<i64: 1, 128>}, {pipeline_mode = #tpu.pipeline_mode<synchronous>, transform_indices = @transform_7, window_bounds = array<i64: 128, 128>}, {pipeline_mode = #tpu.pipeline_mode<synchronous>, transform_indices = @transform_8, window_bounds = array<i64: 1, 128>}, {transform_indices = @transform_9, window_bounds = array<i64: 16, 128>}]} {
    %c0 = arith.constant 0 : index
    %c0_0 = arith.constant 0 : index
    %0 = vector.load %arg1[%c0, %c0_0] : memref<16x768xf32, #tpu.memory_space<vmem>>, vector<16x768xf32>
    %1 = arith.truncf %0 : vector<16x768xf32> to vector<16x768xbf16>
    %c0_1 = arith.constant 0 : index
    %c0_2 = arith.constant 0 : index
    %2 = vector.load %arg2[%c0_1, %c0_2] : memref<768x512xbf16, #tpu.memory_space<vmem>>, vector<768x512xbf16>
    %cst = arith.constant dense<0.000000e+00> : vector<16x512xf32>
    %3 = tpu.matmul %1, %2, %cst {dimension_numbers = #tpu.dot_dimension_numbers<[1], [0], [0], [1], [0, 0, 1, 1], [], []>} : vector<16x768xbf16>, vector<768x512xbf16>, vector<16x512xf32> -> vector<16x512xf32>
    %c0_3 = arith.constant 0 : index
    %c0_4 = arith.constant 0 : index
    %4 = vector.load %arg3[%c0_3, %c0_4] : memref<1x512xf32, #tpu.memory_space<vmem>>, vector<1x512xf32>
    %5 = vector.broadcast %4 : vector<1x512xf32> to vector<16x512xf32>
    %6 = arith.addf %3, %5 : vector<16x512xf32>
    %cst_5 = arith.constant 0.000000e+00 : f32
    %7 = vector.broadcast %cst_5 : f32 to vector<16x512xf32>
    %8 = arith.maximumf %6, %7 : vector<16x512xf32>
    %9 = arith.truncf %8 : vector<16x512xf32> to vector<16x512xbf16>
    %c0_6 = arith.constant 0 : index
    %c0_7 = arith.constant 0 : index
    %10 = vector.load %arg4[%c0_6, %c0_7] : memref<512x256xbf16, #tpu.memory_space<vmem>>, vector<512x256xbf16>
    %cst_8 = arith.constant dense<0.000000e+00> : vector<16x256xf32>
    %11 = tpu.matmul %9, %10, %cst_8 {dimension_numbers = #tpu.dot_dimension_numbers<[1], [0], [0], [1], [0, 0, 1, 1], [], []>} : vector<16x512xbf16>, vector<512x256xbf16>, vector<16x256xf32> -> vector<16x256xf32>
    %c0_9 = arith.constant 0 : index
    %c0_10 = arith.constant 0 : index
    %12 = vector.load %arg5[%c0_9, %c0_10] : memref<1x256xf32, #tpu.memory_space<vmem>>, vector<1x256xf32>
    %13 = vector.broadcast %12 : vector<1x256xf32> to vector<16x256xf32>
    %14 = arith.addf %11, %13 : vector<16x256xf32>
    %cst_11 = arith.constant 0.000000e+00 : f32
    %15 = vector.broadcast %cst_11 : f32 to vector<16x256xf32>
    %16 = arith.maximumf %14, %15 : vector<16x256xf32>
    %17 = arith.truncf %16 : vector<16x256xf32> to vector<16x256xbf16>
    %c0_12 = arith.constant 0 : index
    %c0_13 = arith.constant 0 : index
    %18 = vector.load %arg6[%c0_12, %c0_13] : memref<256x128xbf16, #tpu.memory_space<vmem>>, vector<256x128xbf16>
    %cst_14 = arith.constant dense<0.000000e+00> : vector<16x128xf32>
    %19 = tpu.matmul %17, %18, %cst_14 {dimension_numbers = #tpu.dot_dimension_numbers<[1], [0], [0], [1], [0, 0, 1, 1], [], []>} : vector<16x256xbf16>, vector<256x128xbf16>, vector<16x128xf32> -> vector<16x128xf32>
    %c0_15 = arith.constant 0 : index
    %c0_16 = arith.constant 0 : index
    %20 = vector.load %arg7[%c0_15, %c0_16] : memref<1x128xf32, #tpu.memory_space<vmem>>, vector<1x128xf32>
    %21 = vector.broadcast %20 : vector<1x128xf32> to vector<16x128xf32>
    %22 = arith.addf %19, %21 : vector<16x128xf32>
    %cst_17 = arith.constant 0.000000e+00 : f32
    %23 = vector.broadcast %cst_17 : f32 to vector<16x128xf32>
    %24 = arith.maximumf %22, %23 : vector<16x128xf32>
    %25 = arith.truncf %24 : vector<16x128xf32> to vector<16x128xbf16>
    %c0_18 = arith.constant 0 : index
    %c0_19 = arith.constant 0 : index
    %26 = vector.load %arg8[%c0_18, %c0_19] : memref<128x128xbf16, #tpu.memory_space<vmem>>, vector<128x128xbf16>
    %cst_20 = arith.constant dense<0.000000e+00> : vector<16x128xf32>
    %27 = tpu.matmul %25, %26, %cst_20 {dimension_numbers = #tpu.dot_dimension_numbers<[1], [0], [0], [1], [0, 0, 1, 1], [], []>} : vector<16x128xbf16>, vector<128x128xbf16>, vector<16x128xf32> -> vector<16x128xf32>
    %c0_21 = arith.constant 0 : index
    %c0_22 = arith.constant 0 : index
    %28 = vector.load %arg9[%c0_21, %c0_22] : memref<1x128xf32, #tpu.memory_space<vmem>>, vector<1x128xf32>
    %29 = vector.broadcast %28 : vector<1x128xf32> to vector<16x128xf32>
    %30 = arith.addf %27, %29 : vector<16x128xf32>
    %c0_23 = arith.constant 0 : index
    %c0_24 = arith.constant 0 : index
    %31 = vector.load %arg10[%c0_23, %c0_24] : memref<16x128xf32, #tpu.memory_space<vmem>>, vector<16x128xf32>
    tpu.vector_store %arg10[%c0_23, %c0_24], %30 {strides = array<i32>} : memref<16x128xf32, #tpu.memory_space<vmem>>, vector<16x128xf32>,
    return
  }
  func.func @transform_0(%arg0: i32) -> (i32, i32) {
    %c0_i32 = arith.constant 0 : i32
    %c0_i32_0 = arith.constant 0 : i32
    return %arg0, %c0_i32 : i32, i32
  }
  func.func @transform_1(%arg0: i32) -> (i32, i32) {
    %c0_i32 = arith.constant 0 : i32
    %c0_i32_0 = arith.constant 0 : i32
    %c0_i32_1 = arith.constant 0 : i32
    return %c0_i32, %c0_i32_0 : i32, i32
  }
  func.func @transform_2(%arg0: i32) -> (i32, i32) {
    %c0_i32 = arith.constant 0 : i32
    %c0_i32_0 = arith.constant 0 : i32
    %c0_i32_1 = arith.constant 0 : i32
    return %c0_i32, %c0_i32_0 : i32, i32
  }
  func.func @transform_3(%arg0: i32) -> (i32, i32) {
    %c0_i32 = arith.constant 0 : i32
    %c0_i32_0 = arith.constant 0 : i32
    %c0_i32_1 = arith.constant 0 : i32
    return %c0_i32, %c0_i32_0 : i32, i32
  }
  func.func @transform_4(%arg0: i32) -> (i32, i32) {
    %c0_i32 = arith.constant 0 : i32
    %c0_i32_0 = arith.constant 0 : i32
    %c0_i32_1 = arith.constant 0 : i32
    return %c0_i32, %c0_i32_0 : i32, i32
  }
  func.func @transform_5(%arg0: i32) -> (i32, i32) {
    %c0_i32 = arith.constant 0 : i32
    %c0_i32_0 = arith.constant 0 : i32
    %c0_i32_1 = arith.constant 0 : i32
    return %c0_i32, %c0_i32_0 : i32, i32
  }
  func.func @transform_6(%arg0: i32) -> (i32, i32) {
    %c0_i32 = arith.constant 0 : i32
    %c0_i32_0 = arith.constant 0 : i32
    %c0_i32_1 = arith.constant 0 : i32
    return %c0_i32, %c0_i32_0 : i32, i32
  }
  func.func @transform_7(%arg0: i32) -> (i32, i32) {
    %c0_i32 = arith.constant 0 : i32
    %c0_i32_0 = arith.constant 0 : i32
    %c0_i32_1 = arith.constant 0 : i32
    return %c0_i32, %c0_i32_0 : i32, i32
  }
  func.func @transform_8(%arg0: i32) -> (i32, i32) {
    %c0_i32 = arith.constant 0 : i32
    %c0_i32_0 = arith.constant 0 : i32
    %c0_i32_1 = arith.constant 0 : i32
    return %c0_i32, %c0_i32_0 : i32, i32
  }
  func.func @transform_9(%arg0: i32) -> (i32, i32) {
    %c0_i32 = arith.constant 0 : i32
    %c0_i32_0 = arith.constant 0 : i32
    return %arg0, %c0_i32 : i32, i32
  }
}

module attributes {stable_mosaic.version = 11 : i64} {
  func.func @mlp_kernel(%arg0: i32, %arg1: memref<16x768xf32, #tpu.memory_space<vmem>>, %arg2: memref<768x512xbf16, #tpu.memory_space<vmem>>, %arg3: memref<1x512xf32, #tpu.memory_space<vmem>>, %arg4: memref<512x256xbf16, #tpu.memory_space<vmem>>, %arg5: memref<1x256xf32, #tpu.memory_space<vmem>>, %arg6: memref<256x128xbf16, #tpu.memory_space<vmem>>, %arg7: memref<1x128xf32, #tpu.memory_space<vmem>>, %arg8: memref<128x128xbf16, #tpu.memory_space<vmem>>, %arg9: memref<1x128xf32, #tpu.memory_space<vmem>>, %arg10: memref<16x128xf32, #tpu.memory_space<vmem>>) attributes {dimension_semantics = [#tpu.dimension_semantics<parallel>], iteration_bounds = array<i64: 1>, scalar_prefetch = 0 : i64, scratch_operands = 0 : i64, tpu.core_type = #tpu.core_type<tc>, window_params = [{transform_indices = @transform_0, window_bounds = array<i64: 16, 768>}, {pipeline_mode = #tpu.pipeline_mode<synchronous>, transform_indices = @transform_1, window_bounds = array<i64: 768, 512>}, {pipeline_mode = #tpu.pipeline_mode<synchronous>, transform_indices = @transform_2, window_bounds = array<i64: 1, 512>}, {pipeline_mode = #tpu.pipeline_mode<synchronous>, transform_indices = @transform_3, window_bounds = array<i64: 512, 256>}, {pipeline_mode = #tpu.pipeline_mode<synchronous>, transform_indices = @transform_4, window_bounds = array<i64: 1, 256>}, {pipeline_mode = #tpu.pipeline_mode<synchronous>, transform_indices = @transform_5, window_bounds = array<i64: 256, 128>}, {pipeline_mode = #tpu.pipeline_mode<synchronous>, transform_indices = @transform_6, window_bounds = array<i64: 1, 128>}, {pipeline_mode = #tpu.pipeline_mode<synchronous>, transform_indices = @transform_7, window_bounds = array<i64: 128, 128>}, {pipeline_mode = #tpu.pipeline_mode<synchronous>, transform_indices = @transform_8, window_bounds = array<i64: 1, 128>}, {transform_indices = @transform_9, window_bounds = array<i64: 16, 128>}]} {
    %c0 = arith.constant 0 : index
    %c0_0 = arith.constant 0 : index
    %0 = vector.load %arg1[%c0, %c0_0] : memref<16x768xf32, #tpu.memory_space<vmem>>, vector<16x768xf32>
    %1 = arith.truncf %0 : vector<16x768xf32> to vector<16x768xbf16>
    %c0_1 = arith.constant 0 : index
    %c0_2 = arith.constant 0 : index
    %2 = vector.load %arg2[%c0_1, %c0_2] : memref<768x512xbf16, #tpu.memory_space<vmem>>, vector<768x512xbf16>
    %cst = arith.constant dense<0.000000e+00> : vector<16x512xf32>
    %3 = tpu.matmul %1, %2, %cst {dimension_numbers = #tpu.dot_dimension_numbers<[1], [0], [0], [1], [0, 0, 1, 1], [], []>} : vector<16x768xbf16>, vector<768x512xbf16>, vector<16x512xf32> -> vector<16x512xf32>
    %c0_3 = arith.constant 0 : index
    %c0_4 = arith.constant 0 : index
    %4 = vector.load %arg3[%c0_3, %c0_4] : memref<1x512xf32, #tpu.memory_space<vmem>>, vector<1x512xf32>
    %5 = vector.broadcast %4 : vector<1x512xf32> to vector<16x512xf32>
    %6 = arith.addf %3, %5 : vector<16x512xf32>
    %cst_5 = arith.constant 0.000000e+00 : f32
    %7 = vector.broadcast %cst_5 : f32 to vector<16x512xf32>
    %8 = arith.maximumf %6, %7 : vector<16x512xf32>
    %9 = arith.truncf %8 : vector<16x512xf32> to vector<16x512xbf16>
    %c0_6 = arith.constant 0 : index
    %c0_7 = arith.constant 0 : index
    %10 = vector.load %arg4[%c0_6, %c0_7] : memref<512x256xbf16, #tpu.memory_space<vmem>>, vector<512x256xbf16>
    %cst_8 = arith.constant dense<0.000000e+00> : vector<16x256xf32>
    %11 = tpu.matmul %9, %10, %cst_8 {dimension_numbers = #tpu.dot_dimension_numbers<[1], [0], [0], [1], [0, 0, 1, 1], [], []>} : vector<16x512xbf16>, vector<512x256xbf16>, vector<16x256xf32> -> vector<16x256xf32>
    %c0_9 = arith.constant 0 : index
    %c0_10 = arith.constant 0 : index
    %12 = vector.load %arg5[%c0_9, %c0_10] : memref<1x256xf32, #tpu.memory_space<vmem>>, vector<1x256xf32>
    %13 = vector.broadcast %12 : vector<1x256xf32> to vector<16x256xf32>
    %14 = arith.addf %11, %13 : vector<16x256xf32>
    %cst_11 = arith.constant 0.000000e+00 : f32
    %15 = vector.broadcast %cst_11 : f32 to vector<16x256xf32>
    %16 = arith.maximumf %14, %15 : vector<16x256xf32>
    %17 = arith.truncf %16 : vector<16x256xf32> to vector<16x256xbf16>
    %c0_12 = arith.constant 0 : index
    %c0_13 = arith.constant 0 : index
    %18 = vector.load %arg6[%c0_12, %c0_13] : memref<256x128xbf16, #tpu.memory_space<vmem>>, vector<256x128xbf16>
    %cst_14 = arith.constant dense<0.000000e+00> : vector<16x128xf32>
    %19 = tpu.matmul %17, %18, %cst_14 {dimension_numbers = #tpu.dot_dimension_numbers<[1], [0], [0], [1], [0, 0, 1, 1], [], []>} : vector<16x256xbf16>, vector<256x128xbf16>, vector<16x128xf32> -> vector<16x128xf32>
    %c0_15 = arith.constant 0 : index
    %c0_16 = arith.constant 0 : index
    %20 = vector.load %arg7[%c0_15, %c0_16] : memref<1x128xf32, #tpu.memory_space<vmem>>, vector<1x128xf32>
    %21 = vector.broadcast %20 : vector<1x128xf32> to vector<16x128xf32>
    %22 = arith.addf %19, %21 : vector<16x128xf32>
    %cst_17 = arith.constant 0.000000e+00 : f32
    %23 = vector.broadcast %cst_17 : f32 to vector<16x128xf32>
    %24 = arith.maximumf %22, %23 : vector<16x128xf32>
    %25 = arith.truncf %24 : vector<16x128xf32> to vector<16x128xbf16>
    %c0_18 = arith.constant 0 : index
    %c0_19 = arith.constant 0 : index
    %26 = vector.load %arg8[%c0_18, %c0_19] : memref<128x128xbf16, #tpu.memory_space<vmem>>, vector<128x128xbf16>
    %cst_20 = arith.constant dense<0.000000e+00> : vector<16x128xf32>
    %27 = tpu.matmul %25, %26, %cst_20 {dimension_numbers = #tpu.dot_dimension_numbers<[1], [0], [0], [1], [0, 0, 1, 1], [], []>} : vector<16x128xbf16>, vector<128x128xbf16>, vector<16x128xf32> -> vector<16x128xf32>
    %c0_21 = arith.constant 0 : index
    %c0_22 = arith.constant 0 : index
    %28 = vector.load %arg9[%c0_21, %c0_22] : memref<1x128xf32, #tpu.memory_space<vmem>>, vector<1x128xf32>
    %29 = vector.broadcast %28 : vector<1x128xf32> to vector<16x128xf32>
    %30 = arith.addf %27, %29 : vector<16x128xf32>
    %c0_23 = arith.constant 0 : index
    %c0_24 = arith.constant 0 : index
    %31 = vector.load %arg10[%c0_23, %c0_24] : memref<16x128xf32, #tpu.memory_space<vmem>>, vector<16x128xf32>
    tpu.vector_store %arg10[%c0_23, %c0_24], %30 {strides = array<i32>} : memref<16x128xf32, #tpu.memory_space<vmem>>, vector<16x128xf32>,
    return
  }
  func.func @transform_0(%arg0: i32) -> (i32, i32) {
    %c0_i32 = arith.constant 0 : i32
    %c0_i32_0 = arith.constant 0 : i32
    return %arg0, %c0_i32 : i32, i32
  }
  func.func @transform_1(%arg0: i32) -> (i32, i32) {
    %c0_i32 = arith.constant 0 : i32
    %c0_i32_0 = arith.constant 0 : i32
    %c0_i32_1 = arith.constant 0 : i32
    return %c0_i32, %c0_i32_0 : i32, i32
  }
  func.func @transform_2(%arg0: i32) -> (i32, i32) {
    %c0_i32 = arith.constant 0 : i32
    %c0_i32_0 = arith.constant 0 : i32
    %c0_i32_1 = arith.constant 0 : i32
    return %c0_i32, %c0_i32_0 : i32, i32
  }
  func.func @transform_3(%arg0: i32) -> (i32, i32) {
    %c0_i32 = arith.constant 0 : i32
    %c0_i32_0 = arith.constant 0 : i32
    %c0_i32_1 = arith.constant 0 : i32
    return %c0_i32, %c0_i32_0 : i32, i32
  }
  func.func @transform_4(%arg0: i32) -> (i32, i32) {
    %c0_i32 = arith.constant 0 : i32
    %c0_i32_0 = arith.constant 0 : i32
    %c0_i32_1 = arith.constant 0 : i32
    return %c0_i32, %c0_i32_0 : i32, i32
  }
  func.func @transform_5(%arg0: i32) -> (i32, i32) {
    %c0_i32 = arith.constant 0 : i32
    %c0_i32_0 = arith.constant 0 : i32
    %c0_i32_1 = arith.constant 0 : i32
    return %c0_i32, %c0_i32_0 : i32, i32
  }
  func.func @transform_6(%arg0: i32) -> (i32, i32) {
    %c0_i32 = arith.constant 0 : i32
    %c0_i32_0 = arith.constant 0 : i32
    %c0_i32_1 = arith.constant 0 : i32
    return %c0_i32, %c0_i32_0 : i32, i32
  }
  func.func @transform_7(%arg0: i32) -> (i32, i32) {
    %c0_i32 = arith.constant 0 : i32
    %c0_i32_0 = arith.constant 0 : i32
    %c0_i32_1 = arith.constant 0 : i32
    return %c0_i32, %c0_i32_0 : i32, i32
  }
  func.func @transform_8(%arg0: i32) -> (i32, i32) {
    %c0_i32 = arith.constant 0 : i32
    %c0_i32_0 = arith.constant 0 : i32
    %c0_i32_1 = arith.constant 0 : i32
    return %c0_i32, %c0_i32_0 : i32, i32
  }
  func.func @transform_9(%arg0: i32) -> (i32, i32) {
    %c0_i32 = arith.constant 0 : i32
    %c0_i32_0 = arith.constant 0 : i32
    return %arg0, %c0_i32 : i32, i32
  }
}

</mosaic_0001>

<llo_original>
// kernel: _mlp_forward_impl.1
$region0: #{_mlp_forward_impl.1}
  #allocation0 [shape = 'u32[]', space=smem, size = 0x4, offset = 0x4, fixed_abs, tag = 'smem constant byte address 0x4 - core index']
  #allocation1 [shape = 'u32[144,128]{1,0:T(1,128)}', space=vmem, size = 0x12000, scoped, tag = 'internal scratch']
  %s0 = inlined_call_operand.vmem [shape: f32[16,768], index: 0, kind: input, shape index: {}]
  %s1 = inlined_call_operand.hbm [shape: bf16[768,512], index: 1, kind: input, shape index: {}]
  %s2 = inlined_call_operand.vmem [shape: f32[1,512], index: 2, kind: input, shape index: {}]
  %s3 = inlined_call_operand.hbm [shape: bf16[512,256], index: 3, kind: input, shape index: {}]
  %s4 = inlined_call_operand.vmem [shape: f32[1,256], index: 4, kind: input, shape index: {}]
  %s5 = inlined_call_operand.vmem [shape: bf16[256,128], index: 5, kind: input, shape index: {}]
  %s6 = inlined_call_operand.vmem [shape: f32[1,128], index: 6, kind: input, shape index: {}]
  %s7 = inlined_call_operand.hbm [shape: bf16[128,128], index: 7, kind: input, shape index: {}]
  %s8 = inlined_call_operand.vmem [shape: f32[1,128], index: 8, kind: input, shape index: {}]
  %s9 = inlined_call_operand.vmem [shape: f32[16,128], index: 9, kind: output, shape index: {}]
  %s10 = sld [smem:[#allocation0]]
  $region58: #{_mlp_forward_impl.1} parent=0
    _
  %s12 = ssub.s32 1, %s10
  %s13 = scalar_select 0, %s12, %s10
  $region1: #{_mlp_forward_impl.1} parent=0
    #allocation2 [shape = 'u8[786432]{0}', space=vmem, size = 0xc0000, scoped, tag = 'input window, operand 1, single buffered']
    #allocation3 [shape = 's32[1]{0}', space=sflag, size = 0x4, scoped, tag = 'scoped memory for _mlp_forward_impl.1']
    #allocation4 [shape = 'u8[262144]{0}', space=vmem, size = 0x40000, scoped, tag = 'input window, operand 3, single buffered']
    #allocation5 [shape = 's32[1]{0}', space=sflag, size = 0x4, scoped, tag = 'scoped memory for _mlp_forward_impl.1']
    #allocation6 [shape = 'u8[32768]{0}', space=vmem, size = 0x8000, scoped, tag = 'input window, operand 7, single buffered']
    %14 = vsyncpa [#allocation3], 0
    %15 = vsyncpa [#allocation5], 0
    // Predicated region
    $region2: #{_mlp_forward_impl.1} parent=1 // pred_check
      _
    $region3: #{_mlp_forward_impl.1} parent=1 // pred_check_branch
      %17 = sbr.rel (0) target = $region5
    $region4: #{_mlp_forward_impl.1} parent=1 // pred_region
      _
    $region5: #{_mlp_forward_impl.1} parent=1 // pred_fallthru
      _
    // Predicated region
    $region6: #{_mlp_forward_impl.1} parent=1 // pred_check
      _
    $region7: #{_mlp_forward_impl.1} parent=1 // pred_check_branch
      %19 = sbr.rel (0) target = $region9
    $region8: #{_mlp_forward_impl.1} parent=1 // pred_region
      %s21 = ssub.s32 24576, 24576
      %22 = vsyncadd [#allocation3], %s21
      %s23 = sshll.u32 [#allocation2], 4
      %s24 = int_to_ptr.vmem [resolvable:$true] %s23
      %29 = dma.hbm_to_vmem [thread:$0]  %s1, 24576, %s24, [#allocation3], 256, 256, 16
    $region9: #{_mlp_forward_impl.1} parent=1 // pred_fallthru
      _
    // Predicated region
    $region10: #{_mlp_forward_impl.1} parent=1 // pred_check
      _
    $region11: #{_mlp_forward_impl.1} parent=1 // pred_check_branch
      %31 = sbr.rel (0) target = $region13
    $region12: #{_mlp_forward_impl.1} parent=1 // pred_region
      _
    $region13: #{_mlp_forward_impl.1} parent=1 // pred_fallthru
      _
    // Predicated region
    $region14: #{_mlp_forward_impl.1} parent=1 // pred_check
      _
    $region15: #{_mlp_forward_impl.1} parent=1 // pred_check_branch
      %33 = sbr.rel (0) target = $region17
    $region16: #{_mlp_forward_impl.1} parent=1 // pred_region
      %s35 = ssub.s32 8192, 8192
      %36 = vsyncadd [#allocation5], %s35
      %s37 = sshll.u32 [#allocation4], 4
      %s38 = int_to_ptr.vmem [resolvable:$true] %s37
      %43 = dma.hbm_to_vmem [thread:$0]  %s3, 8192, %s38, [#allocation5], 128, 128, 8
    $region17: #{_mlp_forward_impl.1} parent=1 // pred_fallthru
      _
    // Predicated region
    $region18: #{_mlp_forward_impl.1} parent=1 // pred_check
      _
    $region19: #{_mlp_forward_impl.1} parent=1 // pred_check_branch
      %45 = sbr.rel (0) target = $region21
    $region20: #{_mlp_forward_impl.1} parent=1 // pred_region
      _
    $region21: #{_mlp_forward_impl.1} parent=1 // pred_fallthru
      _
    // Predicated region
    $region22: #{_mlp_forward_impl.1} parent=1 // pred_check
      _
    $region23: #{_mlp_forward_impl.1} parent=1 // pred_check_branch
      %47 = sbr.rel (0) target = $region25
    $region24: #{_mlp_forward_impl.1} parent=1 // pred_region
      _
    $region25: #{_mlp_forward_impl.1} parent=1 // pred_fallthru
      _
    // Predicated region
    $region26: #{_mlp_forward_impl.1} parent=1 // pred_check
      _
    $region27: #{_mlp_forward_impl.1} parent=1 // pred_check_branch
      %49 = sbr.rel (0) target = $region29
    $region28: #{_mlp_forward_impl.1} parent=1 // pred_region
      _
    $region29: #{_mlp_forward_impl.1} parent=1 // pred_fallthru
      _
    // Predicated region
    $region30: #{_mlp_forward_impl.1} parent=1 // pred_check
      _
    $region31: #{_mlp_forward_impl.1} parent=1 // pred_check_branch
      %51 = sbr.rel (0) target = $region33
    $region32: #{_mlp_forward_impl.1} parent=1 // pred_region
      %s53 = ssub.s32 1024, 1024
      %54 = vsyncadd [#allocation5], %s53
      %s55 = sshll.u32 [#allocation6], 4
      %s56 = int_to_ptr.vmem [resolvable:$true] %s55
      %61 = dma.hbm_to_vmem [thread:$0]  %s7, 1024, %s56, [#allocation5], 64, 64, 4
    $region33: #{_mlp_forward_impl.1} parent=1 // pred_fallthru
      _
    // Predicated region
    $region34: #{_mlp_forward_impl.1} parent=1 // pred_check
      _
    $region35: #{_mlp_forward_impl.1} parent=1 // pred_check_branch
      %63 = sbr.rel (0) target = $region37
    $region36: #{_mlp_forward_impl.1} parent=1 // pred_region
      _
    $region37: #{_mlp_forward_impl.1} parent=1 // pred_fallthru
      _
    // Predicated region
    $region38: #{_mlp_forward_impl.1} parent=1 // pred_check
      _
    $region39: #{_mlp_forward_impl.1} parent=1 // pred_check_branch
      %65 = sbr.rel (0) target = $region41
    $region40: #{_mlp_forward_impl.1} parent=1 // pred_region
      %66 = dma.done [#allocation3], 24576
    $region41: #{_mlp_forward_impl.1} parent=1 // pred_fallthru
      _
    // Predicated region
    $region42: #{_mlp_forward_impl.1} parent=1 // pred_check
      _
    $region43: #{_mlp_forward_impl.1} parent=1 // pred_check_branch
      %68 = sbr.rel (0) target = $region45
    $region44: #{_mlp_forward_impl.1} parent=1 // pred_region
      %69 = dma.done [#allocation5], 8192
    $region45: #{_mlp_forward_impl.1} parent=1 // pred_fallthru
      _
    // Predicated region
    $region46: #{_mlp_forward_impl.1} parent=1 // pred_check
      _
    $region47: #{_mlp_forward_impl.1} parent=1 // pred_check_branch
      %71 = sbr.rel (0) target = $region49
    $region48: #{_mlp_forward_impl.1} parent=1 // pred_region
      %72 = dma.done [#allocation5], 1024
    $region49: #{_mlp_forward_impl.1} parent=1 // pred_fallthru
      _
    %v74 = vld [vmem:[%s0] sm:$0xff]
    %v75 = vld [vmem:[%s0 + $0x8] sm:$0xff]
    %v76 = vld [vmem:[%s0 + $0x10] sm:$0xff]
    %v77 = vld [vmem:[%s0 + $0x18] sm:$0xff]
    %v78 = vld [vmem:[%s0 + $0x20] sm:$0xff]
    %v79 = vld [vmem:[%s0 + $0x28] sm:$0xff]
    %v80 = vld [vmem:[%s0 + $0x30] sm:$0xff]
    %v81 = vld [vmem:[%s0 + $0x38] sm:$0xff]
    %v82 = vld [vmem:[%s0 + $0x40] sm:$0xff]
    %v83 = vld [vmem:[%s0 + $0x48] sm:$0xff]
    %v84 = vld [vmem:[%s0 + $0x50] sm:$0xff]
    %v85 = vld [vmem:[%s0 + $0x58] sm:$0xff]
    %v86 = vpack.c.bf16 %v80, %v74
    %v87 = vpack.c.bf16 %v81, %v75
    %v88 = vpack.c.bf16 %v82, %v76
    %v89 = vpack.c.bf16 %v83, %v77
    %v90 = vpack.c.bf16 %v84, %v78
    %v91 = vpack.c.bf16 %v85, %v79
    %v92 = vld [vmem:[#allocation2] sm:$0xff]
    %v93 = vld [vmem:[#allocation2 + $0x8] sm:$0xff]
    %v94 = vld [vmem:[#allocation2 + $0x10] sm:$0xff]
    %v95 = vld [vmem:[#allocation2 + $0x18] sm:$0xff]
    %v96 = vld [vmem:[#allocation2 + $0x20] sm:$0xff]
    %v97 = vld [vmem:[#allocation2 + $0x28] sm:$0xff]
    %v98 = vld [vmem:[#allocation2 + $0x30] sm:$0xff]
    %v99 = vld [vmem:[#allocation2 + $0x38] sm:$0xff]
    %v100 = vld [vmem:[#allocation2 + $0x40] sm:$0xff]
    %v101 = vld [vmem:[#allocation2 + $0x48] sm:$0xff]
    %v102 = vld [vmem:[#allocation2 + $0x50] sm:$0xff]
    %v103 = vld [vmem:[#allocation2 + $0x58] sm:$0xff]
    %v104 = vld [vmem:[#allocation2 + $0x60] sm:$0xff]
    %v105 = vld [vmem:[#allocation2 + $0x68] sm:$0xff]
    %v106 = vld [vmem:[#allocation2 + $0x70] sm:$0xff]
    %v107 = vld [vmem:[#allocation2 + $0x78] sm:$0xff]
    %v108 = vld [vmem:[#allocation2 + $0x80] sm:$0xff]
    %v109 = vld [vmem:[#allocation2 + $0x88] sm:$0xff]
    %v110 = vld [vmem:[#allocation2 + $0x90] sm:$0xff]
    %v111 = vld [vmem:[#allocation2 + $0x98] sm:$0xff]
    %v112 = vld [vmem:[#allocation2 + $0xa0] sm:$0xff]
    %v113 = vld [vmem:[#allocation2 + $0xa8] sm:$0xff]
    %v114 = vld [vmem:[#allocation2 + $0xb0] sm:$0xff]
    %v115 = vld [vmem:[#allocation2 + $0xb8] sm:$0xff]
    %v116 = vld [vmem:[#allocation2 + $0xc0] sm:$0xff]
    %v117 = vld [vmem:[#allocation2 + $0xc8] sm:$0xff]
    %v118 = vld [vmem:[#allocation2 + $0xd0] sm:$0xff]
    %v119 = vld [vmem:[#allocation2 + $0xd8] sm:$0xff]
    %v120 = vld [vmem:[#allocation2 + $0xe0] sm:$0xff]
    %v121 = vld [vmem:[#allocation2 + $0xe8] sm:$0xff]
    %v122 = vld [vmem:[#allocation2 + $0xf0] sm:$0xff]
    %v123 = vld [vmem:[#allocation2 + $0xf8] sm:$0xff]
    %v124 = vld [vmem:[#allocation2 + $0x100] sm:$0xff]
    %v125 = vld [vmem:[#allocation2 + $0x108] sm:$0xff]
    %v126 = vld [vmem:[#allocation2 + $0x110] sm:$0xff]
    %v127 = vld [vmem:[#allocation2 + $0x118] sm:$0xff]
    %v128 = vld [vmem:[#allocation2 + $0x120] sm:$0xff]
    %v129 = vld [vmem:[#allocation2 + $0x128] sm:$0xff]
    %v130 = vld [vmem:[#allocation2 + $0x130] sm:$0xff]
    %v131 = vld [vmem:[#allocation2 + $0x138] sm:$0xff]
    %v132 = vld [vmem:[#allocation2 + $0x140] sm:$0xff]
    %v133 = vld [vmem:[#allocation2 + $0x148] sm:$0xff]
    %v134 = vld [vmem:[#allocation2 + $0x150] sm:$0xff]
    %v135 = vld [vmem:[#allocation2 + $0x158] sm:$0xff]
    %v136 = vld [vmem:[#allocation2 + $0x160] sm:$0xff]
    %v137 = vld [vmem:[#allocation2 + $0x168] sm:$0xff]
    %v138 = vld [vmem:[#allocation2 + $0x170] sm:$0xff]
    %v139 = vld [vmem:[#allocation2 + $0x178] sm:$0xff]
    %v140 = vld [vmem:[#allocation2 + $0x180] sm:$0xff]
    %v141 = vld [vmem:[#allocation2 + $0x188] sm:$0xff]
    %v142 = vld [vmem:[#allocation2 + $0x190] sm:$0xff]
    %v143 = vld [vmem:[#allocation2 + $0x198] sm:$0xff]
    %v144 = vld [vmem:[#allocation2 + $0x1a0] sm:$0xff]
    %v145 = vld [vmem:[#allocation2 + $0x1a8] sm:$0xff]
    %v146 = vld [vmem:[#allocation2 + $0x1b0] sm:$0xff]
    %v147 = vld [vmem:[#allocation2 + $0x1b8] sm:$0xff]
    %v148 = vld [vmem:[#allocation2 + $0x1c0] sm:$0xff]
    %v149 = vld [vmem:[#allocation2 + $0x1c8] sm:$0xff]
    %v150 = vld [vmem:[#allocation2 + $0x1d0] sm:$0xff]
    %v151 = vld [vmem:[#allocation2 + $0x1d8] sm:$0xff]
    %v152 = vld [vmem:[#allocation2 + $0x1e0] sm:$0xff]
    %v153 = vld [vmem:[#allocation2 + $0x1e8] sm:$0xff]
    %v154 = vld [vmem:[#allocation2 + $0x1f0] sm:$0xff]
    %v155 = vld [vmem:[#allocation2 + $0x1f8] sm:$0xff]
    %v156 = vld [vmem:[#allocation2 + $0x200] sm:$0xff]
    %v157 = vld [vmem:[#allocation2 + $0x208] sm:$0xff]
    %v158 = vld [vmem:[#allocation2 + $0x210] sm:$0xff]
    %v159 = vld [vmem:[#allocation2 + $0x218] sm:$0xff]
    %v160 = vld [vmem:[#allocation2 + $0x220] sm:$0xff]
    %v161 = vld [vmem:[#allocation2 + $0x228] sm:$0xff]
    %v162 = vld [vmem:[#allocation2 + $0x230] sm:$0xff]
    %v163 = vld [vmem:[#allocation2 + $0x238] sm:$0xff]
    %v164 = vld [vmem:[#allocation2 + $0x240] sm:$0xff]
    %v165 = vld [vmem:[#allocation2 + $0x248] sm:$0xff]
    %v166 = vld [vmem:[#allocation2 + $0x250] sm:$0xff]
    %v167 = vld [vmem:[#allocation2 + $0x258] sm:$0xff]
    %v168 = vld [vmem:[#allocation2 + $0x260] sm:$0xff]
    %v169 = vld [vmem:[#allocation2 + $0x268] sm:$0xff]
    %v170 = vld [vmem:[#allocation2 + $0x270] sm:$0xff]
    %v171 = vld [vmem:[#allocation2 + $0x278] sm:$0xff]
    %v172 = vld [vmem:[#allocation2 + $0x280] sm:$0xff]
    %v173 = vld [vmem:[#allocation2 + $0x288] sm:$0xff]
    %v174 = vld [vmem:[#allocation2 + $0x290] sm:$0xff]
    %v175 = vld [vmem:[#allocation2 + $0x298] sm:$0xff]
    %v176 = vld [vmem:[#allocation2 + $0x2a0] sm:$0xff]
    %v177 = vld [vmem:[#allocation2 + $0x2a8] sm:$0xff]
    %v178 = vld [vmem:[#allocation2 + $0x2b0] sm:$0xff]
    %v179 = vld [vmem:[#allocation2 + $0x2b8] sm:$0xff]
    %v180 = vld [vmem:[#allocation2 + $0x2c0] sm:$0xff]
    %v181 = vld [vmem:[#allocation2 + $0x2c8] sm:$0xff]
    %v182 = vld [vmem:[#allocation2 + $0x2d0] sm:$0xff]
    %v183 = vld [vmem:[#allocation2 + $0x2d8] sm:$0xff]
    %v184 = vld [vmem:[#allocation2 + $0x2e0] sm:$0xff]
    %v185 = vld [vmem:[#allocation2 + $0x2e8] sm:$0xff]
    %v186 = vld [vmem:[#allocation2 + $0x2f0] sm:$0xff]
    %v187 = vld [vmem:[#allocation2 + $0x2f8] sm:$0xff]
    %v188 = vld [vmem:[#allocation2 + $0x300] sm:$0xff]
    %v189 = vld [vmem:[#allocation2 + $0x308] sm:$0xff]
    %v190 = vld [vmem:[#allocation2 + $0x310] sm:$0xff]
    %v191 = vld [vmem:[#allocation2 + $0x318] sm:$0xff]
    %v192 = vld [vmem:[#allocation2 + $0x320] sm:$0xff]
    %v193 = vld [vmem:[#allocation2 + $0x328] sm:$0xff]
    %v194 = vld [vmem:[#allocation2 + $0x330] sm:$0xff]
    %v195 = vld [vmem:[#allocation2 + $0x338] sm:$0xff]
    %v196 = vld [vmem:[#allocation2 + $0x340] sm:$0xff]
    %v197 = vld [vmem:[#allocation2 + $0x348] sm:$0xff]
    %v198 = vld [vmem:[#allocation2 + $0x350] sm:$0xff]
    %v199 = vld [vmem:[#allocation2 + $0x358] sm:$0xff]
    %v200 = vld [vmem:[#allocation2 + $0x360] sm:$0xff]
    %v201 = vld [vmem:[#allocation2 + $0x368] sm:$0xff]
    %v202 = vld [vmem:[#allocation2 + $0x370] sm:$0xff]
    %v203 = vld [vmem:[#allocation2 + $0x378] sm:$0xff]
    %v204 = vld [vmem:[#allocation2 + $0x380] sm:$0xff]
    %v205 = vld [vmem:[#allocation2 + $0x388] sm:$0xff]
    %v206 = vld [vmem:[#allocation2 + $0x390] sm:$0xff]
    %v207 = vld [vmem:[#allocation2 + $0x398] sm:$0xff]
    %v208 = vld [vmem:[#allocation2 + $0x3a0] sm:$0xff]
    %v209 = vld [vmem:[#allocation2 + $0x3a8] sm:$0xff]
    %v210 = vld [vmem:[#allocation2 + $0x3b0] sm:$0xff]
    %v211 = vld [vmem:[#allocation2 + $0x3b8] sm:$0xff]
    %v212 = vld [vmem:[#allocation2 + $0x3c0] sm:$0xff]
    %v213 = vld [vmem:[#allocation2 + $0x3c8] sm:$0xff]
    %v214 = vld [vmem:[#allocation2 + $0x3d0] sm:$0xff]
    %v215 = vld [vmem:[#allocation2 + $0x3d8] sm:$0xff]
    %v216 = vld [vmem:[#allocation2 + $0x3e0] sm:$0xff]
    %v217 = vld [vmem:[#allocation2 + $0x3e8] sm:$0xff]
    %v218 = vld [vmem:[#allocation2 + $0x3f0] sm:$0xff]
    %v219 = vld [vmem:[#allocation2 + $0x3f8] sm:$0xff]
    %v220 = vld [vmem:[#allocation2 + $0x400] sm:$0xff]
    %v221 = vld [vmem:[#allocation2 + $0x408] sm:$0xff]
    %v222 = vld [vmem:[#allocation2 + $0x410] sm:$0xff]
    %v223 = vld [vmem:[#allocation2 + $0x418] sm:$0xff]
    %v224 = vld [vmem:[#allocation2 + $0x420] sm:$0xff]
    %v225 = vld [vmem:[#allocation2 + $0x428] sm:$0xff]
    %v226 = vld [vmem:[#allocation2 + $0x430] sm:$0xff]
    %v227 = vld [vmem:[#allocation2 + $0x438] sm:$0xff]
    %v228 = vld [vmem:[#allocation2 + $0x440] sm:$0xff]
    %v229 = vld [vmem:[#allocation2 + $0x448] sm:$0xff]
    %v230 = vld [vmem:[#allocation2 + $0x450] sm:$0xff]
    %v231 = vld [vmem:[#allocation2 + $0x458] sm:$0xff]
    %v232 = vld [vmem:[#allocation2 + $0x460] sm:$0xff]
    %v233 = vld [vmem:[#allocation2 + $0x468] sm:$0xff]
    %v234 = vld [vmem:[#allocation2 + $0x470] sm:$0xff]
    %v235 = vld [vmem:[#allocation2 + $0x478] sm:$0xff]
    %v236 = vld [vmem:[#allocation2 + $0x480] sm:$0xff]
    %v237 = vld [vmem:[#allocation2 + $0x488] sm:$0xff]
    %v238 = vld [vmem:[#allocation2 + $0x490] sm:$0xff]
    %v239 = vld [vmem:[#allocation2 + $0x498] sm:$0xff]
    %v240 = vld [vmem:[#allocation2 + $0x4a0] sm:$0xff]
    %v241 = vld [vmem:[#allocation2 + $0x4a8] sm:$0xff]
    %v242 = vld [vmem:[#allocation2 + $0x4b0] sm:$0xff]
    %v243 = vld [vmem:[#allocation2 + $0x4b8] sm:$0xff]
    %v244 = vld [vmem:[#allocation2 + $0x4c0] sm:$0xff]
    %v245 = vld [vmem:[#allocation2 + $0x4c8] sm:$0xff]
    %v246 = vld [vmem:[#allocation2 + $0x4d0] sm:$0xff]
    %v247 = vld [vmem:[#allocation2 + $0x4d8] sm:$0xff]
    %v248 = vld [vmem:[#allocation2 + $0x4e0] sm:$0xff]
    %v249 = vld [vmem:[#allocation2 + $0x4e8] sm:$0xff]
    %v250 = vld [vmem:[#allocation2 + $0x4f0] sm:$0xff]
    %v251 = vld [vmem:[#allocation2 + $0x4f8] sm:$0xff]
    %v252 = vld [vmem:[#allocation2 + $0x500] sm:$0xff]
    %v253 = vld [vmem:[#allocation2 + $0x508] sm:$0xff]
    %v254 = vld [vmem:[#allocation2 + $0x510] sm:$0xff]
    %v255 = vld [vmem:[#allocation2 + $0x518] sm:$0xff]
    %v256 = vld [vmem:[#allocation2 + $0x520] sm:$0xff]
    %v257 = vld [vmem:[#allocation2 + $0x528] sm:$0xff]
    %v258 = vld [vmem:[#allocation2 + $0x530] sm:$0xff]
    %v259 = vld [vmem:[#allocation2 + $0x538] sm:$0xff]
    %v260 = vld [vmem:[#allocation2 + $0x540] sm:$0xff]
    %v261 = vld [vmem:[#allocation2 + $0x548] sm:$0xff]
    %v262 = vld [vmem:[#allocation2 + $0x550] sm:$0xff]
    %v263 = vld [vmem:[#allocation2 + $0x558] sm:$0xff]
    %v264 = vld [vmem:[#allocation2 + $0x560] sm:$0xff]
    %v265 = vld [vmem:[#allocation2 + $0x568] sm:$0xff]
    %v266 = vld [vmem:[#allocation2 + $0x570] sm:$0xff]
    %v267 = vld [vmem:[#allocation2 + $0x578] sm:$0xff]
    %v268 = vld [vmem:[#allocation2 + $0x580] sm:$0xff]
    %v269 = vld [vmem:[#allocation2 + $0x588] sm:$0xff]
    %v270 = vld [vmem:[#allocation2 + $0x590] sm:$0xff]
    %v271 = vld [vmem:[#allocation2 + $0x598] sm:$0xff]
    %v272 = vld [vmem:[#allocation2 + $0x5a0] sm:$0xff]
    %v273 = vld [vmem:[#allocation2 + $0x5a8] sm:$0xff]
    %v274 = vld [vmem:[#allocation2 + $0x5b0] sm:$0xff]
    %v275 = vld [vmem:[#allocation2 + $0x5b8] sm:$0xff]
    %v276 = vld [vmem:[#allocation2 + $0x5c0] sm:$0xff]
    %v277 = vld [vmem:[#allocation2 + $0x5c8] sm:$0xff]
    %v278 = vld [vmem:[#allocation2 + $0x5d0] sm:$0xff]
    %v279 = vld [vmem:[#allocation2 + $0x5d8] sm:$0xff]
    %v280 = vld [vmem:[#allocation2 + $0x5e0] sm:$0xff]
    %v281 = vld [vmem:[#allocation2 + $0x5e8] sm:$0xff]
    %v282 = vld [vmem:[#allocation2 + $0x5f0] sm:$0xff]
    %v283 = vld [vmem:[#allocation2 + $0x5f8] sm:$0xff]
    %v284 = vld [vmem:[%s2] sm:$0xf]
    %v286 = vlaneseq
    %v287 = vshrl.u32 %v286, 7
    %v288 = vsub.s32 0, %v287
    %v289 = vrot.slane %v284, %v288
    %v290 = vlaneseq
    %v291 = vshrl.u32 %v290, 7
    %v292 = vsub.s32 1, %v291
    %v293 = vrot.slane %v284, %v292
    %v294 = vlaneseq
    %v295 = vshrl.u32 %v294, 7
    %v296 = vsub.s32 2, %v295
    %v297 = vrot.slane %v284, %v296
    %v298 = vlaneseq
    %v299 = vshrl.u32 %v298, 7
    %v300 = vsub.s32 3, %v299
    %v301 = vrot.slane %v284, %v300
    %v498 = vunpack.c.l.b16 %v92
    %v499 = vunpack.c.h.b16 %v92
    %v500 = vunpack.c.l.b16 %v93
    %v501 = vunpack.c.h.b16 %v93
    %v502 = vunpack.c.l.b16 %v94
    %v503 = vunpack.c.h.b16 %v94
    %v504 = vunpack.c.l.b16 %v95
    %v505 = vunpack.c.h.b16 %v95
    %v506 = vunpack.c.l.b16 %v96
    %v507 = vunpack.c.h.b16 %v96
    %v508 = vunpack.c.l.b16 %v97
    %v509 = vunpack.c.h.b16 %v97
    %v510 = vunpack.c.l.b16 %v98
    %v511 = vunpack.c.h.b16 %v98
    %v512 = vunpack.c.l.b16 %v99
    %v513 = vunpack.c.h.b16 %v99
    %v514 = vunpack.c.l.b16 %v100
    %v515 = vunpack.c.h.b16 %v100
    %v516 = vunpack.c.l.b16 %v101
    %v517 = vunpack.c.h.b16 %v101
    %v518 = vunpack.c.l.b16 %v102
    %v519 = vunpack.c.h.b16 %v102
    %v520 = vunpack.c.l.b16 %v103
    %v521 = vunpack.c.h.b16 %v103
    %v522 = vunpack.c.l.b16 %v104
    %v523 = vunpack.c.h.b16 %v104
    %v524 = vunpack.c.l.b16 %v105
    %v525 = vunpack.c.h.b16 %v105
    %v526 = vunpack.c.l.b16 %v106
    %v527 = vunpack.c.h.b16 %v106
    %v528 = vunpack.c.l.b16 %v107
    %v529 = vunpack.c.h.b16 %v107
    %v530 = vunpack.c.l.b16 %v108
    %v531 = vunpack.c.h.b16 %v108
    %v532 = vunpack.c.l.b16 %v109
    %v533 = vunpack.c.h.b16 %v109
    %v534 = vunpack.c.l.b16 %v110
    %v535 = vunpack.c.h.b16 %v110
    %v536 = vunpack.c.l.b16 %v111
    %v537 = vunpack.c.h.b16 %v111
    %v538 = vunpack.c.l.b16 %v112
    %v539 = vunpack.c.h.b16 %v112
    %v540 = vunpack.c.l.b16 %v113
    %v541 = vunpack.c.h.b16 %v113
    %v542 = vunpack.c.l.b16 %v114
    %v543 = vunpack.c.h.b16 %v114
    %v544 = vunpack.c.l.b16 %v115
    %v545 = vunpack.c.h.b16 %v115
    %v546 = vunpack.c.l.b16 %v116
    %v547 = vunpack.c.h.b16 %v116
    %v548 = vunpack.c.l.b16 %v117
    %v549 = vunpack.c.h.b16 %v117
    %v550 = vunpack.c.l.b16 %v118
    %v551 = vunpack.c.h.b16 %v118
    %v552 = vunpack.c.l.b16 %v119
    %v553 = vunpack.c.h.b16 %v119
    %v554 = vunpack.c.l.b16 %v120
    %v555 = vunpack.c.h.b16 %v120
    %v556 = vunpack.c.l.b16 %v121
    %v557 = vunpack.c.h.b16 %v121
    %v558 = vunpack.c.l.b16 %v122
    %v559 = vunpack.c.h.b16 %v122
    %v560 = vunpack.c.l.b16 %v123
    %v561 = vunpack.c.h.b16 %v123
    %v562 = vunpack.c.l.b16 %v124
    %v563 = vunpack.c.h.b16 %v124
    %v564 = vunpack.c.l.b16 %v125
    %v565 = vunpack.c.h.b16 %v125
    %v566 = vunpack.c.l.b16 %v126
    %v567 = vunpack.c.h.b16 %v126
    %v568 = vunpack.c.l.b16 %v127
    %v569 = vunpack.c.h.b16 %v127
    %v570 = vunpack.c.l.b16 %v128
    %v571 = vunpack.c.h.b16 %v128
    %v572 = vunpack.c.l.b16 %v129
    %v573 = vunpack.c.h.b16 %v129
    %v574 = vunpack.c.l.b16 %v130
    %v575 = vunpack.c.h.b16 %v130
    %v576 = vunpack.c.l.b16 %v131
    %v577 = vunpack.c.h.b16 %v131
    %v578 = vunpack.c.l.b16 %v132
    %v579 = vunpack.c.h.b16 %v132
    %v580 = vunpack.c.l.b16 %v133
    %v581 = vunpack.c.h.b16 %v133
    %v582 = vunpack.c.l.b16 %v134
    %v583 = vunpack.c.h.b16 %v134
    %v584 = vunpack.c.l.b16 %v135
    %v585 = vunpack.c.h.b16 %v135
    %v586 = vunpack.c.l.b16 %v136
    %v587 = vunpack.c.h.b16 %v136
    %v588 = vunpack.c.l.b16 %v137
    %v589 = vunpack.c.h.b16 %v137
    %v590 = vunpack.c.l.b16 %v138
    %v591 = vunpack.c.h.b16 %v138
    %v592 = vunpack.c.l.b16 %v139
    %v593 = vunpack.c.h.b16 %v139
    %v594 = vunpack.c.l.b16 %v140
    %v595 = vunpack.c.h.b16 %v140
    %v596 = vunpack.c.l.b16 %v141
    %v597 = vunpack.c.h.b16 %v141
    %v598 = vunpack.c.l.b16 %v142
    %v599 = vunpack.c.h.b16 %v142
    %v600 = vunpack.c.l.b16 %v143
    %v601 = vunpack.c.h.b16 %v143
    %v602 = vunpack.c.l.b16 %v144
    %v603 = vunpack.c.h.b16 %v144
    %v604 = vunpack.c.l.b16 %v145
    %v605 = vunpack.c.h.b16 %v145
    %v606 = vunpack.c.l.b16 %v146
    %v607 = vunpack.c.h.b16 %v146
    %v608 = vunpack.c.l.b16 %v147
    %v609 = vunpack.c.h.b16 %v147
    %v610 = vunpack.c.l.b16 %v148
    %v611 = vunpack.c.h.b16 %v148
    %v612 = vunpack.c.l.b16 %v149
    %v613 = vunpack.c.h.b16 %v149
    %v614 = vunpack.c.l.b16 %v150
    %v615 = vunpack.c.h.b16 %v150
    %v616 = vunpack.c.l.b16 %v151
    %v617 = vunpack.c.h.b16 %v151
    %v618 = vunpack.c.l.b16 %v152
    %v619 = vunpack.c.h.b16 %v152
    %v620 = vunpack.c.l.b16 %v153
    %v621 = vunpack.c.h.b16 %v153
    %v622 = vunpack.c.l.b16 %v154
    %v623 = vunpack.c.h.b16 %v154
    %v624 = vunpack.c.l.b16 %v155
    %v625 = vunpack.c.h.b16 %v155
    %v626 = vunpack.c.l.b16 %v156
    %v627 = vunpack.c.h.b16 %v156
    %v628 = vunpack.c.l.b16 %v157
    %v629 = vunpack.c.h.b16 %v157
    %v630 = vunpack.c.l.b16 %v158
    %v631 = vunpack.c.h.b16 %v158
    %v632 = vunpack.c.l.b16 %v159
    %v633 = vunpack.c.h.b16 %v159
    %v634 = vunpack.c.l.b16 %v160
    %v635 = vunpack.c.h.b16 %v160
    %v636 = vunpack.c.l.b16 %v161
    %v637 = vunpack.c.h.b16 %v161
    %v638 = vunpack.c.l.b16 %v162
    %v639 = vunpack.c.h.b16 %v162
    %v640 = vunpack.c.l.b16 %v163
    %v641 = vunpack.c.h.b16 %v163
    %v642 = vunpack.c.l.b16 %v164
    %v643 = vunpack.c.h.b16 %v164
    %v644 = vunpack.c.l.b16 %v165
    %v645 = vunpack.c.h.b16 %v165
    %v646 = vunpack.c.l.b16 %v166
    %v647 = vunpack.c.h.b16 %v166
    %v648 = vunpack.c.l.b16 %v167
    %v649 = vunpack.c.h.b16 %v167
    %v650 = vunpack.c.l.b16 %v168
    %v651 = vunpack.c.h.b16 %v168
    %v652 = vunpack.c.l.b16 %v169
    %v653 = vunpack.c.h.b16 %v169
    %v654 = vunpack.c.l.b16 %v170
    %v655 = vunpack.c.h.b16 %v170
    %v656 = vunpack.c.l.b16 %v171
    %v657 = vunpack.c.h.b16 %v171
    %v658 = vunpack.c.l.b16 %v172
    %v659 = vunpack.c.h.b16 %v172
    %v660 = vunpack.c.l.b16 %v173
    %v661 = vunpack.c.h.b16 %v173
    %v662 = vunpack.c.l.b16 %v174
    %v663 = vunpack.c.h.b16 %v174
    %v664 = vunpack.c.l.b16 %v175
    %v665 = vunpack.c.h.b16 %v175
    %v666 = vunpack.c.l.b16 %v176
    %v667 = vunpack.c.h.b16 %v176
    %v668 = vunpack.c.l.b16 %v177
    %v669 = vunpack.c.h.b16 %v177
    %v670 = vunpack.c.l.b16 %v178
    %v671 = vunpack.c.h.b16 %v178
    %v672 = vunpack.c.l.b16 %v179
    %v673 = vunpack.c.h.b16 %v179
    %v674 = vunpack.c.l.b16 %v180
    %v675 = vunpack.c.h.b16 %v180
    %v676 = vunpack.c.l.b16 %v181
    %v677 = vunpack.c.h.b16 %v181
    %v678 = vunpack.c.l.b16 %v182
    %v679 = vunpack.c.h.b16 %v182
    %v680 = vunpack.c.l.b16 %v183
    %v681 = vunpack.c.h.b16 %v183
    %v682 = vunpack.c.l.b16 %v184
    %v683 = vunpack.c.h.b16 %v184
    %v684 = vunpack.c.l.b16 %v185
    %v685 = vunpack.c.h.b16 %v185
    %v686 = vunpack.c.l.b16 %v186
    %v687 = vunpack.c.h.b16 %v186
    %v688 = vunpack.c.l.b16 %v187
    %v689 = vunpack.c.h.b16 %v187
    %v690 = vunpack.c.l.b16 %v188
    %v691 = vunpack.c.h.b16 %v188
    %v692 = vunpack.c.l.b16 %v189
    %v693 = vunpack.c.h.b16 %v189
    %v694 = vunpack.c.l.b16 %v190
    %v695 = vunpack.c.h.b16 %v190
    %v696 = vunpack.c.l.b16 %v191
    %v697 = vunpack.c.h.b16 %v191
    %v698 = vunpack.c.l.b16 %v192
    %v699 = vunpack.c.h.b16 %v192
    %v700 = vunpack.c.l.b16 %v193
    %v701 = vunpack.c.h.b16 %v193
    %v702 = vunpack.c.l.b16 %v194
    %v703 = vunpack.c.h.b16 %v194
    %v704 = vunpack.c.l.b16 %v195
    %v705 = vunpack.c.h.b16 %v195
    %v706 = vunpack.c.l.b16 %v196
    %v707 = vunpack.c.h.b16 %v196
    %v708 = vunpack.c.l.b16 %v197
    %v709 = vunpack.c.h.b16 %v197
    %v710 = vunpack.c.l.b16 %v198
    %v711 = vunpack.c.h.b16 %v198
    %v712 = vunpack.c.l.b16 %v199
    %v713 = vunpack.c.h.b16 %v199
    %v714 = vunpack.c.l.b16 %v200
    %v715 = vunpack.c.h.b16 %v200
    %v716 = vunpack.c.l.b16 %v201
    %v717 = vunpack.c.h.b16 %v201
    %v718 = vunpack.c.l.b16 %v202
    %v719 = vunpack.c.h.b16 %v202
    %v720 = vunpack.c.l.b16 %v203
    %v721 = vunpack.c.h.b16 %v203
    %v722 = vunpack.c.l.b16 %v204
    %v723 = vunpack.c.h.b16 %v204
    %v724 = vunpack.c.l.b16 %v205
    %v725 = vunpack.c.h.b16 %v205
    %v726 = vunpack.c.l.b16 %v206
    %v727 = vunpack.c.h.b16 %v206
    %v728 = vunpack.c.l.b16 %v207
    %v729 = vunpack.c.h.b16 %v207
    %v730 = vunpack.c.l.b16 %v208
    %v731 = vunpack.c.h.b16 %v208
    %v732 = vunpack.c.l.b16 %v209
    %v733 = vunpack.c.h.b16 %v209
    %v734 = vunpack.c.l.b16 %v210
    %v735 = vunpack.c.h.b16 %v210
    %v736 = vunpack.c.l.b16 %v211
    %v737 = vunpack.c.h.b16 %v211
    %v738 = vunpack.c.l.b16 %v212
    %v739 = vunpack.c.h.b16 %v212
    %v740 = vunpack.c.l.b16 %v213
    %v741 = vunpack.c.h.b16 %v213
    %v742 = vunpack.c.l.b16 %v214
    %v743 = vunpack.c.h.b16 %v214
    %v744 = vunpack.c.l.b16 %v215
    %v745 = vunpack.c.h.b16 %v215
    %v746 = vunpack.c.l.b16 %v216
    %v747 = vunpack.c.h.b16 %v216
    %v748 = vunpack.c.l.b16 %v217
    %v749 = vunpack.c.h.b16 %v217
    %v750 = vunpack.c.l.b16 %v218
    %v751 = vunpack.c.h.b16 %v218
    %v752 = vunpack.c.l.b16 %v219
    %v753 = vunpack.c.h.b16 %v219
    %v754 = vunpack.c.l.b16 %v220
    %v755 = vunpack.c.h.b16 %v220
    %v756 = vunpack.c.l.b16 %v221
    %v757 = vunpack.c.h.b16 %v221
    %v758 = vunpack.c.l.b16 %v222
    %v759 = vunpack.c.h.b16 %v222
    %v760 = vunpack.c.l.b16 %v223
    %v761 = vunpack.c.h.b16 %v223
    %v762 = vunpack.c.l.b16 %v224
    %v763 = vunpack.c.h.b16 %v224
    %v764 = vunpack.c.l.b16 %v225
    %v765 = vunpack.c.h.b16 %v225
    %v766 = vunpack.c.l.b16 %v226
    %v767 = vunpack.c.h.b16 %v226
    %v768 = vunpack.c.l.b16 %v227
    %v769 = vunpack.c.h.b16 %v227
    %v770 = vunpack.c.l.b16 %v228
    %v771 = vunpack.c.h.b16 %v228
    %v772 = vunpack.c.l.b16 %v229
    %v773 = vunpack.c.h.b16 %v229
    %v774 = vunpack.c.l.b16 %v230
    %v775 = vunpack.c.h.b16 %v230
    %v776 = vunpack.c.l.b16 %v231
    %v777 = vunpack.c.h.b16 %v231
    %v778 = vunpack.c.l.b16 %v232
    %v779 = vunpack.c.h.b16 %v232
    %v780 = vunpack.c.l.b16 %v233
    %v781 = vunpack.c.h.b16 %v233
    %v782 = vunpack.c.l.b16 %v234
    %v783 = vunpack.c.h.b16 %v234
    %v784 = vunpack.c.l.b16 %v235
    %v785 = vunpack.c.h.b16 %v235
    %v786 = vunpack.c.l.b16 %v236
    %v787 = vunpack.c.h.b16 %v236
    %v788 = vunpack.c.l.b16 %v237
    %v789 = vunpack.c.h.b16 %v237
    %v790 = vunpack.c.l.b16 %v238
    %v791 = vunpack.c.h.b16 %v238
    %v792 = vunpack.c.l.b16 %v239
    %v793 = vunpack.c.h.b16 %v239
    %v794 = vunpack.c.l.b16 %v240
    %v795 = vunpack.c.h.b16 %v240
    %v796 = vunpack.c.l.b16 %v241
    %v797 = vunpack.c.h.b16 %v241
    %v798 = vunpack.c.l.b16 %v242
    %v799 = vunpack.c.h.b16 %v242
    %v800 = vunpack.c.l.b16 %v243
    %v801 = vunpack.c.h.b16 %v243
    %v802 = vunpack.c.l.b16 %v244
    %v803 = vunpack.c.h.b16 %v244
    %v804 = vunpack.c.l.b16 %v245
    %v805 = vunpack.c.h.b16 %v245
    %v806 = vunpack.c.l.b16 %v246
    %v807 = vunpack.c.h.b16 %v246
    %v808 = vunpack.c.l.b16 %v247
    %v809 = vunpack.c.h.b16 %v247
    %v810 = vunpack.c.l.b16 %v248
    %v811 = vunpack.c.h.b16 %v248
    %v812 = vunpack.c.l.b16 %v249
    %v813 = vunpack.c.h.b16 %v249
    %v814 = vunpack.c.l.b16 %v250
    %v815 = vunpack.c.h.b16 %v250
    %v816 = vunpack.c.l.b16 %v251
    %v817 = vunpack.c.h.b16 %v251
    %v818 = vunpack.c.l.b16 %v252
    %v819 = vunpack.c.h.b16 %v252
    %v820 = vunpack.c.l.b16 %v253
    %v821 = vunpack.c.h.b16 %v253
    %v822 = vunpack.c.l.b16 %v254
    %v823 = vunpack.c.h.b16 %v254
    %v824 = vunpack.c.l.b16 %v255
    %v825 = vunpack.c.h.b16 %v255
    %v826 = vunpack.c.l.b16 %v256
    %v827 = vunpack.c.h.b16 %v256
    %v828 = vunpack.c.l.b16 %v257
    %v829 = vunpack.c.h.b16 %v257
    %v830 = vunpack.c.l.b16 %v258
    %v831 = vunpack.c.h.b16 %v258
    %v832 = vunpack.c.l.b16 %v259
    %v833 = vunpack.c.h.b16 %v259
    %v834 = vunpack.c.l.b16 %v260
    %v835 = vunpack.c.h.b16 %v260
    %v836 = vunpack.c.l.b16 %v261
    %v837 = vunpack.c.h.b16 %v261
    %v838 = vunpack.c.l.b16 %v262
    %v839 = vunpack.c.h.b16 %v262
    %v840 = vunpack.c.l.b16 %v263
    %v841 = vunpack.c.h.b16 %v263
    %v842 = vunpack.c.l.b16 %v264
    %v843 = vunpack.c.h.b16 %v264
    %v844 = vunpack.c.l.b16 %v265
    %v845 = vunpack.c.h.b16 %v265
    %v846 = vunpack.c.l.b16 %v266
    %v847 = vunpack.c.h.b16 %v266
    %v848 = vunpack.c.l.b16 %v267
    %v849 = vunpack.c.h.b16 %v267
    %v850 = vunpack.c.l.b16 %v268
    %v851 = vunpack.c.h.b16 %v268
    %v852 = vunpack.c.l.b16 %v269
    %v853 = vunpack.c.h.b16 %v269
    %v854 = vunpack.c.l.b16 %v270
    %v855 = vunpack.c.h.b16 %v270
    %v856 = vunpack.c.l.b16 %v271
    %v857 = vunpack.c.h.b16 %v271
    %v858 = vunpack.c.l.b16 %v272
    %v859 = vunpack.c.h.b16 %v272
    %v860 = vunpack.c.l.b16 %v273
    %v861 = vunpack.c.h.b16 %v273
    %v862 = vunpack.c.l.b16 %v274
    %v863 = vunpack.c.h.b16 %v274
    %v864 = vunpack.c.l.b16 %v275
    %v865 = vunpack.c.h.b16 %v275
    %v866 = vunpack.c.l.b16 %v276
    %v867 = vunpack.c.h.b16 %v276
    %v868 = vunpack.c.l.b16 %v277
    %v869 = vunpack.c.h.b16 %v277
    %v870 = vunpack.c.l.b16 %v278
    %v871 = vunpack.c.h.b16 %v278
    %v872 = vunpack.c.l.b16 %v279
    %v873 = vunpack.c.h.b16 %v279
    %v874 = vunpack.c.l.b16 %v280
    %v875 = vunpack.c.h.b16 %v280
    %v876 = vunpack.c.l.b16 %v281
    %v877 = vunpack.c.h.b16 %v281
    %v878 = vunpack.c.l.b16 %v282
    %v879 = vunpack.c.h.b16 %v282
    %v880 = vunpack.c.l.b16 %v283
    %v881 = vunpack.c.h.b16 %v283
    %v882 = vpack.c.b16 %v502, %v498
    %v883 = vpack.c.b16 %v503, %v499
    %v884 = vpack.c.b16 %v504, %v500
    %v885 = vpack.c.b16 %v505, %v501
    %v886 = vpack.c.b16 %v510, %v506
    %v887 = vpack.c.b16 %v511, %v507
    %v888 = vpack.c.b16 %v512, %v508
    %v889 = vpack.c.b16 %v513, %v509
    %v890 = vpack.c.b16 %v518, %v514
    %v891 = vpack.c.b16 %v519, %v515
    %v892 = vpack.c.b16 %v520, %v516
    %v893 = vpack.c.b16 %v521, %v517
    %v894 = vpack.c.b16 %v526, %v522
    %v895 = vpack.c.b16 %v527, %v523
    %v896 = vpack.c.b16 %v528, %v524
    %v897 = vpack.c.b16 %v529, %v525
    %v898 = vpack.c.b16 %v534, %v530
    %v899 = vpack.c.b16 %v535, %v531
    %v900 = vpack.c.b16 %v536, %v532
    %v901 = vpack.c.b16 %v537, %v533
    %v902 = vpack.c.b16 %v542, %v538
    %v903 = vpack.c.b16 %v543, %v539
    %v904 = vpack.c.b16 %v544, %v540
    %v905 = vpack.c.b16 %v545, %v541
    %v906 = vpack.c.b16 %v550, %v546
    %v907 = vpack.c.b16 %v551, %v547
    %v908 = vpack.c.b16 %v552, %v548
    %v909 = vpack.c.b16 %v553, %v549
    %v910 = vpack.c.b16 %v558, %v554
    %v911 = vpack.c.b16 %v559, %v555
    %v912 = vpack.c.b16 %v560, %v556
    %v913 = vpack.c.b16 %v561, %v557
    %v914 = vpack.c.b16 %v566, %v562
    %v915 = vpack.c.b16 %v567, %v563
    %v916 = vpack.c.b16 %v568, %v564
    %v917 = vpack.c.b16 %v569, %v565
    %v918 = vpack.c.b16 %v574, %v570
    %v919 = vpack.c.b16 %v575, %v571
    %v920 = vpack.c.b16 %v576, %v572
    %v921 = vpack.c.b16 %v577, %v573
    %v922 = vpack.c.b16 %v582, %v578
    %v923 = vpack.c.b16 %v583, %v579
    %v924 = vpack.c.b16 %v584, %v580
    %v925 = vpack.c.b16 %v585, %v581
    %v926 = vpack.c.b16 %v590, %v586
    %v927 = vpack.c.b16 %v591, %v587
    %v928 = vpack.c.b16 %v592, %v588
    %v929 = vpack.c.b16 %v593, %v589
    %v930 = vpack.c.b16 %v598, %v594
    %v931 = vpack.c.b16 %v599, %v595
    %v932 = vpack.c.b16 %v600, %v596
    %v933 = vpack.c.b16 %v601, %v597
    %v934 = vpack.c.b16 %v606, %v602
    %v935 = vpack.c.b16 %v607, %v603
    %v936 = vpack.c.b16 %v608, %v604
    %v937 = vpack.c.b16 %v609, %v605
    %v938 = vpack.c.b16 %v614, %v610
    %v939 = vpack.c.b16 %v615, %v611
    %v940 = vpack.c.b16 %v616, %v612
    %v941 = vpack.c.b16 %v617, %v613
    %v942 = vpack.c.b16 %v622, %v618
    %v943 = vpack.c.b16 %v623, %v619
    %v944 = vpack.c.b16 %v624, %v620
    %v945 = vpack.c.b16 %v625, %v621
    %v946 = vpack.c.b16 %v630, %v626
    %v947 = vpack.c.b16 %v631, %v627
    %v948 = vpack.c.b16 %v632, %v628
    %v949 = vpack.c.b16 %v633, %v629
    %v950 = vpack.c.b16 %v638, %v634
    %v951 = vpack.c.b16 %v639, %v635
    %v952 = vpack.c.b16 %v640, %v636
    %v953 = vpack.c.b16 %v641, %v637
    %v954 = vpack.c.b16 %v646, %v642
    %v955 = vpack.c.b16 %v647, %v643
    %v956 = vpack.c.b16 %v648, %v644
    %v957 = vpack.c.b16 %v649, %v645
    %v958 = vpack.c.b16 %v654, %v650
    %v959 = vpack.c.b16 %v655, %v651
    %v960 = vpack.c.b16 %v656, %v652
    %v961 = vpack.c.b16 %v657, %v653
    %v962 = vpack.c.b16 %v662, %v658
    %v963 = vpack.c.b16 %v663, %v659
    %v964 = vpack.c.b16 %v664, %v660
    %v965 = vpack.c.b16 %v665, %v661
    %v966 = vpack.c.b16 %v670, %v666
    %v967 = vpack.c.b16 %v671, %v667
    %v968 = vpack.c.b16 %v672, %v668
    %v969 = vpack.c.b16 %v673, %v669
    %v970 = vpack.c.b16 %v678, %v674
    %v971 = vpack.c.b16 %v679, %v675
    %v972 = vpack.c.b16 %v680, %v676
    %v973 = vpack.c.b16 %v681, %v677
    %v974 = vpack.c.b16 %v686, %v682
    %v975 = vpack.c.b16 %v687, %v683
    %v976 = vpack.c.b16 %v688, %v684
    %v977 = vpack.c.b16 %v689, %v685
    %v978 = vpack.c.b16 %v694, %v690
    %v979 = vpack.c.b16 %v695, %v691
    %v980 = vpack.c.b16 %v696, %v692
    %v981 = vpack.c.b16 %v697, %v693
    %v982 = vpack.c.b16 %v702, %v698
    %v983 = vpack.c.b16 %v703, %v699
    %v984 = vpack.c.b16 %v704, %v700
    %v985 = vpack.c.b16 %v705, %v701
    %v986 = vpack.c.b16 %v710, %v706
    %v987 = vpack.c.b16 %v711, %v707
    %v988 = vpack.c.b16 %v712, %v708
    %v989 = vpack.c.b16 %v713, %v709
    %v990 = vpack.c.b16 %v718, %v714
    %v991 = vpack.c.b16 %v719, %v715
    %v992 = vpack.c.b16 %v720, %v716
    %v993 = vpack.c.b16 %v721, %v717
    %v994 = vpack.c.b16 %v726, %v722
    %v995 = vpack.c.b16 %v727, %v723
    %v996 = vpack.c.b16 %v728, %v724
    %v997 = vpack.c.b16 %v729, %v725
    %v998 = vpack.c.b16 %v734, %v730
    %v999 = vpack.c.b16 %v735, %v731
    %v1000 = vpack.c.b16 %v736, %v732
    %v1001 = vpack.c.b16 %v737, %v733
    %v1002 = vpack.c.b16 %v742, %v738
    %v1003 = vpack.c.b16 %v743, %v739
    %v1004 = vpack.c.b16 %v744, %v740
    %v1005 = vpack.c.b16 %v745, %v741
    %v1006 = vpack.c.b16 %v750, %v746
    %v1007 = vpack.c.b16 %v751, %v747
    %v1008 = vpack.c.b16 %v752, %v748
    %v1009 = vpack.c.b16 %v753, %v749
    %v1010 = vpack.c.b16 %v758, %v754
    %v1011 = vpack.c.b16 %v759, %v755
    %v1012 = vpack.c.b16 %v760, %v756
    %v1013 = vpack.c.b16 %v761, %v757
    %v1014 = vpack.c.b16 %v766, %v762
    %v1015 = vpack.c.b16 %v767, %v763
    %v1016 = vpack.c.b16 %v768, %v764
    %v1017 = vpack.c.b16 %v769, %v765
    %v1018 = vpack.c.b16 %v774, %v770
    %v1019 = vpack.c.b16 %v775, %v771
    %v1020 = vpack.c.b16 %v776, %v772
    %v1021 = vpack.c.b16 %v777, %v773
    %v1022 = vpack.c.b16 %v782, %v778
    %v1023 = vpack.c.b16 %v783, %v779
    %v1024 = vpack.c.b16 %v784, %v780
    %v1025 = vpack.c.b16 %v785, %v781
    %v1026 = vpack.c.b16 %v790, %v786
    %v1027 = vpack.c.b16 %v791, %v787
    %v1028 = vpack.c.b16 %v792, %v788
    %v1029 = vpack.c.b16 %v793, %v789
    %v1030 = vpack.c.b16 %v798, %v794
    %v1031 = vpack.c.b16 %v799, %v795
    %v1032 = vpack.c.b16 %v800, %v796
    %v1033 = vpack.c.b16 %v801, %v797
    %v1034 = vpack.c.b16 %v806, %v802
    %v1035 = vpack.c.b16 %v807, %v803
    %v1036 = vpack.c.b16 %v808, %v804
    %v1037 = vpack.c.b16 %v809, %v805
    %v1038 = vpack.c.b16 %v814, %v810
    %v1039 = vpack.c.b16 %v815, %v811
    %v1040 = vpack.c.b16 %v816, %v812
    %v1041 = vpack.c.b16 %v817, %v813
    %v1042 = vpack.c.b16 %v822, %v818
    %v1043 = vpack.c.b16 %v823, %v819
    %v1044 = vpack.c.b16 %v824, %v820
    %v1045 = vpack.c.b16 %v825, %v821
    %v1046 = vpack.c.b16 %v830, %v826
    %v1047 = vpack.c.b16 %v831, %v827
    %v1048 = vpack.c.b16 %v832, %v828
    %v1049 = vpack.c.b16 %v833, %v829
    %v1050 = vpack.c.b16 %v838, %v834
    %v1051 = vpack.c.b16 %v839, %v835
    %v1052 = vpack.c.b16 %v840, %v836
    %v1053 = vpack.c.b16 %v841, %v837
    %v1054 = vpack.c.b16 %v846, %v842
    %v1055 = vpack.c.b16 %v847, %v843
    %v1056 = vpack.c.b16 %v848, %v844
    %v1057 = vpack.c.b16 %v849, %v845
    %v1058 = vpack.c.b16 %v854, %v850
    %v1059 = vpack.c.b16 %v855, %v851
    %v1060 = vpack.c.b16 %v856, %v852
    %v1061 = vpack.c.b16 %v857, %v853
    %v1062 = vpack.c.b16 %v862, %v858
    %v1063 = vpack.c.b16 %v863, %v859
    %v1064 = vpack.c.b16 %v864, %v860
    %v1065 = vpack.c.b16 %v865, %v861
    %v1066 = vpack.c.b16 %v870, %v866
    %v1067 = vpack.c.b16 %v871, %v867
    %v1068 = vpack.c.b16 %v872, %v868
    %v1069 = vpack.c.b16 %v873, %v869
    %v1070 = vpack.c.b16 %v878, %v874
    %v1071 = vpack.c.b16 %v879, %v875
    %v1072 = vpack.c.b16 %v880, %v876
    %v1073 = vpack.c.b16 %v881, %v877
    %1266 = vmatprep.subr.bf16.mxu0 %v883
    %1267 = vmatpush1.bf16.msra.mxu0 %v882
    %1268 = vmatprep.subr.bf16.mxu0 %v887
    %1269 = vmatpush1.bf16.msra.mxu0 %v886
    %1270 = vmatprep.subr.bf16.mxu0 %v891
    %1271 = vmatpush1.bf16.msra.mxu0 %v890
    %1272 = vmatprep.subr.bf16.mxu0 %v895
    %1273 = vmatpush1.bf16.msra.mxu0 %v894
    %1274 = vmatprep.subr.bf16.mxu0 %v899
    %1275 = vmatpush1.bf16.msra.mxu0 %v898
    %1276 = vmatprep.subr.bf16.mxu0 %v903
    %1277 = vmatpush1.bf16.msra.mxu0 %v902
    %1278 = vmatprep.subr.bf16.mxu0 %v907
    %1279 = vmatpush1.bf16.msra.mxu0 %v906
    %1280 = vmatprep.subr.bf16.mxu0 %v911
    %1281 = vmatpush1.bf16.msra.mxu0 %v910
    %1282 = vmatprep.subr.bf16.mxu0 %v915
    %1283 = vmatpush1.bf16.msra.mxu0 %v914
    %1284 = vmatprep.subr.bf16.mxu0 %v919
    %1285 = vmatpush1.bf16.msra.mxu0 %v918
    %1286 = vmatprep.subr.bf16.mxu0 %v923
    %1287 = vmatpush1.bf16.msra.mxu0 %v922
    %1288 = vmatprep.subr.bf16.mxu0 %v927
    %1289 = vmatpush1.bf16.msra.mxu0 %v926
    %1290 = vmatprep.subr.bf16.mxu0 %v931
    %1291 = vmatpush1.bf16.msra.mxu0 %v930
    %1292 = vmatprep.subr.bf16.mxu0 %v935
    %1293 = vmatpush1.bf16.msra.mxu0 %v934
    %1294 = vmatprep.subr.bf16.mxu0 %v939
    %1295 = vmatpush1.bf16.msra.mxu0 %v938
    %1296 = vmatprep.subr.bf16.mxu0 %v943
    %1297 = vmatpush1.bf16.msra.mxu0 %v942
    %1298 = vmatprep.mubr.bf16.mxu0 %v87
    %1299 = vmatmul.mubr.bf16.gmra.mrb[0].mxu0 %v86
    %v1300 = vpop.f32.mrb[0].mxu0
    %v1301 = vadd.f32 %v289, %v1300
    %v1302 = vpop.f32.mrb[0].mxu0
    %v1303 = vadd.f32 %v293, %v1302
    %v1304 = vpop.f32.mrb[0].mxu0
    %v1305 = vadd.f32 %v289, %v1304
    %v1306 = vpop.f32.mrb[0].mxu0
    %v1307 = vadd.f32 %v293, %v1306
    %1308 = vdwg.mxu0
    %1309 = vmatprep.subr.bf16.mxu0 %v947
    %1310 = vmatpush1.bf16.msra.mxu0 %v946
    %1311 = vmatprep.subr.bf16.mxu0 %v951
    %1312 = vmatpush1.bf16.msra.mxu0 %v950
    %1313 = vmatprep.subr.bf16.mxu0 %v955
    %1314 = vmatpush1.bf16.msra.mxu0 %v954
    %1315 = vmatprep.subr.bf16.mxu0 %v959
    %1316 = vmatpush1.bf16.msra.mxu0 %v958
    %1317 = vmatprep.subr.bf16.mxu0 %v963
    %1318 = vmatpush1.bf16.msra.mxu0 %v962
    %1319 = vmatprep.subr.bf16.mxu0 %v967
    %1320 = vmatpush1.bf16.msra.mxu0 %v966
    %1321 = vmatprep.subr.bf16.mxu0 %v971
    %1322 = vmatpush1.bf16.msra.mxu0 %v970
    %1323 = vmatprep.subr.bf16.mxu0 %v975
    %1324 = vmatpush1.bf16.msra.mxu0 %v974
    %1325 = vmatprep.subr.bf16.mxu0 %v979
    %1326 = vmatpush1.bf16.msra.mxu0 %v978
    %1327 = vmatprep.subr.bf16.mxu0 %v983
    %1328 = vmatpush1.bf16.msra.mxu0 %v982
    %1329 = vmatprep.subr.bf16.mxu0 %v987
    %1330 = vmatpush1.bf16.msra.mxu0 %v986
    %1331 = vmatprep.subr.bf16.mxu0 %v991
    %1332 = vmatpush1.bf16.msra.mxu0 %v990
    %1333 = vmatprep.subr.bf16.mxu0 %v995
    %1334 = vmatpush1.bf16.msra.mxu0 %v994
    %1335 = vmatprep.subr.bf16.mxu0 %v999
    %1336 = vmatpush1.bf16.msra.mxu0 %v998
    %1337 = vmatprep.subr.bf16.mxu0 %v1003
    %1338 = vmatpush1.bf16.msra.mxu0 %v1002
    %1339 = vmatprep.subr.bf16.mxu0 %v1007
    %1340 = vmatpush1.bf16.msra.mxu0 %v1006
    %1341 = vmatprep.mubr.bf16.mxu0 %v89
    %1342 = vmatmul.mubr.bf16.gmra.mrb[0].mxu0 %v88
    %v1343 = vpop.f32.mrb[0].mxu0
    %v1344 = vadd.f32 %v1301, %v1343
    %v1345 = vpop.f32.mrb[0].mxu0
    %v1346 = vadd.f32 %v1303, %v1345
    %v1347 = vpop.f32.mrb[0].mxu0
    %v1348 = vadd.f32 %v1305, %v1347
    %v1349 = vpop.f32.mrb[0].mxu0
    %v1350 = vadd.f32 %v1307, %v1349
    %1351 = vdwg.mxu0
    %1352 = vmatprep.subr.bf16.mxu0 %v1011
    %1353 = vmatpush1.bf16.msra.mxu0 %v1010
    %1354 = vmatprep.subr.bf16.mxu0 %v1015
    %1355 = vmatpush1.bf16.msra.mxu0 %v1014
    %1356 = vmatprep.subr.bf16.mxu0 %v1019
    %1357 = vmatpush1.bf16.msra.mxu0 %v1018
    %1358 = vmatprep.subr.bf16.mxu0 %v1023
    %1359 = vmatpush1.bf16.msra.mxu0 %v1022
    %1360 = vmatprep.subr.bf16.mxu0 %v1027
    %1361 = vmatpush1.bf16.msra.mxu0 %v1026
    %1362 = vmatprep.subr.bf16.mxu0 %v1031
    %1363 = vmatpush1.bf16.msra.mxu0 %v1030
    %1364 = vmatprep.subr.bf16.mxu0 %v1035
    %1365 = vmatpush1.bf16.msra.mxu0 %v1034
    %1366 = vmatprep.subr.bf16.mxu0 %v1039
    %1367 = vmatpush1.bf16.msra.mxu0 %v1038
    %1368 = vmatprep.subr.bf16.mxu0 %v1043
    %1369 = vmatpush1.bf16.msra.mxu0 %v1042
    %1370 = vmatprep.subr.bf16.mxu0 %v1047
    %1371 = vmatpush1.bf16.msra.mxu0 %v1046
    %1372 = vmatprep.subr.bf16.mxu0 %v1051
    %1373 = vmatpush1.bf16.msra.mxu0 %v1050
    %1374 = vmatprep.subr.bf16.mxu0 %v1055
    %1375 = vmatpush1.bf16.msra.mxu0 %v1054
    %1376 = vmatprep.subr.bf16.mxu0 %v1059
    %1377 = vmatpush1.bf16.msra.mxu0 %v1058
    %1378 = vmatprep.subr.bf16.mxu0 %v1063
    %1379 = vmatpush1.bf16.msra.mxu0 %v1062
    %1380 = vmatprep.subr.bf16.mxu0 %v1067
    %1381 = vmatpush1.bf16.msra.mxu0 %v1066
    %1382 = vmatprep.subr.bf16.mxu0 %v1071
    %1383 = vmatpush1.bf16.msra.mxu0 %v1070
    %1384 = vmatprep.mubr.bf16.mxu0 %v91
    %1385 = vmatmul.mubr.bf16.gmra.mrb[0].mxu0 %v90
    %v1386 = vpop.f32.mrb[0].mxu0
    %v1387 = vadd.f32 %v1344, %v1386
    %v1388 = vpop.f32.mrb[0].mxu0
    %v1389 = vadd.f32 %v1346, %v1388
    %v1390 = vpop.f32.mrb[0].mxu0
    %v1391 = vadd.f32 %v1348, %v1390
    %v1392 = vpop.f32.mrb[0].mxu0
    %v1393 = vadd.f32 %v1350, %v1392
    %1394 = vdwg.mxu0
    %1395 = vmatprep.subr.bf16.mxu0 %v885
    %1396 = vmatpush1.bf16.msra.mxu0 %v884
    %1397 = vmatprep.subr.bf16.mxu0 %v889
    %1398 = vmatpush1.bf16.msra.mxu0 %v888
    %1399 = vmatprep.subr.bf16.mxu0 %v893
    %1400 = vmatpush1.bf16.msra.mxu0 %v892
    %1401 = vmatprep.subr.bf16.mxu0 %v897
    %1402 = vmatpush1.bf16.msra.mxu0 %v896
    %1403 = vmatprep.subr.bf16.mxu0 %v901
    %1404 = vmatpush1.bf16.msra.mxu0 %v900
    %1405 = vmatprep.subr.bf16.mxu0 %v905
    %1406 = vmatpush1.bf16.msra.mxu0 %v904
    %1407 = vmatprep.subr.bf16.mxu0 %v909
    %1408 = vmatpush1.bf16.msra.mxu0 %v908
    %1409 = vmatprep.subr.bf16.mxu0 %v913
    %1410 = vmatpush1.bf16.msra.mxu0 %v912
    %1411 = vmatprep.subr.bf16.mxu0 %v917
    %1412 = vmatpush1.bf16.msra.mxu0 %v916
    %1413 = vmatprep.subr.bf16.mxu0 %v921
    %1414 = vmatpush1.bf16.msra.mxu0 %v920
    %1415 = vmatprep.subr.bf16.mxu0 %v925
    %1416 = vmatpush1.bf16.msra.mxu0 %v924
    %1417 = vmatprep.subr.bf16.mxu0 %v929
    %1418 = vmatpush1.bf16.msra.mxu0 %v928
    %1419 = vmatprep.subr.bf16.mxu0 %v933
    %1420 = vmatpush1.bf16.msra.mxu0 %v932
    %1421 = vmatprep.subr.bf16.mxu0 %v937
    %1422 = vmatpush1.bf16.msra.mxu0 %v936
    %1423 = vmatprep.subr.bf16.mxu0 %v941
    %1424 = vmatpush1.bf16.msra.mxu0 %v940
    %1425 = vmatprep.subr.bf16.mxu0 %v945
    %1426 = vmatpush1.bf16.msra.mxu0 %v944
    %1427 = vmatprep.mubr.bf16.mxu0 %v87
    %1428 = vmatmul.mubr.bf16.gmra.mrb[0].mxu0 %v86
    %v1429 = vpop.f32.mrb[0].mxu0
    %v1430 = vadd.f32 %v297, %v1429
    %v1431 = vpop.f32.mrb[0].mxu0
    %v1432 = vadd.f32 %v301, %v1431
    %v1433 = vpop.f32.mrb[0].mxu0
    %v1434 = vadd.f32 %v297, %v1433
    %v1435 = vpop.f32.mrb[0].mxu0
    %v1436 = vadd.f32 %v301, %v1435
    %1437 = vdwg.mxu0
    %1438 = vmatprep.subr.bf16.mxu0 %v949
    %1439 = vmatpush1.bf16.msra.mxu0 %v948
    %1440 = vmatprep.subr.bf16.mxu0 %v953
    %1441 = vmatpush1.bf16.msra.mxu0 %v952
    %1442 = vmatprep.subr.bf16.mxu0 %v957
    %1443 = vmatpush1.bf16.msra.mxu0 %v956
    %1444 = vmatprep.subr.bf16.mxu0 %v961
    %1445 = vmatpush1.bf16.msra.mxu0 %v960
    %1446 = vmatprep.subr.bf16.mxu0 %v965
    %1447 = vmatpush1.bf16.msra.mxu0 %v964
    %1448 = vmatprep.subr.bf16.mxu0 %v969
    %1449 = vmatpush1.bf16.msra.mxu0 %v968
    %1450 = vmatprep.subr.bf16.mxu0 %v973
    %1451 = vmatpush1.bf16.msra.mxu0 %v972
    %1452 = vmatprep.subr.bf16.mxu0 %v977
    %1453 = vmatpush1.bf16.msra.mxu0 %v976
    %1454 = vmatprep.subr.bf16.mxu0 %v981
    %1455 = vmatpush1.bf16.msra.mxu0 %v980
    %1456 = vmatprep.subr.bf16.mxu0 %v985
    %1457 = vmatpush1.bf16.msra.mxu0 %v984
    %1458 = vmatprep.subr.bf16.mxu0 %v989
    %1459 = vmatpush1.bf16.msra.mxu0 %v988
    %1460 = vmatprep.subr.bf16.mxu0 %v993
    %1461 = vmatpush1.bf16.msra.mxu0 %v992
    %1462 = vmatprep.subr.bf16.mxu0 %v997
    %1463 = vmatpush1.bf16.msra.mxu0 %v996
    %1464 = vmatprep.subr.bf16.mxu0 %v1001
    %1465 = vmatpush1.bf16.msra.mxu0 %v1000
    %1466 = vmatprep.subr.bf16.mxu0 %v1005
    %1467 = vmatpush1.bf16.msra.mxu0 %v1004
    %1468 = vmatprep.subr.bf16.mxu0 %v1009
    %1469 = vmatpush1.bf16.msra.mxu0 %v1008
    %1470 = vmatprep.mubr.bf16.mxu0 %v89
    %1471 = vmatmul.mubr.bf16.gmra.mrb[0].mxu0 %v88
    %v1472 = vpop.f32.mrb[0].mxu0
    %v1473 = vadd.f32 %v1430, %v1472
    %v1474 = vpop.f32.mrb[0].mxu0
    %v1475 = vadd.f32 %v1432, %v1474
    %v1476 = vpop.f32.mrb[0].mxu0
    %v1477 = vadd.f32 %v1434, %v1476
    %v1478 = vpop.f32.mrb[0].mxu0
    %v1479 = vadd.f32 %v1436, %v1478
    %1480 = vdwg.mxu0
    %1481 = vmatprep.subr.bf16.mxu0 %v1013
    %1482 = vmatpush1.bf16.msra.mxu0 %v1012
    %1483 = vmatprep.subr.bf16.mxu0 %v1017
    %1484 = vmatpush1.bf16.msra.mxu0 %v1016
    %1485 = vmatprep.subr.bf16.mxu0 %v1021
    %1486 = vmatpush1.bf16.msra.mxu0 %v1020
    %1487 = vmatprep.subr.bf16.mxu0 %v1025
    %1488 = vmatpush1.bf16.msra.mxu0 %v1024
    %1489 = vmatprep.subr.bf16.mxu0 %v1029
    %1490 = vmatpush1.bf16.msra.mxu0 %v1028
    %1491 = vmatprep.subr.bf16.mxu0 %v1033
    %1492 = vmatpush1.bf16.msra.mxu0 %v1032
    %1493 = vmatprep.subr.bf16.mxu0 %v1037
    %1494 = vmatpush1.bf16.msra.mxu0 %v1036
    %1495 = vmatprep.subr.bf16.mxu0 %v1041
    %1496 = vmatpush1.bf16.msra.mxu0 %v1040
    %1497 = vmatprep.subr.bf16.mxu0 %v1045
    %1498 = vmatpush1.bf16.msra.mxu0 %v1044
    %1499 = vmatprep.subr.bf16.mxu0 %v1049
    %1500 = vmatpush1.bf16.msra.mxu0 %v1048
    %1501 = vmatprep.subr.bf16.mxu0 %v1053
    %1502 = vmatpush1.bf16.msra.mxu0 %v1052
    %1503 = vmatprep.subr.bf16.mxu0 %v1057
    %1504 = vmatpush1.bf16.msra.mxu0 %v1056
    %1505 = vmatprep.subr.bf16.mxu0 %v1061
    %1506 = vmatpush1.bf16.msra.mxu0 %v1060
    %1507 = vmatprep.subr.bf16.mxu0 %v1065
    %1508 = vmatpush1.bf16.msra.mxu0 %v1064
    %1509 = vmatprep.subr.bf16.mxu0 %v1069
    %1510 = vmatpush1.bf16.msra.mxu0 %v1068
    %1511 = vmatprep.subr.bf16.mxu0 %v1073
    %1512 = vmatpush1.bf16.msra.mxu0 %v1072
    %1513 = vmatprep.mubr.bf16.mxu0 %v91
    %1514 = vmatmul.mubr.bf16.gmra.mrb[0].mxu0 %v90
    %v1515 = vpop.f32.mrb[0].mxu0
    %v1516 = vadd.f32 %v1473, %v1515
    %v1517 = vpop.f32.mrb[0].mxu0
    %v1518 = vadd.f32 %v1475, %v1517
    %v1519 = vpop.f32.mrb[0].mxu0
    %v1520 = vadd.f32 %v1477, %v1519
    %v1521 = vpop.f32.mrb[0].mxu0
    %v1522 = vadd.f32 %v1479, %v1521
    %1523 = vdwg.mxu0
    %v1524 = vmax.f32 %v1387, 0.0
    %v1525 = vmax.f32 %v1389, 0.0
    %v1526 = vmax.f32 %v1516, 0.0
    %v1527 = vmax.f32 %v1518, 0.0
    %v1528 = vmax.f32 %v1391, 0.0
    %v1529 = vmax.f32 %v1393, 0.0
    %v1530 = vmax.f32 %v1520, 0.0
    %v1531 = vmax.f32 %v1522, 0.0
    %v1532 = vpack.c.bf16 %v1528, %v1524
    %v1533 = vpack.c.bf16 %v1529, %v1525
    %v1534 = vpack.c.bf16 %v1530, %v1526
    %v1535 = vpack.c.bf16 %v1531, %v1527
    %v1536 = vld [vmem:[#allocation4] sm:$0xff]
    %v1537 = vld [vmem:[#allocation4 + $0x8] sm:$0xff]
    %v1538 = vld [vmem:[#allocation4 + $0x10] sm:$0xff]
    %v1539 = vld [vmem:[#allocation4 + $0x18] sm:$0xff]
    %v1540 = vld [vmem:[#allocation4 + $0x20] sm:$0xff]
    %v1541 = vld [vmem:[#allocation4 + $0x28] sm:$0xff]
    %v1542 = vld [vmem:[#allocation4 + $0x30] sm:$0xff]
    %v1543 = vld [vmem:[#allocation4 + $0x38] sm:$0xff]
    %v1544 = vld [vmem:[#allocation4 + $0x40] sm:$0xff]
    %v1545 = vld [vmem:[#allocation4 + $0x48] sm:$0xff]
    %v1546 = vld [vmem:[#allocation4 + $0x50] sm:$0xff]
    %v1547 = vld [vmem:[#allocation4 + $0x58] sm:$0xff]
    %v1548 = vld [vmem:[#allocation4 + $0x60] sm:$0xff]
    %v1549 = vld [vmem:[#allocation4 + $0x68] sm:$0xff]
    %v1550 = vld [vmem:[#allocation4 + $0x70] sm:$0xff]
    %v1551 = vld [vmem:[#allocation4 + $0x78] sm:$0xff]
    %v1552 = vld [vmem:[#allocation4 + $0x80] sm:$0xff]
    %v1553 = vld [vmem:[#allocation4 + $0x88] sm:$0xff]
    %v1554 = vld [vmem:[#allocation4 + $0x90] sm:$0xff]
    %v1555 = vld [vmem:[#allocation4 + $0x98] sm:$0xff]
    %v1556 = vld [vmem:[#allocation4 + $0xa0] sm:$0xff]
    %v1557 = vld [vmem:[#allocation4 + $0xa8] sm:$0xff]
    %v1558 = vld [vmem:[#allocation4 + $0xb0] sm:$0xff]
    %v1559 = vld [vmem:[#allocation4 + $0xb8] sm:$0xff]
    %v1560 = vld [vmem:[#allocation4 + $0xc0] sm:$0xff]
    %v1561 = vld [vmem:[#allocation4 + $0xc8] sm:$0xff]
    %v1562 = vld [vmem:[#allocation4 + $0xd0] sm:$0xff]
    %v1563 = vld [vmem:[#allocation4 + $0xd8] sm:$0xff]
    %v1564 = vld [vmem:[#allocation4 + $0xe0] sm:$0xff]
    %v1565 = vld [vmem:[#allocation4 + $0xe8] sm:$0xff]
    %v1566 = vld [vmem:[#allocation4 + $0xf0] sm:$0xff]
    %v1567 = vld [vmem:[#allocation4 + $0xf8] sm:$0xff]
    %v1568 = vld [vmem:[#allocation4 + $0x100] sm:$0xff]
    %v1569 = vld [vmem:[#allocation4 + $0x108] sm:$0xff]
    %v1570 = vld [vmem:[#allocation4 + $0x110] sm:$0xff]
    %v1571 = vld [vmem:[#allocation4 + $0x118] sm:$0xff]
    %v1572 = vld [vmem:[#allocation4 + $0x120] sm:$0xff]
    %v1573 = vld [vmem:[#allocation4 + $0x128] sm:$0xff]
    %v1574 = vld [vmem:[#allocation4 + $0x130] sm:$0xff]
    %v1575 = vld [vmem:[#allocation4 + $0x138] sm:$0xff]
    %v1576 = vld [vmem:[#allocation4 + $0x140] sm:$0xff]
    %v1577 = vld [vmem:[#allocation4 + $0x148] sm:$0xff]
    %v1578 = vld [vmem:[#allocation4 + $0x150] sm:$0xff]
    %v1579 = vld [vmem:[#allocation4 + $0x158] sm:$0xff]
    %v1580 = vld [vmem:[#allocation4 + $0x160] sm:$0xff]
    %v1581 = vld [vmem:[#allocation4 + $0x168] sm:$0xff]
    %v1582 = vld [vmem:[#allocation4 + $0x170] sm:$0xff]
    %v1583 = vld [vmem:[#allocation4 + $0x178] sm:$0xff]
    %v1584 = vld [vmem:[#allocation4 + $0x180] sm:$0xff]
    %v1585 = vld [vmem:[#allocation4 + $0x188] sm:$0xff]
    %v1586 = vld [vmem:[#allocation4 + $0x190] sm:$0xff]
    %v1587 = vld [vmem:[#allocation4 + $0x198] sm:$0xff]
    %v1588 = vld [vmem:[#allocation4 + $0x1a0] sm:$0xff]
    %v1589 = vld [vmem:[#allocation4 + $0x1a8] sm:$0xff]
    %v1590 = vld [vmem:[#allocation4 + $0x1b0] sm:$0xff]
    %v1591 = vld [vmem:[#allocation4 + $0x1b8] sm:$0xff]
    %v1592 = vld [vmem:[#allocation4 + $0x1c0] sm:$0xff]
    %v1593 = vld [vmem:[#allocation4 + $0x1c8] sm:$0xff]
    %v1594 = vld [vmem:[#allocation4 + $0x1d0] sm:$0xff]
    %v1595 = vld [vmem:[#allocation4 + $0x1d8] sm:$0xff]
    %v1596 = vld [vmem:[#allocation4 + $0x1e0] sm:$0xff]
    %v1597 = vld [vmem:[#allocation4 + $0x1e8] sm:$0xff]
    %v1598 = vld [vmem:[#allocation4 + $0x1f0] sm:$0xff]
    %v1599 = vld [vmem:[#allocation4 + $0x1f8] sm:$0xff]
    %v1600 = vld [vmem:[%s4] sm:$0x3]
    %v1602 = vlaneseq
    %v1603 = vshrl.u32 %v1602, 7
    %v1604 = vsub.s32 0, %v1603
    %v1605 = vrot.slane %v1600, %v1604
    %v1606 = vlaneseq
    %v1607 = vshrl.u32 %v1606, 7
    %v1608 = vsub.s32 1, %v1607
    %v1609 = vrot.slane %v1600, %v1608
    %v1676 = vunpack.c.l.b16 %v1536
    %v1677 = vunpack.c.h.b16 %v1536
    %v1678 = vunpack.c.l.b16 %v1537
    %v1679 = vunpack.c.h.b16 %v1537
    %v1680 = vunpack.c.l.b16 %v1538
    %v1681 = vunpack.c.h.b16 %v1538
    %v1682 = vunpack.c.l.b16 %v1539
    %v1683 = vunpack.c.h.b16 %v1539
    %v1684 = vunpack.c.l.b16 %v1540
    %v1685 = vunpack.c.h.b16 %v1540
    %v1686 = vunpack.c.l.b16 %v1541
    %v1687 = vunpack.c.h.b16 %v1541
    %v1688 = vunpack.c.l.b16 %v1542
    %v1689 = vunpack.c.h.b16 %v1542
    %v1690 = vunpack.c.l.b16 %v1543
    %v1691 = vunpack.c.h.b16 %v1543
    %v1692 = vunpack.c.l.b16 %v1544
    %v1693 = vunpack.c.h.b16 %v1544
    %v1694 = vunpack.c.l.b16 %v1545
    %v1695 = vunpack.c.h.b16 %v1545
    %v1696 = vunpack.c.l.b16 %v1546
    %v1697 = vunpack.c.h.b16 %v1546
    %v1698 = vunpack.c.l.b16 %v1547
    %v1699 = vunpack.c.h.b16 %v1547
    %v1700 = vunpack.c.l.b16 %v1548
    %v1701 = vunpack.c.h.b16 %v1548
    %v1702 = vunpack.c.l.b16 %v1549
    %v1703 = vunpack.c.h.b16 %v1549
    %v1704 = vunpack.c.l.b16 %v1550
    %v1705 = vunpack.c.h.b16 %v1550
    %v1706 = vunpack.c.l.b16 %v1551
    %v1707 = vunpack.c.h.b16 %v1551
    %v1708 = vunpack.c.l.b16 %v1552
    %v1709 = vunpack.c.h.b16 %v1552
    %v1710 = vunpack.c.l.b16 %v1553
    %v1711 = vunpack.c.h.b16 %v1553
    %v1712 = vunpack.c.l.b16 %v1554
    %v1713 = vunpack.c.h.b16 %v1554
    %v1714 = vunpack.c.l.b16 %v1555
    %v1715 = vunpack.c.h.b16 %v1555
    %v1716 = vunpack.c.l.b16 %v1556
    %v1717 = vunpack.c.h.b16 %v1556
    %v1718 = vunpack.c.l.b16 %v1557
    %v1719 = vunpack.c.h.b16 %v1557
    %v1720 = vunpack.c.l.b16 %v1558
    %v1721 = vunpack.c.h.b16 %v1558
    %v1722 = vunpack.c.l.b16 %v1559
    %v1723 = vunpack.c.h.b16 %v1559
    %v1724 = vunpack.c.l.b16 %v1560
    %v1725 = vunpack.c.h.b16 %v1560
    %v1726 = vunpack.c.l.b16 %v1561
    %v1727 = vunpack.c.h.b16 %v1561
    %v1728 = vunpack.c.l.b16 %v1562
    %v1729 = vunpack.c.h.b16 %v1562
    %v1730 = vunpack.c.l.b16 %v1563
    %v1731 = vunpack.c.h.b16 %v1563
    %v1732 = vunpack.c.l.b16 %v1564
    %v1733 = vunpack.c.h.b16 %v1564
    %v1734 = vunpack.c.l.b16 %v1565
    %v1735 = vunpack.c.h.b16 %v1565
    %v1736 = vunpack.c.l.b16 %v1566
    %v1737 = vunpack.c.h.b16 %v1566
    %v1738 = vunpack.c.l.b16 %v1567
    %v1739 = vunpack.c.h.b16 %v1567
    %v1740 = vunpack.c.l.b16 %v1568
    %v1741 = vunpack.c.h.b16 %v1568
    %v1742 = vunpack.c.l.b16 %v1569
    %v1743 = vunpack.c.h.b16 %v1569
    %v1744 = vunpack.c.l.b16 %v1570
    %v1745 = vunpack.c.h.b16 %v1570
    %v1746 = vunpack.c.l.b16 %v1571
    %v1747 = vunpack.c.h.b16 %v1571
    %v1748 = vunpack.c.l.b16 %v1572
    %v1749 = vunpack.c.h.b16 %v1572
    %v1750 = vunpack.c.l.b16 %v1573
    %v1751 = vunpack.c.h.b16 %v1573
    %v1752 = vunpack.c.l.b16 %v1574
    %v1753 = vunpack.c.h.b16 %v1574
    %v1754 = vunpack.c.l.b16 %v1575
    %v1755 = vunpack.c.h.b16 %v1575
    %v1756 = vunpack.c.l.b16 %v1576
    %v1757 = vunpack.c.h.b16 %v1576
    %v1758 = vunpack.c.l.b16 %v1577
    %v1759 = vunpack.c.h.b16 %v1577
    %v1760 = vunpack.c.l.b16 %v1578
    %v1761 = vunpack.c.h.b16 %v1578
    %v1762 = vunpack.c.l.b16 %v1579
    %v1763 = vunpack.c.h.b16 %v1579
    %v1764 = vunpack.c.l.b16 %v1580
    %v1765 = vunpack.c.h.b16 %v1580
    %v1766 = vunpack.c.l.b16 %v1581
    %v1767 = vunpack.c.h.b16 %v1581
    %v1768 = vunpack.c.l.b16 %v1582
    %v1769 = vunpack.c.h.b16 %v1582
    %v1770 = vunpack.c.l.b16 %v1583
    %v1771 = vunpack.c.h.b16 %v1583
    %v1772 = vunpack.c.l.b16 %v1584
    %v1773 = vunpack.c.h.b16 %v1584
    %v1774 = vunpack.c.l.b16 %v1585
    %v1775 = vunpack.c.h.b16 %v1585
    %v1776 = vunpack.c.l.b16 %v1586
    %v1777 = vunpack.c.h.b16 %v1586
    %v1778 = vunpack.c.l.b16 %v1587
    %v1779 = vunpack.c.h.b16 %v1587
    %v1780 = vunpack.c.l.b16 %v1588
    %v1781 = vunpack.c.h.b16 %v1588
    %v1782 = vunpack.c.l.b16 %v1589
    %v1783 = vunpack.c.h.b16 %v1589
    %v1784 = vunpack.c.l.b16 %v1590
    %v1785 = vunpack.c.h.b16 %v1590
    %v1786 = vunpack.c.l.b16 %v1591
    %v1787 = vunpack.c.h.b16 %v1591
    %v1788 = vunpack.c.l.b16 %v1592
    %v1789 = vunpack.c.h.b16 %v1592
    %v1790 = vunpack.c.l.b16 %v1593
    %v1791 = vunpack.c.h.b16 %v1593
    %v1792 = vunpack.c.l.b16 %v1594
    %v1793 = vunpack.c.h.b16 %v1594
    %v1794 = vunpack.c.l.b16 %v1595
    %v1795 = vunpack.c.h.b16 %v1595
    %v1796 = vunpack.c.l.b16 %v1596
    %v1797 = vunpack.c.h.b16 %v1596
    %v1798 = vunpack.c.l.b16 %v1597
    %v1799 = vunpack.c.h.b16 %v1597
    %v1800 = vunpack.c.l.b16 %v1598
    %v1801 = vunpack.c.h.b16 %v1598
    %v1802 = vunpack.c.l.b16 %v1599
    %v1803 = vunpack.c.h.b16 %v1599
    %v1804 = vpack.c.b16 %v1678, %v1676
    %v1805 = vpack.c.b16 %v1679, %v1677
    %v1806 = vpack.c.b16 %v1682, %v1680
    %v1807 = vpack.c.b16 %v1683, %v1681
    %v1808 = vpack.c.b16 %v1686, %v1684
    %v1809 = vpack.c.b16 %v1687, %v1685
    %v1810 = vpack.c.b16 %v1690, %v1688
    %v1811 = vpack.c.b16 %v1691, %v1689
    %v1812 = vpack.c.b16 %v1694, %v1692
    %v1813 = vpack.c.b16 %v1695, %v1693
    %v1814 = vpack.c.b16 %v1698, %v1696
    %v1815 = vpack.c.b16 %v1699, %v1697
    %v1816 = vpack.c.b16 %v1702, %v1700
    %v1817 = vpack.c.b16 %v1703, %v1701
    %v1818 = vpack.c.b16 %v1706, %v1704
    %v1819 = vpack.c.b16 %v1707, %v1705
    %v1820 = vpack.c.b16 %v1710, %v1708
    %v1821 = vpack.c.b16 %v1711, %v1709
    %v1822 = vpack.c.b16 %v1714, %v1712
    %v1823 = vpack.c.b16 %v1715, %v1713
    %v1824 = vpack.c.b16 %v1718, %v1716
    %v1825 = vpack.c.b16 %v1719, %v1717
    %v1826 = vpack.c.b16 %v1722, %v1720
    %v1827 = vpack.c.b16 %v1723, %v1721
    %v1828 = vpack.c.b16 %v1726, %v1724
    %v1829 = vpack.c.b16 %v1727, %v1725
    %v1830 = vpack.c.b16 %v1730, %v1728
    %v1831 = vpack.c.b16 %v1731, %v1729
    %v1832 = vpack.c.b16 %v1734, %v1732
    %v1833 = vpack.c.b16 %v1735, %v1733
    %v1834 = vpack.c.b16 %v1738, %v1736
    %v1835 = vpack.c.b16 %v1739, %v1737
    %v1836 = vpack.c.b16 %v1742, %v1740
    %v1837 = vpack.c.b16 %v1743, %v1741
    %v1838 = vpack.c.b16 %v1746, %v1744
    %v1839 = vpack.c.b16 %v1747, %v1745
    %v1840 = vpack.c.b16 %v1750, %v1748
    %v1841 = vpack.c.b16 %v1751, %v1749
    %v1842 = vpack.c.b16 %v1754, %v1752
    %v1843 = vpack.c.b16 %v1755, %v1753
    %v1844 = vpack.c.b16 %v1758, %v1756
    %v1845 = vpack.c.b16 %v1759, %v1757
    %v1846 = vpack.c.b16 %v1762, %v1760
    %v1847 = vpack.c.b16 %v1763, %v1761
    %v1848 = vpack.c.b16 %v1766, %v1764
    %v1849 = vpack.c.b16 %v1767, %v1765
    %v1850 = vpack.c.b16 %v1770, %v1768
    %v1851 = vpack.c.b16 %v1771, %v1769
    %v1852 = vpack.c.b16 %v1774, %v1772
    %v1853 = vpack.c.b16 %v1775, %v1773
    %v1854 = vpack.c.b16 %v1778, %v1776
    %v1855 = vpack.c.b16 %v1779, %v1777
    %v1856 = vpack.c.b16 %v1782, %v1780
    %v1857 = vpack.c.b16 %v1783, %v1781
    %v1858 = vpack.c.b16 %v1786, %v1784
    %v1859 = vpack.c.b16 %v1787, %v1785
    %v1860 = vpack.c.b16 %v1790, %v1788
    %v1861 = vpack.c.b16 %v1791, %v1789
    %v1862 = vpack.c.b16 %v1794, %v1792
    %v1863 = vpack.c.b16 %v1795, %v1793
    %v1864 = vpack.c.b16 %v1798, %v1796
    %v1865 = vpack.c.b16 %v1799, %v1797
    %v1866 = vpack.c.b16 %v1802, %v1800
    %v1867 = vpack.c.b16 %v1803, %v1801
    %1932 = vmatprep.subr.bf16.mxu0 %v1805
    %1933 = vmatpush1.bf16.msra.mxu0 %v1804
    %1934 = vmatprep.subr.bf16.mxu0 %v1807
    %1935 = vmatpush1.bf16.msra.mxu0 %v1806
    %1936 = vmatprep.subr.bf16.mxu0 %v1809
    %1937 = vmatpush1.bf16.msra.mxu0 %v1808
    %1938 = vmatprep.subr.bf16.mxu0 %v1811
    %1939 = vmatpush1.bf16.msra.mxu0 %v1810
    %1940 = vmatprep.subr.bf16.mxu0 %v1813
    %1941 = vmatpush1.bf16.msra.mxu0 %v1812
    %1942 = vmatprep.subr.bf16.mxu0 %v1815
    %1943 = vmatpush1.bf16.msra.mxu0 %v1814
    %1944 = vmatprep.subr.bf16.mxu0 %v1817
    %1945 = vmatpush1.bf16.msra.mxu0 %v1816
    %1946 = vmatprep.subr.bf16.mxu0 %v1819
    %1947 = vmatpush1.bf16.msra.mxu0 %v1818
    %1948 = vmatprep.subr.bf16.mxu0 %v1821
    %1949 = vmatpush1.bf16.msra.mxu0 %v1820
    %1950 = vmatprep.subr.bf16.mxu0 %v1823
    %1951 = vmatpush1.bf16.msra.mxu0 %v1822
    %1952 = vmatprep.subr.bf16.mxu0 %v1825
    %1953 = vmatpush1.bf16.msra.mxu0 %v1824
    %1954 = vmatprep.subr.bf16.mxu0 %v1827
    %1955 = vmatpush1.bf16.msra.mxu0 %v1826
    %1956 = vmatprep.subr.bf16.mxu0 %v1829
    %1957 = vmatpush1.bf16.msra.mxu0 %v1828
    %1958 = vmatprep.subr.bf16.mxu0 %v1831
    %1959 = vmatpush1.bf16.msra.mxu0 %v1830
    %1960 = vmatprep.subr.bf16.mxu0 %v1833
    %1961 = vmatpush1.bf16.msra.mxu0 %v1832
    %1962 = vmatprep.subr.bf16.mxu0 %v1835
    %1963 = vmatpush1.bf16.msra.mxu0 %v1834
    %1964 = vmatprep.mubr.bf16.mxu0 %v1533
    %1965 = vmatmul.mubr.bf16.gmra.mrb[0].mxu0 %v1532
    %v1966 = vpop.f32.mrb[0].mxu0
    %v1967 = vadd.f32 %v1605, %v1966
    %v1968 = vpop.f32.mrb[0].mxu0
    %v1969 = vadd.f32 %v1609, %v1968
    %v1970 = vpop.f32.mrb[0].mxu0
    %v1971 = vadd.f32 %v1605, %v1970
    %v1972 = vpop.f32.mrb[0].mxu0
    %v1973 = vadd.f32 %v1609, %v1972
    %1974 = vdwg.mxu0
    %1975 = vmatprep.subr.bf16.mxu0 %v1837
    %1976 = vmatpush1.bf16.msra.mxu0 %v1836
    %1977 = vmatprep.subr.bf16.mxu0 %v1839
    %1978 = vmatpush1.bf16.msra.mxu0 %v1838
    %1979 = vmatprep.subr.bf16.mxu0 %v1841
    %1980 = vmatpush1.bf16.msra.mxu0 %v1840
    %1981 = vmatprep.subr.bf16.mxu0 %v1843
    %1982 = vmatpush1.bf16.msra.mxu0 %v1842
    %1983 = vmatprep.subr.bf16.mxu0 %v1845
    %1984 = vmatpush1.bf16.msra.mxu0 %v1844
    %1985 = vmatprep.subr.bf16.mxu0 %v1847
    %1986 = vmatpush1.bf16.msra.mxu0 %v1846
    %1987 = vmatprep.subr.bf16.mxu0 %v1849
    %1988 = vmatpush1.bf16.msra.mxu0 %v1848
    %1989 = vmatprep.subr.bf16.mxu0 %v1851
    %1990 = vmatpush1.bf16.msra.mxu0 %v1850
    %1991 = vmatprep.subr.bf16.mxu0 %v1853
    %1992 = vmatpush1.bf16.msra.mxu0 %v1852
    %1993 = vmatprep.subr.bf16.mxu0 %v1855
    %1994 = vmatpush1.bf16.msra.mxu0 %v1854
    %1995 = vmatprep.subr.bf16.mxu0 %v1857
    %1996 = vmatpush1.bf16.msra.mxu0 %v1856
    %1997 = vmatprep.subr.bf16.mxu0 %v1859
    %1998 = vmatpush1.bf16.msra.mxu0 %v1858
    %1999 = vmatprep.subr.bf16.mxu0 %v1861
    %2000 = vmatpush1.bf16.msra.mxu0 %v1860
    %2001 = vmatprep.subr.bf16.mxu0 %v1863
    %2002 = vmatpush1.bf16.msra.mxu0 %v1862
    %2003 = vmatprep.subr.bf16.mxu0 %v1865
    %2004 = vmatpush1.bf16.msra.mxu0 %v1864
    %2005 = vmatprep.subr.bf16.mxu0 %v1867
    %2006 = vmatpush1.bf16.msra.mxu0 %v1866
    %2007 = vmatprep.mubr.bf16.mxu0 %v1535
    %2008 = vmatmul.mubr.bf16.gmra.mrb[0].mxu0 %v1534
    %v2009 = vpop.f32.mrb[0].mxu0
    %v2010 = vadd.f32 %v1967, %v2009
    %v2011 = vpop.f32.mrb[0].mxu0
    %v2012 = vadd.f32 %v1969, %v2011
    %v2013 = vpop.f32.mrb[0].mxu0
    %v2014 = vadd.f32 %v1971, %v2013
    %v2015 = vpop.f32.mrb[0].mxu0
    %v2016 = vadd.f32 %v1973, %v2015
    %2017 = vdwg.mxu0
    %v2018 = vmax.f32 %v2010, 0.0
    %v2019 = vmax.f32 %v2012, 0.0
    %v2020 = vmax.f32 %v2014, 0.0
    %v2021 = vmax.f32 %v2016, 0.0
    %v2022 = vpack.c.bf16 %v2020, %v2018
    %v2023 = vpack.c.bf16 %v2021, %v2019
    %v2024 = vld [vmem:[%s5] sm:$0xf]
    %v2025 = vld [vmem:[%s5 + $0x4] sm:$0xf]
    %v2026 = vld [vmem:[%s5 + $0x8] sm:$0xf]
    %v2027 = vld [vmem:[%s5 + $0xc] sm:$0xf]
    %v2028 = vld [vmem:[%s5 + $0x10] sm:$0xf]
    %v2029 = vld [vmem:[%s5 + $0x14] sm:$0xf]
    %v2030 = vld [vmem:[%s5 + $0x18] sm:$0xf]
    %v2031 = vld [vmem:[%s5 + $0x1c] sm:$0xf]
    %v2032 = vld [vmem:[%s5 + $0x20] sm:$0xf]
    %v2033 = vld [vmem:[%s5 + $0x24] sm:$0xf]
    %v2034 = vld [vmem:[%s5 + $0x28] sm:$0xf]
    %v2035 = vld [vmem:[%s5 + $0x2c] sm:$0xf]
    %v2036 = vld [vmem:[%s5 + $0x30] sm:$0xf]
    %v2037 = vld [vmem:[%s5 + $0x34] sm:$0xf]
    %v2038 = vld [vmem:[%s5 + $0x38] sm:$0xf]
    %v2039 = vld [vmem:[%s5 + $0x3c] sm:$0xf]
    %v2040 = vld [vmem:[%s5 + $0x40] sm:$0xf]
    %v2041 = vld [vmem:[%s5 + $0x44] sm:$0xf]
    %v2042 = vld [vmem:[%s5 + $0x48] sm:$0xf]
    %v2043 = vld [vmem:[%s5 + $0x4c] sm:$0xf]
    %v2044 = vld [vmem:[%s5 + $0x50] sm:$0xf]
    %v2045 = vld [vmem:[%s5 + $0x54] sm:$0xf]
    %v2046 = vld [vmem:[%s5 + $0x58] sm:$0xf]
    %v2047 = vld [vmem:[%s5 + $0x5c] sm:$0xf]
    %v2048 = vld [vmem:[%s5 + $0x60] sm:$0xf]
    %v2049 = vld [vmem:[%s5 + $0x64] sm:$0xf]
    %v2050 = vld [vmem:[%s5 + $0x68] sm:$0xf]
    %v2051 = vld [vmem:[%s5 + $0x6c] sm:$0xf]
    %v2052 = vld [vmem:[%s5 + $0x70] sm:$0xf]
    %v2053 = vld [vmem:[%s5 + $0x74] sm:$0xf]
    %v2054 = vld [vmem:[%s5 + $0x78] sm:$0xf]
    %v2055 = vld [vmem:[%s5 + $0x7c] sm:$0xf]
    %v2056 = vld [vmem:[%s6] sm:$0x1]
    %v2058 = vlaneseq
    %v2059 = vshrl.u32 %v2058, 7
    %v2060 = vsub.s32 0, %v2059
    %v2061 = vrot.slane %v2056, %v2060
    %v2095 = vunpack.c.l.b16 %v2024
    %v2096 = vunpack.c.l.b16 %v2025
    %v2097 = vunpack.c.l.b16 %v2026
    %v2098 = vunpack.c.l.b16 %v2027
    %v2099 = vunpack.c.l.b16 %v2028
    %v2100 = vunpack.c.l.b16 %v2029
    %v2101 = vunpack.c.l.b16 %v2030
    %v2102 = vunpack.c.l.b16 %v2031
    %v2103 = vunpack.c.l.b16 %v2032
    %v2104 = vunpack.c.l.b16 %v2033
    %v2105 = vunpack.c.l.b16 %v2034
    %v2106 = vunpack.c.l.b16 %v2035
    %v2107 = vunpack.c.l.b16 %v2036
    %v2108 = vunpack.c.l.b16 %v2037
    %v2109 = vunpack.c.l.b16 %v2038
    %v2110 = vunpack.c.l.b16 %v2039
    %v2111 = vunpack.c.l.b16 %v2040
    %v2112 = vunpack.c.l.b16 %v2041
    %v2113 = vunpack.c.l.b16 %v2042
    %v2114 = vunpack.c.l.b16 %v2043
    %v2115 = vunpack.c.l.b16 %v2044
    %v2116 = vunpack.c.l.b16 %v2045
    %v2117 = vunpack.c.l.b16 %v2046
    %v2118 = vunpack.c.l.b16 %v2047
    %v2119 = vunpack.c.l.b16 %v2048
    %v2120 = vunpack.c.l.b16 %v2049
    %v2121 = vunpack.c.l.b16 %v2050
    %v2122 = vunpack.c.l.b16 %v2051
    %v2123 = vunpack.c.l.b16 %v2052
    %v2124 = vunpack.c.l.b16 %v2053
    %v2125 = vunpack.c.l.b16 %v2054
    %v2126 = vunpack.c.l.b16 %v2055
    %v2127 = vpack.c.b16 %v2096, %v2095
    %v2128 = vpack.c.b16 %v2098, %v2097
    %v2129 = vpack.c.b16 %v2100, %v2099
    %v2130 = vpack.c.b16 %v2102, %v2101
    %v2131 = vpack.c.b16 %v2104, %v2103
    %v2132 = vpack.c.b16 %v2106, %v2105
    %v2133 = vpack.c.b16 %v2108, %v2107
    %v2134 = vpack.c.b16 %v2110, %v2109
    %v2135 = vpack.c.b16 %v2112, %v2111
    %v2136 = vpack.c.b16 %v2114, %v2113
    %v2137 = vpack.c.b16 %v2116, %v2115
    %v2138 = vpack.c.b16 %v2118, %v2117
    %v2139 = vpack.c.b16 %v2120, %v2119
    %v2140 = vpack.c.b16 %v2122, %v2121
    %v2141 = vpack.c.b16 %v2124, %v2123
    %v2142 = vpack.c.b16 %v2126, %v2125
    %2159 = vmatprep.subr.bf16.mxu0 0
    %2160 = vmatpush1.bf16.msra.mxu0 %v2127
    %2161 = vmatprep.subr.bf16.mxu0 0
    %2162 = vmatpush1.bf16.msra.mxu0 %v2128
    %2163 = vmatprep.subr.bf16.mxu0 0
    %2164 = vmatpush1.bf16.msra.mxu0 %v2129
    %2165 = vmatprep.subr.bf16.mxu0 0
    %2166 = vmatpush1.bf16.msra.mxu0 %v2130
    %2167 = vmatprep.subr.bf16.mxu0 0
    %2168 = vmatpush1.bf16.msra.mxu0 %v2131
    %2169 = vmatprep.subr.bf16.mxu0 0
    %2170 = vmatpush1.bf16.msra.mxu0 %v2132
    %2171 = vmatprep.subr.bf16.mxu0 0
    %2172 = vmatpush1.bf16.msra.mxu0 %v2133
    %2173 = vmatprep.subr.bf16.mxu0 0
    %2174 = vmatpush1.bf16.msra.mxu0 %v2134
    %2175 = vmatprep.subr.bf16.mxu0 0
    %2176 = vmatpush1.bf16.msra.mxu0 %v2135
    %2177 = vmatprep.subr.bf16.mxu0 0
    %2178 = vmatpush1.bf16.msra.mxu0 %v2136
    %2179 = vmatprep.subr.bf16.mxu0 0
    %2180 = vmatpush1.bf16.msra.mxu0 %v2137
    %2181 = vmatprep.subr.bf16.mxu0 0
    %2182 = vmatpush1.bf16.msra.mxu0 %v2138
    %2183 = vmatprep.subr.bf16.mxu0 0
    %2184 = vmatpush1.bf16.msra.mxu0 %v2139
    %2185 = vmatprep.subr.bf16.mxu0 0
    %2186 = vmatpush1.bf16.msra.mxu0 %v2140
    %2187 = vmatprep.subr.bf16.mxu0 0
    %2188 = vmatpush1.bf16.msra.mxu0 %v2141
    %2189 = vmatprep.subr.bf16.mxu0 0
    %2190 = vmatpush1.bf16.msra.mxu0 %v2142
    %2191 = vmatprep.mubr.bf16.mxu0 %v2023
    %2192 = vmatmul.mubr.bf16.gmra.mrb[0].mxu0 %v2022
    %v2193 = vpop.f32.mrb[0].mxu0
    %v2194 = vadd.f32 %v2061, %v2193
    %v2195 = vpop.f32.mrb[0].mxu0
    %v2196 = vpop.f32.mrb[0].mxu0
    %v2197 = vadd.f32 %v2061, %v2196
    %v2198 = vpop.f32.mrb[0].mxu0
    %2199 = vdwg.mxu0
    %v2200 = vmax.f32 %v2194, 0.0
    %v2201 = vmax.f32 %v2197, 0.0
    %v2202 = vpack.c.bf16 %v2201, %v2200
    %v2203 = vld [vmem:[#allocation6] sm:$0xf]
    %v2204 = vld [vmem:[#allocation6 + $0x4] sm:$0xf]
    %v2205 = vld [vmem:[#allocation6 + $0x8] sm:$0xf]
    %v2206 = vld [vmem:[#allocation6 + $0xc] sm:$0xf]
    %v2207 = vld [vmem:[#allocation6 + $0x10] sm:$0xf]
    %v2208 = vld [vmem:[#allocation6 + $0x14] sm:$0xf]
    %v2209 = vld [vmem:[#allocation6 + $0x18] sm:$0xf]
    %v2210 = vld [vmem:[#allocation6 + $0x1c] sm:$0xf]
    %v2211 = vld [vmem:[#allocation6 + $0x20] sm:$0xf]
    %v2212 = vld [vmem:[#allocation6 + $0x24] sm:$0xf]
    %v2213 = vld [vmem:[#allocation6 + $0x28] sm:$0xf]
    %v2214 = vld [vmem:[#allocation6 + $0x2c] sm:$0xf]
    %v2215 = vld [vmem:[#allocation6 + $0x30] sm:$0xf]
    %v2216 = vld [vmem:[#allocation6 + $0x34] sm:$0xf]
    %v2217 = vld [vmem:[#allocation6 + $0x38] sm:$0xf]
    %v2218 = vld [vmem:[#allocation6 + $0x3c] sm:$0xf]
    %v2219 = vld [vmem:[%s8] sm:$0x1]
    %v2221 = vlaneseq
    %v2222 = vshrl.u32 %v2221, 7
    %v2223 = vsub.s32 0, %v2222
    %v2224 = vrot.slane %v2219, %v2223
    %v2242 = vunpack.c.l.b16 %v2203
    %v2243 = vunpack.c.l.b16 %v2204
    %v2244 = vunpack.c.l.b16 %v2205
    %v2245 = vunpack.c.l.b16 %v2206
    %v2246 = vunpack.c.l.b16 %v2207
    %v2247 = vunpack.c.l.b16 %v2208
    %v2248 = vunpack.c.l.b16 %v2209
    %v2249 = vunpack.c.l.b16 %v2210
    %v2250 = vunpack.c.l.b16 %v2211
    %v2251 = vunpack.c.l.b16 %v2212
    %v2252 = vunpack.c.l.b16 %v2213
    %v2253 = vunpack.c.l.b16 %v2214
    %v2254 = vunpack.c.l.b16 %v2215
    %v2255 = vunpack.c.l.b16 %v2216
    %v2256 = vunpack.c.l.b16 %v2217
    %v2257 = vunpack.c.l.b16 %v2218
    %v2258 = vpack.c.b16 %v2243, %v2242
    %v2259 = vpack.c.b16 %v2245, %v2244
    %v2260 = vpack.c.b16 %v2247, %v2246
    %v2261 = vpack.c.b16 %v2249, %v2248
    %v2262 = vpack.c.b16 %v2251, %v2250
    %v2263 = vpack.c.b16 %v2253, %v2252
    %v2264 = vpack.c.b16 %v2255, %v2254
    %v2265 = vpack.c.b16 %v2257, %v2256
    %2274 = vmatprep.subr.bf16.mxu0 0
    %2275 = vmatpush1.bf16.msra.mxu0 %v2258
    %2276 = vmatprep.subr.bf16.mxu0 0
    %2277 = vmatpush1.bf16.msra.mxu0 %v2259
    %2278 = vmatprep.subr.bf16.mxu0 0
    %2279 = vmatpush1.bf16.msra.mxu0 %v2260
    %2280 = vmatprep.subr.bf16.mxu0 0
    %2281 = vmatpush1.bf16.msra.mxu0 %v2261
    %2282 = vmatprep.subr.bf16.mxu0 0
    %2283 = vmatpush1.bf16.msra.mxu0 %v2262
    %2284 = vmatprep.subr.bf16.mxu0 0
    %2285 = vmatpush1.bf16.msra.mxu0 %v2263
    %2286 = vmatprep.subr.bf16.mxu0 0
    %2287 = vmatpush1.bf16.msra.mxu0 %v2264
    %2288 = vmatprep.subr.bf16.mxu0 0
    %2289 = vmatpush1.bf16.msra.mxu0 %v2265
    %2290 = vmatprep.subr.bf16.mxu0 0
    %2291 = vmatpush1.bf16.msra.mxu0 0
    %2292 = vmatprep.subr.bf16.mxu0 0
    %2293 = vmatpush1.bf16.msra.mxu0 0
    %2294 = vmatprep.subr.bf16.mxu0 0
    %2295 = vmatpush1.bf16.msra.mxu0 0
    %2296 = vmatprep.subr.bf16.mxu0 0
    %2297 = vmatpush1.bf16.msra.mxu0 0
    %2298 = vmatprep.subr.bf16.mxu0 0
    %2299 = vmatpush1.bf16.msra.mxu0 0
    %2300 = vmatprep.subr.bf16.mxu0 0
    %2301 = vmatpush1.bf16.msra.mxu0 0
    %2302 = vmatprep.subr.bf16.mxu0 0
    %2303 = vmatpush1.bf16.msra.mxu0 0
    %2304 = vmatprep.subr.bf16.mxu0 0
    %2305 = vmatpush1.bf16.msra.mxu0 0
    %2306 = vmatprep.mubr.bf16.mxu0 0
    %2307 = vmatmul.mubr.bf16.gmra.mrb[0].mxu0 %v2202
    %v2308 = vpop.f32.mrb[0].mxu0
    %v2309 = vadd.f32 %v2224, %v2308
    %v2310 = vpop.f32.mrb[0].mxu0
    %v2311 = vpop.f32.mrb[0].mxu0
    %v2312 = vadd.f32 %v2224, %v2311
    %v2313 = vpop.f32.mrb[0].mxu0
    %2314 = vdwg.mxu0
    %2315 = vst [vmem:[%s9] sm:$0xff] %v2309
    %2316 = vst [vmem:[%s9 + $0x8] sm:$0xff] %v2312
    // Predicated region
    $region50: #{_mlp_forward_impl.1} parent=1 // pred_check
      _
    $region51: #{_mlp_forward_impl.1} parent=1 // pred_check_branch
      %2318 = sbr.rel (0) target = $region53
    $region52: #{_mlp_forward_impl.1} parent=1 // pred_region
      _
    $region53: #{_mlp_forward_impl.1} parent=1 // pred_fallthru
      _
    // Predicated region
    $region54: #{_mlp_forward_impl.1} parent=1 // pred_check
      _
    $region55: #{_mlp_forward_impl.1} parent=1 // pred_check_branch
      %2320 = sbr.rel (0) target = $region57
    $region56: #{_mlp_forward_impl.1} parent=1 // pred_region
      _
    $region57: #{_mlp_forward_impl.1} parent=1 // pred_fallthru
      _
    %2321 = vsyncpa [#allocation3], 1
    %2322 = vsyncpa [#allocation5], 1

// kernel: _mlp_forward_impl.1
$region0: #{_mlp_forward_impl.1}
  #allocation0 [shape = 'u32[]', space=smem, size = 0x4, offset = 0x4, fixed_abs, tag = 'smem constant byte address 0x4 - core index']
  #allocation1 [shape = 'u32[144,128]{1,0:T(1,128)}', space=vmem, size = 0x12000, scoped, tag = 'internal scratch']
  %s0 = inlined_call_operand.vmem [shape: f32[16,768], index: 0, kind: input, shape index: {}]
  %s1 = inlined_call_operand.hbm [shape: bf16[768,512], index: 1, kind: input, shape index: {}]
  %s2 = inlined_call_operand.vmem [shape: f32[1,512], index: 2, kind: input, shape index: {}]
  %s3 = inlined_call_operand.hbm [shape: bf16[512,256], index: 3, kind: input, shape index: {}]
  %s4 = inlined_call_operand.vmem [shape: f32[1,256], index: 4, kind: input, shape index: {}]
  %s5 = inlined_call_operand.vmem [shape: bf16[256,128], index: 5, kind: input, shape index: {}]
  %s6 = inlined_call_operand.vmem [shape: f32[1,128], index: 6, kind: input, shape index: {}]
  %s7 = inlined_call_operand.hbm [shape: bf16[128,128], index: 7, kind: input, shape index: {}]
  %s8 = inlined_call_operand.vmem [shape: f32[1,128], index: 8, kind: input, shape index: {}]
  %s9 = inlined_call_operand.vmem [shape: f32[16,128], index: 9, kind: output, shape index: {}]
  %s10 = sld [smem:[#allocation0]]
  $region58: #{_mlp_forward_impl.1} parent=0
    _
  %s12 = ssub.s32 1, %s10
  %s13 = scalar_select 0, %s12, %s10
  $region1: #{_mlp_forward_impl.1} parent=0
    #allocation2 [shape = 'u8[786432]{0}', space=vmem, size = 0xc0000, scoped, tag = 'input window, operand 1, single buffered']
    #allocation3 [shape = 's32[1]{0}', space=sflag, size = 0x4, scoped, tag = 'scoped memory for _mlp_forward_impl.1']
    #allocation4 [shape = 'u8[262144]{0}', space=vmem, size = 0x40000, scoped, tag = 'input window, operand 3, single buffered']
    #allocation5 [shape = 's32[1]{0}', space=sflag, size = 0x4, scoped, tag = 'scoped memory for _mlp_forward_impl.1']
    #allocation6 [shape = 'u8[32768]{0}', space=vmem, size = 0x8000, scoped, tag = 'input window, operand 7, single buffered']
    %14 = vsyncpa [#allocation3], 0
    %15 = vsyncpa [#allocation5], 0
    // Predicated region
    $region2: #{_mlp_forward_impl.1} parent=1 // pred_check
      _
    $region3: #{_mlp_forward_impl.1} parent=1 // pred_check_branch
      %17 = sbr.rel (0) target = $region5
    $region4: #{_mlp_forward_impl.1} parent=1 // pred_region
      _
    $region5: #{_mlp_forward_impl.1} parent=1 // pred_fallthru
      _
    // Predicated region
    $region6: #{_mlp_forward_impl.1} parent=1 // pred_check
      _
    $region7: #{_mlp_forward_impl.1} parent=1 // pred_check_branch
      %19 = sbr.rel (0) target = $region9
    $region8: #{_mlp_forward_impl.1} parent=1 // pred_region
      %s21 = ssub.s32 24576, 24576
      %22 = vsyncadd [#allocation3], %s21
      %s23 = sshll.u32 [#allocation2], 4
      %s24 = int_to_ptr.vmem [resolvable:$true] %s23
      %29 = dma.hbm_to_vmem [thread:$0]  %s1, 24576, %s24, [#allocation3], 256, 256, 16
    $region9: #{_mlp_forward_impl.1} parent=1 // pred_fallthru
      _
    // Predicated region
    $region10: #{_mlp_forward_impl.1} parent=1 // pred_check
      _
    $region11: #{_mlp_forward_impl.1} parent=1 // pred_check_branch
      %31 = sbr.rel (0) target = $region13
    $region12: #{_mlp_forward_impl.1} parent=1 // pred_region
      _
    $region13: #{_mlp_forward_impl.1} parent=1 // pred_fallthru
      _
    // Predicated region
    $region14: #{_mlp_forward_impl.1} parent=1 // pred_check
      _
    $region15: #{_mlp_forward_impl.1} parent=1 // pred_check_branch
      %33 = sbr.rel (0) target = $region17
    $region16: #{_mlp_forward_impl.1} parent=1 // pred_region
      %s35 = ssub.s32 8192, 8192
      %36 = vsyncadd [#allocation5], %s35
      %s37 = sshll.u32 [#allocation4], 4
      %s38 = int_to_ptr.vmem [resolvable:$true] %s37
      %43 = dma.hbm_to_vmem [thread:$0]  %s3, 8192, %s38, [#allocation5], 128, 128, 8
    $region17: #{_mlp_forward_impl.1} parent=1 // pred_fallthru
      _
    // Predicated region
    $region18: #{_mlp_forward_impl.1} parent=1 // pred_check
      _
    $region19: #{_mlp_forward_impl.1} parent=1 // pred_check_branch
      %45 = sbr.rel (0) target = $region21
    $region20: #{_mlp_forward_impl.1} parent=1 // pred_region
      _
    $region21: #{_mlp_forward_impl.1} parent=1 // pred_fallthru
      _
    // Predicated region
    $region22: #{_mlp_forward_impl.1} parent=1 // pred_check
      _
    $region23: #{_mlp_forward_impl.1} parent=1 // pred_check_branch
      %47 = sbr.rel (0) target = $region25
    $region24: #{_mlp_forward_impl.1} parent=1 // pred_region
      _
    $region25: #{_mlp_forward_impl.1} parent=1 // pred_fallthru
      _
    // Predicated region
    $region26: #{_mlp_forward_impl.1} parent=1 // pred_check
      _
    $region27: #{_mlp_forward_impl.1} parent=1 // pred_check_branch
      %49 = sbr.rel (0) target = $region29
    $region28: #{_mlp_forward_impl.1} parent=1 // pred_region
      _
    $region29: #{_mlp_forward_impl.1} parent=1 // pred_fallthru
      _
    // Predicated region
    $region30: #{_mlp_forward_impl.1} parent=1 // pred_check
      _
    $region31: #{_mlp_forward_impl.1} parent=1 // pred_check_branch
      %51 = sbr.rel (0) target = $region33
    $region32: #{_mlp_forward_impl.1} parent=1 // pred_region
      %s53 = ssub.s32 1024, 1024
      %54 = vsyncadd [#allocation5], %s53
      %s55 = sshll.u32 [#allocation6], 4
      %s56 = int_to_ptr.vmem [resolvable:$true] %s55
      %61 = dma.hbm_to_vmem [thread:$0]  %s7, 1024, %s56, [#allocation5], 64, 64, 4
    $region33: #{_mlp_forward_impl.1} parent=1 // pred_fallthru
      _
    // Predicated region
    $region34: #{_mlp_forward_impl.1} parent=1 // pred_check
      _
    $region35: #{_mlp_forward_impl.1} parent=1 // pred_check_branch
      %63 = sbr.rel (0) target = $region37
    $region36: #{_mlp_forward_impl.1} parent=1 // pred_region
      _
    $region37: #{_mlp_forward_impl.1} parent=1 // pred_fallthru
      _
    // Predicated region
    $region38: #{_mlp_forward_impl.1} parent=1 // pred_check
      _
    $region39: #{_mlp_forward_impl.1} parent=1 // pred_check_branch
      %65 = sbr.rel (0) target = $region41
    $region40: #{_mlp_forward_impl.1} parent=1 // pred_region
      %66 = dma.done [#allocation3], 24576
    $region41: #{_mlp_forward_impl.1} parent=1 // pred_fallthru
      _
    // Predicated region
    $region42: #{_mlp_forward_impl.1} parent=1 // pred_check
      _
    $region43: #{_mlp_forward_impl.1} parent=1 // pred_check_branch
      %68 = sbr.rel (0) target = $region45
    $region44: #{_mlp_forward_impl.1} parent=1 // pred_region
      %69 = dma.done [#allocation5], 8192
    $region45: #{_mlp_forward_impl.1} parent=1 // pred_fallthru
      _
    // Predicated region
    $region46: #{_mlp_forward_impl.1} parent=1 // pred_check
      _
    $region47: #{_mlp_forward_impl.1} parent=1 // pred_check_branch
      %71 = sbr.rel (0) target = $region49
    $region48: #{_mlp_forward_impl.1} parent=1 // pred_region
      %72 = dma.done [#allocation5], 1024
    $region49: #{_mlp_forward_impl.1} parent=1 // pred_fallthru
      _
    %v74 = vld [vmem:[%s0] sm:$0xff]
    %v75 = vld [vmem:[%s0 + $0x8] sm:$0xff]
    %v76 = vld [vmem:[%s0 + $0x10] sm:$0xff]
    %v77 = vld [vmem:[%s0 + $0x18] sm:$0xff]
    %v78 = vld [vmem:[%s0 + $0x20] sm:$0xff]
    %v79 = vld [vmem:[%s0 + $0x28] sm:$0xff]
    %v80 = vld [vmem:[%s0 + $0x30] sm:$0xff]
    %v81 = vld [vmem:[%s0 + $0x38] sm:$0xff]
    %v82 = vld [vmem:[%s0 + $0x40] sm:$0xff]
    %v83 = vld [vmem:[%s0 + $0x48] sm:$0xff]
    %v84 = vld [vmem:[%s0 + $0x50] sm:$0xff]
    %v85 = vld [vmem:[%s0 + $0x58] sm:$0xff]
    %v86 = vpack.c.bf16 %v80, %v74
    %v87 = vpack.c.bf16 %v81, %v75
    %v88 = vpack.c.bf16 %v82, %v76
    %v89 = vpack.c.bf16 %v83, %v77
    %v90 = vpack.c.bf16 %v84, %v78
    %v91 = vpack.c.bf16 %v85, %v79
    %v92 = vld [vmem:[#allocation2] sm:$0xff]
    %v93 = vld [vmem:[#allocation2 + $0x8] sm:$0xff]
    %v94 = vld [vmem:[#allocation2 + $0x10] sm:$0xff]
    %v95 = vld [vmem:[#allocation2 + $0x18] sm:$0xff]
    %v96 = vld [vmem:[#allocation2 + $0x20] sm:$0xff]
    %v97 = vld [vmem:[#allocation2 + $0x28] sm:$0xff]
    %v98 = vld [vmem:[#allocation2 + $0x30] sm:$0xff]
    %v99 = vld [vmem:[#allocation2 + $0x38] sm:$0xff]
    %v100 = vld [vmem:[#allocation2 + $0x40] sm:$0xff]
    %v101 = vld [vmem:[#allocation2 + $0x48] sm:$0xff]
    %v102 = vld [vmem:[#allocation2 + $0x50] sm:$0xff]
    %v103 = vld [vmem:[#allocation2 + $0x58] sm:$0xff]
    %v104 = vld [vmem:[#allocation2 + $0x60] sm:$0xff]
    %v105 = vld [vmem:[#allocation2 + $0x68] sm:$0xff]
    %v106 = vld [vmem:[#allocation2 + $0x70] sm:$0xff]
    %v107 = vld [vmem:[#allocation2 + $0x78] sm:$0xff]
    %v108 = vld [vmem:[#allocation2 + $0x80] sm:$0xff]
    %v109 = vld [vmem:[#allocation2 + $0x88] sm:$0xff]
    %v110 = vld [vmem:[#allocation2 + $0x90] sm:$0xff]
    %v111 = vld [vmem:[#allocation2 + $0x98] sm:$0xff]
    %v112 = vld [vmem:[#allocation2 + $0xa0] sm:$0xff]
    %v113 = vld [vmem:[#allocation2 + $0xa8] sm:$0xff]
    %v114 = vld [vmem:[#allocation2 + $0xb0] sm:$0xff]
    %v115 = vld [vmem:[#allocation2 + $0xb8] sm:$0xff]
    %v116 = vld [vmem:[#allocation2 + $0xc0] sm:$0xff]
    %v117 = vld [vmem:[#allocation2 + $0xc8] sm:$0xff]
    %v118 = vld [vmem:[#allocation2 + $0xd0] sm:$0xff]
    %v119 = vld [vmem:[#allocation2 + $0xd8] sm:$0xff]
    %v120 = vld [vmem:[#allocation2 + $0xe0] sm:$0xff]
    %v121 = vld [vmem:[#allocation2 + $0xe8] sm:$0xff]
    %v122 = vld [vmem:[#allocation2 + $0xf0] sm:$0xff]
    %v123 = vld [vmem:[#allocation2 + $0xf8] sm:$0xff]
    %v124 = vld [vmem:[#allocation2 + $0x100] sm:$0xff]
    %v125 = vld [vmem:[#allocation2 + $0x108] sm:$0xff]
    %v126 = vld [vmem:[#allocation2 + $0x110] sm:$0xff]
    %v127 = vld [vmem:[#allocation2 + $0x118] sm:$0xff]
    %v128 = vld [vmem:[#allocation2 + $0x120] sm:$0xff]
    %v129 = vld [vmem:[#allocation2 + $0x128] sm:$0xff]
    %v130 = vld [vmem:[#allocation2 + $0x130] sm:$0xff]
    %v131 = vld [vmem:[#allocation2 + $0x138] sm:$0xff]
    %v132 = vld [vmem:[#allocation2 + $0x140] sm:$0xff]
    %v133 = vld [vmem:[#allocation2 + $0x148] sm:$0xff]
    %v134 = vld [vmem:[#allocation2 + $0x150] sm:$0xff]
    %v135 = vld [vmem:[#allocation2 + $0x158] sm:$0xff]
    %v136 = vld [vmem:[#allocation2 + $0x160] sm:$0xff]
    %v137 = vld [vmem:[#allocation2 + $0x168] sm:$0xff]
    %v138 = vld [vmem:[#allocation2 + $0x170] sm:$0xff]
    %v139 = vld [vmem:[#allocation2 + $0x178] sm:$0xff]
    %v140 = vld [vmem:[#allocation2 + $0x180] sm:$0xff]
    %v141 = vld [vmem:[#allocation2 + $0x188] sm:$0xff]
    %v142 = vld [vmem:[#allocation2 + $0x190] sm:$0xff]
    %v143 = vld [vmem:[#allocation2 + $0x198] sm:$0xff]
    %v144 = vld [vmem:[#allocation2 + $0x1a0] sm:$0xff]
    %v145 = vld [vmem:[#allocation2 + $0x1a8] sm:$0xff]
    %v146 = vld [vmem:[#allocation2 + $0x1b0] sm:$0xff]
    %v147 = vld [vmem:[#allocation2 + $0x1b8] sm:$0xff]
    %v148 = vld [vmem:[#allocation2 + $0x1c0] sm:$0xff]
    %v149 = vld [vmem:[#allocation2 + $0x1c8] sm:$0xff]
    %v150 = vld [vmem:[#allocation2 + $0x1d0] sm:$0xff]
    %v151 = vld [vmem:[#allocation2 + $0x1d8] sm:$0xff]
    %v152 = vld [vmem:[#allocation2 + $0x1e0] sm:$0xff]
    %v153 = vld [vmem:[#allocation2 + $0x1e8] sm:$0xff]
    %v154 = vld [vmem:[#allocation2 + $0x1f0] sm:$0xff]
    %v155 = vld [vmem:[#allocation2 + $0x1f8] sm:$0xff]
    %v156 = vld [vmem:[#allocation2 + $0x200] sm:$0xff]
    %v157 = vld [vmem:[#allocation2 + $0x208] sm:$0xff]
    %v158 = vld [vmem:[#allocation2 + $0x210] sm:$0xff]
    %v159 = vld [vmem:[#allocation2 + $0x218] sm:$0xff]
    %v160 = vld [vmem:[#allocation2 + $0x220] sm:$0xff]
    %v161 = vld [vmem:[#allocation2 + $0x228] sm:$0xff]
    %v162 = vld [vmem:[#allocation2 + $0x230] sm:$0xff]
    %v163 = vld [vmem:[#allocation2 + $0x238] sm:$0xff]
    %v164 = vld [vmem:[#allocation2 + $0x240] sm:$0xff]
    %v165 = vld [vmem:[#allocation2 + $0x248] sm:$0xff]
    %v166 = vld [vmem:[#allocation2 + $0x250] sm:$0xff]
    %v167 = vld [vmem:[#allocation2 + $0x258] sm:$0xff]
    %v168 = vld [vmem:[#allocation2 + $0x260] sm:$0xff]
    %v169 = vld [vmem:[#allocation2 + $0x268] sm:$0xff]
    %v170 = vld [vmem:[#allocation2 + $0x270] sm:$0xff]
    %v171 = vld [vmem:[#allocation2 + $0x278] sm:$0xff]
    %v172 = vld [vmem:[#allocation2 + $0x280] sm:$0xff]
    %v173 = vld [vmem:[#allocation2 + $0x288] sm:$0xff]
    %v174 = vld [vmem:[#allocation2 + $0x290] sm:$0xff]
    %v175 = vld [vmem:[#allocation2 + $0x298] sm:$0xff]
    %v176 = vld [vmem:[#allocation2 + $0x2a0] sm:$0xff]
    %v177 = vld [vmem:[#allocation2 + $0x2a8] sm:$0xff]
    %v178 = vld [vmem:[#allocation2 + $0x2b0] sm:$0xff]
    %v179 = vld [vmem:[#allocation2 + $0x2b8] sm:$0xff]
    %v180 = vld [vmem:[#allocation2 + $0x2c0] sm:$0xff]
    %v181 = vld [vmem:[#allocation2 + $0x2c8] sm:$0xff]
    %v182 = vld [vmem:[#allocation2 + $0x2d0] sm:$0xff]
    %v183 = vld [vmem:[#allocation2 + $0x2d8] sm:$0xff]
    %v184 = vld [vmem:[#allocation2 + $0x2e0] sm:$0xff]
    %v185 = vld [vmem:[#allocation2 + $0x2e8] sm:$0xff]
    %v186 = vld [vmem:[#allocation2 + $0x2f0] sm:$0xff]
    %v187 = vld [vmem:[#allocation2 + $0x2f8] sm:$0xff]
    %v188 = vld [vmem:[#allocation2 + $0x300] sm:$0xff]
    %v189 = vld [vmem:[#allocation2 + $0x308] sm:$0xff]
    %v190 = vld [vmem:[#allocation2 + $0x310] sm:$0xff]
    %v191 = vld [vmem:[#allocation2 + $0x318] sm:$0xff]
    %v192 = vld [vmem:[#allocation2 + $0x320] sm:$0xff]
    %v193 = vld [vmem:[#allocation2 + $0x328] sm:$0xff]
    %v194 = vld [vmem:[#allocation2 + $0x330] sm:$0xff]
    %v195 = vld [vmem:[#allocation2 + $0x338] sm:$0xff]
    %v196 = vld [vmem:[#allocation2 + $0x340] sm:$0xff]
    %v197 = vld [vmem:[#allocation2 + $0x348] sm:$0xff]
    %v198 = vld [vmem:[#allocation2 + $0x350] sm:$0xff]
    %v199 = vld [vmem:[#allocation2 + $0x358] sm:$0xff]
    %v200 = vld [vmem:[#allocation2 + $0x360] sm:$0xff]
    %v201 = vld [vmem:[#allocation2 + $0x368] sm:$0xff]
    %v202 = vld [vmem:[#allocation2 + $0x370] sm:$0xff]
    %v203 = vld [vmem:[#allocation2 + $0x378] sm:$0xff]
    %v204 = vld [vmem:[#allocation2 + $0x380] sm:$0xff]
    %v205 = vld [vmem:[#allocation2 + $0x388] sm:$0xff]
    %v206 = vld [vmem:[#allocation2 + $0x390] sm:$0xff]
    %v207 = vld [vmem:[#allocation2 + $0x398] sm:$0xff]
    %v208 = vld [vmem:[#allocation2 + $0x3a0] sm:$0xff]
    %v209 = vld [vmem:[#allocation2 + $0x3a8] sm:$0xff]
    %v210 = vld [vmem:[#allocation2 + $0x3b0] sm:$0xff]
    %v211 = vld [vmem:[#allocation2 + $0x3b8] sm:$0xff]
    %v212 = vld [vmem:[#allocation2 + $0x3c0] sm:$0xff]
    %v213 = vld [vmem:[#allocation2 + $0x3c8] sm:$0xff]
    %v214 = vld [vmem:[#allocation2 + $0x3d0] sm:$0xff]
    %v215 = vld [vmem:[#allocation2 + $0x3d8] sm:$0xff]
    %v216 = vld [vmem:[#allocation2 + $0x3e0] sm:$0xff]
    %v217 = vld [vmem:[#allocation2 + $0x3e8] sm:$0xff]
    %v218 = vld [vmem:[#allocation2 + $0x3f0] sm:$0xff]
    %v219 = vld [vmem:[#allocation2 + $0x3f8] sm:$0xff]
    %v220 = vld [vmem:[#allocation2 + $0x400] sm:$0xff]
    %v221 = vld [vmem:[#allocation2 + $0x408] sm:$0xff]
    %v222 = vld [vmem:[#allocation2 + $0x410] sm:$0xff]
    %v223 = vld [vmem:[#allocation2 + $0x418] sm:$0xff]
    %v224 = vld [vmem:[#allocation2 + $0x420] sm:$0xff]
    %v225 = vld [vmem:[#allocation2 + $0x428] sm:$0xff]
    %v226 = vld [vmem:[#allocation2 + $0x430] sm:$0xff]
    %v227 = vld [vmem:[#allocation2 + $0x438] sm:$0xff]
    %v228 = vld [vmem:[#allocation2 + $0x440] sm:$0xff]
    %v229 = vld [vmem:[#allocation2 + $0x448] sm:$0xff]
    %v230 = vld [vmem:[#allocation2 + $0x450] sm:$0xff]
    %v231 = vld [vmem:[#allocation2 + $0x458] sm:$0xff]
    %v232 = vld [vmem:[#allocation2 + $0x460] sm:$0xff]
    %v233 = vld [vmem:[#allocation2 + $0x468] sm:$0xff]
    %v234 = vld [vmem:[#allocation2 + $0x470] sm:$0xff]
    %v235 = vld [vmem:[#allocation2 + $0x478] sm:$0xff]
    %v236 = vld [vmem:[#allocation2 + $0x480] sm:$0xff]
    %v237 = vld [vmem:[#allocation2 + $0x488] sm:$0xff]
    %v238 = vld [vmem:[#allocation2 + $0x490] sm:$0xff]
    %v239 = vld [vmem:[#allocation2 + $0x498] sm:$0xff]
    %v240 = vld [vmem:[#allocation2 + $0x4a0] sm:$0xff]
    %v241 = vld [vmem:[#allocation2 + $0x4a8] sm:$0xff]
    %v242 = vld [vmem:[#allocation2 + $0x4b0] sm:$0xff]
    %v243 = vld [vmem:[#allocation2 + $0x4b8] sm:$0xff]
    %v244 = vld [vmem:[#allocation2 + $0x4c0] sm:$0xff]
    %v245 = vld [vmem:[#allocation2 + $0x4c8] sm:$0xff]
    %v246 = vld [vmem:[#allocation2 + $0x4d0] sm:$0xff]
    %v247 = vld [vmem:[#allocation2 + $0x4d8] sm:$0xff]
    %v248 = vld [vmem:[#allocation2 + $0x4e0] sm:$0xff]
    %v249 = vld [vmem:[#allocation2 + $0x4e8] sm:$0xff]
    %v250 = vld [vmem:[#allocation2 + $0x4f0] sm:$0xff]
    %v251 = vld [vmem:[#allocation2 + $0x4f8] sm:$0xff]
    %v252 = vld [vmem:[#allocation2 + $0x500] sm:$0xff]
    %v253 = vld [vmem:[#allocation2 + $0x508] sm:$0xff]
    %v254 = vld [vmem:[#allocation2 + $0x510] sm:$0xff]
    %v255 = vld [vmem:[#allocation2 + $0x518] sm:$0xff]
    %v256 = vld [vmem:[#allocation2 + $0x520] sm:$0xff]
    %v257 = vld [vmem:[#allocation2 + $0x528] sm:$0xff]
    %v258 = vld [vmem:[#allocation2 + $0x530] sm:$0xff]
    %v259 = vld [vmem:[#allocation2 + $0x538] sm:$0xff]
    %v260 = vld [vmem:[#allocation2 + $0x540] sm:$0xff]
    %v261 = vld [vmem:[#allocation2 + $0x548] sm:$0xff]
    %v262 = vld [vmem:[#allocation2 + $0x550] sm:$0xff]
    %v263 = vld [vmem:[#allocation2 + $0x558] sm:$0xff]
    %v264 = vld [vmem:[#allocation2 + $0x560] sm:$0xff]
    %v265 = vld [vmem:[#allocation2 + $0x568] sm:$0xff]
    %v266 = vld [vmem:[#allocation2 + $0x570] sm:$0xff]
    %v267 = vld [vmem:[#allocation2 + $0x578] sm:$0xff]
    %v268 = vld [vmem:[#allocation2 + $0x580] sm:$0xff]
    %v269 = vld [vmem:[#allocation2 + $0x588] sm:$0xff]
    %v270 = vld [vmem:[#allocation2 + $0x590] sm:$0xff]
    %v271 = vld [vmem:[#allocation2 + $0x598] sm:$0xff]
    %v272 = vld [vmem:[#allocation2 + $0x5a0] sm:$0xff]
    %v273 = vld [vmem:[#allocation2 + $0x5a8] sm:$0xff]
    %v274 = vld [vmem:[#allocation2 + $0x5b0] sm:$0xff]
    %v275 = vld [vmem:[#allocation2 + $0x5b8] sm:$0xff]
    %v276 = vld [vmem:[#allocation2 + $0x5c0] sm:$0xff]
    %v277 = vld [vmem:[#allocation2 + $0x5c8] sm:$0xff]
    %v278 = vld [vmem:[#allocation2 + $0x5d0] sm:$0xff]
    %v279 = vld [vmem:[#allocation2 + $0x5d8] sm:$0xff]
    %v280 = vld [vmem:[#allocation2 + $0x5e0] sm:$0xff]
    %v281 = vld [vmem:[#allocation2 + $0x5e8] sm:$0xff]
    %v282 = vld [vmem:[#allocation2 + $0x5f0] sm:$0xff]
    %v283 = vld [vmem:[#allocation2 + $0x5f8] sm:$0xff]
    %v284 = vld [vmem:[%s2] sm:$0xf]
    %v286 = vlaneseq
    %v287 = vshrl.u32 %v286, 7
    %v288 = vsub.s32 0, %v287
    %v289 = vrot.slane %v284, %v288
    %v290 = vlaneseq
    %v291 = vshrl.u32 %v290, 7
    %v292 = vsub.s32 1, %v291
    %v293 = vrot.slane %v284, %v292
    %v294 = vlaneseq
    %v295 = vshrl.u32 %v294, 7
    %v296 = vsub.s32 2, %v295
    %v297 = vrot.slane %v284, %v296
    %v298 = vlaneseq
    %v299 = vshrl.u32 %v298, 7
    %v300 = vsub.s32 3, %v299
    %v301 = vrot.slane %v284, %v300
    %v498 = vunpack.c.l.b16 %v92
    %v499 = vunpack.c.h.b16 %v92
    %v500 = vunpack.c.l.b16 %v93
    %v501 = vunpack.c.h.b16 %v93
    %v502 = vunpack.c.l.b16 %v94
    %v503 = vunpack.c.h.b16 %v94
    %v504 = vunpack.c.l.b16 %v95
    %v505 = vunpack.c.h.b16 %v95
    %v506 = vunpack.c.l.b16 %v96
    %v507 = vunpack.c.h.b16 %v96
    %v508 = vunpack.c.l.b16 %v97
    %v509 = vunpack.c.h.b16 %v97
    %v510 = vunpack.c.l.b16 %v98
    %v511 = vunpack.c.h.b16 %v98
    %v512 = vunpack.c.l.b16 %v99
    %v513 = vunpack.c.h.b16 %v99
    %v514 = vunpack.c.l.b16 %v100
    %v515 = vunpack.c.h.b16 %v100
    %v516 = vunpack.c.l.b16 %v101
    %v517 = vunpack.c.h.b16 %v101
    %v518 = vunpack.c.l.b16 %v102
    %v519 = vunpack.c.h.b16 %v102
    %v520 = vunpack.c.l.b16 %v103
    %v521 = vunpack.c.h.b16 %v103
    %v522 = vunpack.c.l.b16 %v104
    %v523 = vunpack.c.h.b16 %v104
    %v524 = vunpack.c.l.b16 %v105
    %v525 = vunpack.c.h.b16 %v105
    %v526 = vunpack.c.l.b16 %v106
    %v527 = vunpack.c.h.b16 %v106
    %v528 = vunpack.c.l.b16 %v107
    %v529 = vunpack.c.h.b16 %v107
    %v530 = vunpack.c.l.b16 %v108
    %v531 = vunpack.c.h.b16 %v108
    %v532 = vunpack.c.l.b16 %v109
    %v533 = vunpack.c.h.b16 %v109
    %v534 = vunpack.c.l.b16 %v110
    %v535 = vunpack.c.h.b16 %v110
    %v536 = vunpack.c.l.b16 %v111
    %v537 = vunpack.c.h.b16 %v111
    %v538 = vunpack.c.l.b16 %v112
    %v539 = vunpack.c.h.b16 %v112
    %v540 = vunpack.c.l.b16 %v113
    %v541 = vunpack.c.h.b16 %v113
    %v542 = vunpack.c.l.b16 %v114
    %v543 = vunpack.c.h.b16 %v114
    %v544 = vunpack.c.l.b16 %v115
    %v545 = vunpack.c.h.b16 %v115
    %v546 = vunpack.c.l.b16 %v116
    %v547 = vunpack.c.h.b16 %v116
    %v548 = vunpack.c.l.b16 %v117
    %v549 = vunpack.c.h.b16 %v117
    %v550 = vunpack.c.l.b16 %v118
    %v551 = vunpack.c.h.b16 %v118
    %v552 = vunpack.c.l.b16 %v119
    %v553 = vunpack.c.h.b16 %v119
    %v554 = vunpack.c.l.b16 %v120
    %v555 = vunpack.c.h.b16 %v120
    %v556 = vunpack.c.l.b16 %v121
    %v557 = vunpack.c.h.b16 %v121
    %v558 = vunpack.c.l.b16 %v122
    %v559 = vunpack.c.h.b16 %v122
    %v560 = vunpack.c.l.b16 %v123
    %v561 = vunpack.c.h.b16 %v123
    %v562 = vunpack.c.l.b16 %v124
    %v563 = vunpack.c.h.b16 %v124
    %v564 = vunpack.c.l.b16 %v125
    %v565 = vunpack.c.h.b16 %v125
    %v566 = vunpack.c.l.b16 %v126
    %v567 = vunpack.c.h.b16 %v126
    %v568 = vunpack.c.l.b16 %v127
    %v569 = vunpack.c.h.b16 %v127
    %v570 = vunpack.c.l.b16 %v128
    %v571 = vunpack.c.h.b16 %v128
    %v572 = vunpack.c.l.b16 %v129
    %v573 = vunpack.c.h.b16 %v129
    %v574 = vunpack.c.l.b16 %v130
    %v575 = vunpack.c.h.b16 %v130
    %v576 = vunpack.c.l.b16 %v131
    %v577 = vunpack.c.h.b16 %v131
    %v578 = vunpack.c.l.b16 %v132
    %v579 = vunpack.c.h.b16 %v132
    %v580 = vunpack.c.l.b16 %v133
    %v581 = vunpack.c.h.b16 %v133
    %v582 = vunpack.c.l.b16 %v134
    %v583 = vunpack.c.h.b16 %v134
    %v584 = vunpack.c.l.b16 %v135
    %v585 = vunpack.c.h.b16 %v135
    %v586 = vunpack.c.l.b16 %v136
    %v587 = vunpack.c.h.b16 %v136
    %v588 = vunpack.c.l.b16 %v137
    %v589 = vunpack.c.h.b16 %v137
    %v590 = vunpack.c.l.b16 %v138
    %v591 = vunpack.c.h.b16 %v138
    %v592 = vunpack.c.l.b16 %v139
    %v593 = vunpack.c.h.b16 %v139
    %v594 = vunpack.c.l.b16 %v140
    %v595 = vunpack.c.h.b16 %v140
    %v596 = vunpack.c.l.b16 %v141
    %v597 = vunpack.c.h.b16 %v141
    %v598 = vunpack.c.l.b16 %v142
    %v599 = vunpack.c.h.b16 %v142
    %v600 = vunpack.c.l.b16 %v143
    %v601 = vunpack.c.h.b16 %v143
    %v602 = vunpack.c.l.b16 %v144
    %v603 = vunpack.c.h.b16 %v144
    %v604 = vunpack.c.l.b16 %v145
    %v605 = vunpack.c.h.b16 %v145
    %v606 = vunpack.c.l.b16 %v146
    %v607 = vunpack.c.h.b16 %v146
    %v608 = vunpack.c.l.b16 %v147
    %v609 = vunpack.c.h.b16 %v147
    %v610 = vunpack.c.l.b16 %v148
    %v611 = vunpack.c.h.b16 %v148
    %v612 = vunpack.c.l.b16 %v149
    %v613 = vunpack.c.h.b16 %v149
    %v614 = vunpack.c.l.b16 %v150
    %v615 = vunpack.c.h.b16 %v150
    %v616 = vunpack.c.l.b16 %v151
    %v617 = vunpack.c.h.b16 %v151
    %v618 = vunpack.c.l.b16 %v152
    %v619 = vunpack.c.h.b16 %v152
    %v620 = vunpack.c.l.b16 %v153
    %v621 = vunpack.c.h.b16 %v153
    %v622 = vunpack.c.l.b16 %v154
    %v623 = vunpack.c.h.b16 %v154
    %v624 = vunpack.c.l.b16 %v155
    %v625 = vunpack.c.h.b16 %v155
    %v626 = vunpack.c.l.b16 %v156
    %v627 = vunpack.c.h.b16 %v156
    %v628 = vunpack.c.l.b16 %v157
    %v629 = vunpack.c.h.b16 %v157
    %v630 = vunpack.c.l.b16 %v158
    %v631 = vunpack.c.h.b16 %v158
    %v632 = vunpack.c.l.b16 %v159
    %v633 = vunpack.c.h.b16 %v159
    %v634 = vunpack.c.l.b16 %v160
    %v635 = vunpack.c.h.b16 %v160
    %v636 = vunpack.c.l.b16 %v161
    %v637 = vunpack.c.h.b16 %v161
    %v638 = vunpack.c.l.b16 %v162
    %v639 = vunpack.c.h.b16 %v162
    %v640 = vunpack.c.l.b16 %v163
    %v641 = vunpack.c.h.b16 %v163
    %v642 = vunpack.c.l.b16 %v164
    %v643 = vunpack.c.h.b16 %v164
    %v644 = vunpack.c.l.b16 %v165
    %v645 = vunpack.c.h.b16 %v165
    %v646 = vunpack.c.l.b16 %v166
    %v647 = vunpack.c.h.b16 %v166
    %v648 = vunpack.c.l.b16 %v167
    %v649 = vunpack.c.h.b16 %v167
    %v650 = vunpack.c.l.b16 %v168
    %v651 = vunpack.c.h.b16 %v168
    %v652 = vunpack.c.l.b16 %v169
    %v653 = vunpack.c.h.b16 %v169
    %v654 = vunpack.c.l.b16 %v170
    %v655 = vunpack.c.h.b16 %v170
    %v656 = vunpack.c.l.b16 %v171
    %v657 = vunpack.c.h.b16 %v171
    %v658 = vunpack.c.l.b16 %v172
    %v659 = vunpack.c.h.b16 %v172
    %v660 = vunpack.c.l.b16 %v173
    %v661 = vunpack.c.h.b16 %v173
    %v662 = vunpack.c.l.b16 %v174
    %v663 = vunpack.c.h.b16 %v174
    %v664 = vunpack.c.l.b16 %v175
    %v665 = vunpack.c.h.b16 %v175
    %v666 = vunpack.c.l.b16 %v176
    %v667 = vunpack.c.h.b16 %v176
    %v668 = vunpack.c.l.b16 %v177
    %v669 = vunpack.c.h.b16 %v177
    %v670 = vunpack.c.l.b16 %v178
    %v671 = vunpack.c.h.b16 %v178
    %v672 = vunpack.c.l.b16 %v179
    %v673 = vunpack.c.h.b16 %v179
    %v674 = vunpack.c.l.b16 %v180
    %v675 = vunpack.c.h.b16 %v180
    %v676 = vunpack.c.l.b16 %v181
    %v677 = vunpack.c.h.b16 %v181
    %v678 = vunpack.c.l.b16 %v182
    %v679 = vunpack.c.h.b16 %v182
    %v680 = vunpack.c.l.b16 %v183
    %v681 = vunpack.c.h.b16 %v183
    %v682 = vunpack.c.l.b16 %v184
    %v683 = vunpack.c.h.b16 %v184
    %v684 = vunpack.c.l.b16 %v185
    %v685 = vunpack.c.h.b16 %v185
    %v686 = vunpack.c.l.b16 %v186
    %v687 = vunpack.c.h.b16 %v186
    %v688 = vunpack.c.l.b16 %v187
    %v689 = vunpack.c.h.b16 %v187
    %v690 = vunpack.c.l.b16 %v188
    %v691 = vunpack.c.h.b16 %v188
    %v692 = vunpack.c.l.b16 %v189
    %v693 = vunpack.c.h.b16 %v189
    %v694 = vunpack.c.l.b16 %v190
    %v695 = vunpack.c.h.b16 %v190
    %v696 = vunpack.c.l.b16 %v191
    %v697 = vunpack.c.h.b16 %v191
    %v698 = vunpack.c.l.b16 %v192
    %v699 = vunpack.c.h.b16 %v192
    %v700 = vunpack.c.l.b16 %v193
    %v701 = vunpack.c.h.b16 %v193
    %v702 = vunpack.c.l.b16 %v194
    %v703 = vunpack.c.h.b16 %v194
    %v704 = vunpack.c.l.b16 %v195
    %v705 = vunpack.c.h.b16 %v195
    %v706 = vunpack.c.l.b16 %v196
    %v707 = vunpack.c.h.b16 %v196
    %v708 = vunpack.c.l.b16 %v197
    %v709 = vunpack.c.h.b16 %v197
    %v710 = vunpack.c.l.b16 %v198
    %v711 = vunpack.c.h.b16 %v198
    %v712 = vunpack.c.l.b16 %v199
    %v713 = vunpack.c.h.b16 %v199
    %v714 = vunpack.c.l.b16 %v200
    %v715 = vunpack.c.h.b16 %v200
    %v716 = vunpack.c.l.b16 %v201
    %v717 = vunpack.c.h.b16 %v201
    %v718 = vunpack.c.l.b16 %v202
    %v719 = vunpack.c.h.b16 %v202
    %v720 = vunpack.c.l.b16 %v203
    %v721 = vunpack.c.h.b16 %v203
    %v722 = vunpack.c.l.b16 %v204
    %v723 = vunpack.c.h.b16 %v204
    %v724 = vunpack.c.l.b16 %v205
    %v725 = vunpack.c.h.b16 %v205
    %v726 = vunpack.c.l.b16 %v206
    %v727 = vunpack.c.h.b16 %v206
    %v728 = vunpack.c.l.b16 %v207
    %v729 = vunpack.c.h.b16 %v207
    %v730 = vunpack.c.l.b16 %v208
    %v731 = vunpack.c.h.b16 %v208
    %v732 = vunpack.c.l.b16 %v209
    %v733 = vunpack.c.h.b16 %v209
    %v734 = vunpack.c.l.b16 %v210
    %v735 = vunpack.c.h.b16 %v210
    %v736 = vunpack.c.l.b16 %v211
    %v737 = vunpack.c.h.b16 %v211
    %v738 = vunpack.c.l.b16 %v212
    %v739 = vunpack.c.h.b16 %v212
    %v740 = vunpack.c.l.b16 %v213
    %v741 = vunpack.c.h.b16 %v213
    %v742 = vunpack.c.l.b16 %v214
    %v743 = vunpack.c.h.b16 %v214
    %v744 = vunpack.c.l.b16 %v215
    %v745 = vunpack.c.h.b16 %v215
    %v746 = vunpack.c.l.b16 %v216
    %v747 = vunpack.c.h.b16 %v216
    %v748 = vunpack.c.l.b16 %v217
    %v749 = vunpack.c.h.b16 %v217
    %v750 = vunpack.c.l.b16 %v218
    %v751 = vunpack.c.h.b16 %v218
    %v752 = vunpack.c.l.b16 %v219
    %v753 = vunpack.c.h.b16 %v219
    %v754 = vunpack.c.l.b16 %v220
    %v755 = vunpack.c.h.b16 %v220
    %v756 = vunpack.c.l.b16 %v221
    %v757 = vunpack.c.h.b16 %v221
    %v758 = vunpack.c.l.b16 %v222
    %v759 = vunpack.c.h.b16 %v222
    %v760 = vunpack.c.l.b16 %v223
    %v761 = vunpack.c.h.b16 %v223
    %v762 = vunpack.c.l.b16 %v224
    %v763 = vunpack.c.h.b16 %v224
    %v764 = vunpack.c.l.b16 %v225
    %v765 = vunpack.c.h.b16 %v225
    %v766 = vunpack.c.l.b16 %v226
    %v767 = vunpack.c.h.b16 %v226
    %v768 = vunpack.c.l.b16 %v227
    %v769 = vunpack.c.h.b16 %v227
    %v770 = vunpack.c.l.b16 %v228
    %v771 = vunpack.c.h.b16 %v228
    %v772 = vunpack.c.l.b16 %v229
    %v773 = vunpack.c.h.b16 %v229
    %v774 = vunpack.c.l.b16 %v230
    %v775 = vunpack.c.h.b16 %v230
    %v776 = vunpack.c.l.b16 %v231
    %v777 = vunpack.c.h.b16 %v231
    %v778 = vunpack.c.l.b16 %v232
    %v779 = vunpack.c.h.b16 %v232
    %v780 = vunpack.c.l.b16 %v233
    %v781 = vunpack.c.h.b16 %v233
    %v782 = vunpack.c.l.b16 %v234
    %v783 = vunpack.c.h.b16 %v234
    %v784 = vunpack.c.l.b16 %v235
    %v785 = vunpack.c.h.b16 %v235
    %v786 = vunpack.c.l.b16 %v236
    %v787 = vunpack.c.h.b16 %v236
    %v788 = vunpack.c.l.b16 %v237
    %v789 = vunpack.c.h.b16 %v237
    %v790 = vunpack.c.l.b16 %v238
    %v791 = vunpack.c.h.b16 %v238
    %v792 = vunpack.c.l.b16 %v239
    %v793 = vunpack.c.h.b16 %v239
    %v794 = vunpack.c.l.b16 %v240
    %v795 = vunpack.c.h.b16 %v240
    %v796 = vunpack.c.l.b16 %v241
    %v797 = vunpack.c.h.b16 %v241
    %v798 = vunpack.c.l.b16 %v242
    %v799 = vunpack.c.h.b16 %v242
    %v800 = vunpack.c.l.b16 %v243
    %v801 = vunpack.c.h.b16 %v243
    %v802 = vunpack.c.l.b16 %v244
    %v803 = vunpack.c.h.b16 %v244
    %v804 = vunpack.c.l.b16 %v245
    %v805 = vunpack.c.h.b16 %v245
    %v806 = vunpack.c.l.b16 %v246
    %v807 = vunpack.c.h.b16 %v246
    %v808 = vunpack.c.l.b16 %v247
    %v809 = vunpack.c.h.b16 %v247
    %v810 = vunpack.c.l.b16 %v248
    %v811 = vunpack.c.h.b16 %v248
    %v812 = vunpack.c.l.b16 %v249
    %v813 = vunpack.c.h.b16 %v249
    %v814 = vunpack.c.l.b16 %v250
    %v815 = vunpack.c.h.b16 %v250
    %v816 = vunpack.c.l.b16 %v251
    %v817 = vunpack.c.h.b16 %v251
    %v818 = vunpack.c.l.b16 %v252
    %v819 = vunpack.c.h.b16 %v252
    %v820 = vunpack.c.l.b16 %v253
    %v821 = vunpack.c.h.b16 %v253
    %v822 = vunpack.c.l.b16 %v254
    %v823 = vunpack.c.h.b16 %v254
    %v824 = vunpack.c.l.b16 %v255
    %v825 = vunpack.c.h.b16 %v255
    %v826 = vunpack.c.l.b16 %v256
    %v827 = vunpack.c.h.b16 %v256
    %v828 = vunpack.c.l.b16 %v257
    %v829 = vunpack.c.h.b16 %v257
    %v830 = vunpack.c.l.b16 %v258
    %v831 = vunpack.c.h.b16 %v258
    %v832 = vunpack.c.l.b16 %v259
    %v833 = vunpack.c.h.b16 %v259
    %v834 = vunpack.c.l.b16 %v260
    %v835 = vunpack.c.h.b16 %v260
    %v836 = vunpack.c.l.b16 %v261
    %v837 = vunpack.c.h.b16 %v261
    %v838 = vunpack.c.l.b16 %v262
    %v839 = vunpack.c.h.b16 %v262
    %v840 = vunpack.c.l.b16 %v263
    %v841 = vunpack.c.h.b16 %v263
    %v842 = vunpack.c.l.b16 %v264
    %v843 = vunpack.c.h.b16 %v264
    %v844 = vunpack.c.l.b16 %v265
    %v845 = vunpack.c.h.b16 %v265
    %v846 = vunpack.c.l.b16 %v266
    %v847 = vunpack.c.h.b16 %v266
    %v848 = vunpack.c.l.b16 %v267
    %v849 = vunpack.c.h.b16 %v267
    %v850 = vunpack.c.l.b16 %v268
    %v851 = vunpack.c.h.b16 %v268
    %v852 = vunpack.c.l.b16 %v269
    %v853 = vunpack.c.h.b16 %v269
    %v854 = vunpack.c.l.b16 %v270
    %v855 = vunpack.c.h.b16 %v270
    %v856 = vunpack.c.l.b16 %v271
    %v857 = vunpack.c.h.b16 %v271
    %v858 = vunpack.c.l.b16 %v272
    %v859 = vunpack.c.h.b16 %v272
    %v860 = vunpack.c.l.b16 %v273
    %v861 = vunpack.c.h.b16 %v273
    %v862 = vunpack.c.l.b16 %v274
    %v863 = vunpack.c.h.b16 %v274
    %v864 = vunpack.c.l.b16 %v275
    %v865 = vunpack.c.h.b16 %v275
    %v866 = vunpack.c.l.b16 %v276
    %v867 = vunpack.c.h.b16 %v276
    %v868 = vunpack.c.l.b16 %v277
    %v869 = vunpack.c.h.b16 %v277
    %v870 = vunpack.c.l.b16 %v278
    %v871 = vunpack.c.h.b16 %v278
    %v872 = vunpack.c.l.b16 %v279
    %v873 = vunpack.c.h.b16 %v279
    %v874 = vunpack.c.l.b16 %v280
    %v875 = vunpack.c.h.b16 %v280
    %v876 = vunpack.c.l.b16 %v281
    %v877 = vunpack.c.h.b16 %v281
    %v878 = vunpack.c.l.b16 %v282
    %v879 = vunpack.c.h.b16 %v282
    %v880 = vunpack.c.l.b16 %v283
    %v881 = vunpack.c.h.b16 %v283
    %v882 = vpack.c.b16 %v502, %v498
    %v883 = vpack.c.b16 %v503, %v499
    %v884 = vpack.c.b16 %v504, %v500
    %v885 = vpack.c.b16 %v505, %v501
    %v886 = vpack.c.b16 %v510, %v506
    %v887 = vpack.c.b16 %v511, %v507
    %v888 = vpack.c.b16 %v512, %v508
    %v889 = vpack.c.b16 %v513, %v509
    %v890 = vpack.c.b16 %v518, %v514
    %v891 = vpack.c.b16 %v519, %v515
    %v892 = vpack.c.b16 %v520, %v516
    %v893 = vpack.c.b16 %v521, %v517
    %v894 = vpack.c.b16 %v526, %v522
    %v895 = vpack.c.b16 %v527, %v523
    %v896 = vpack.c.b16 %v528, %v524
    %v897 = vpack.c.b16 %v529, %v525
    %v898 = vpack.c.b16 %v534, %v530
    %v899 = vpack.c.b16 %v535, %v531
    %v900 = vpack.c.b16 %v536, %v532
    %v901 = vpack.c.b16 %v537, %v533
    %v902 = vpack.c.b16 %v542, %v538
    %v903 = vpack.c.b16 %v543, %v539
    %v904 = vpack.c.b16 %v544, %v540
    %v905 = vpack.c.b16 %v545, %v541
    %v906 = vpack.c.b16 %v550, %v546
    %v907 = vpack.c.b16 %v551, %v547
    %v908 = vpack.c.b16 %v552, %v548
    %v909 = vpack.c.b16 %v553, %v549
    %v910 = vpack.c.b16 %v558, %v554
    %v911 = vpack.c.b16 %v559, %v555
    %v912 = vpack.c.b16 %v560, %v556
    %v913 = vpack.c.b16 %v561, %v557
    %v914 = vpack.c.b16 %v566, %v562
    %v915 = vpack.c.b16 %v567, %v563
    %v916 = vpack.c.b16 %v568, %v564
    %v917 = vpack.c.b16 %v569, %v565
    %v918 = vpack.c.b16 %v574, %v570
    %v919 = vpack.c.b16 %v575, %v571
    %v920 = vpack.c.b16 %v576, %v572
    %v921 = vpack.c.b16 %v577, %v573
    %v922 = vpack.c.b16 %v582, %v578
    %v923 = vpack.c.b16 %v583, %v579
    %v924 = vpack.c.b16 %v584, %v580
    %v925 = vpack.c.b16 %v585, %v581
    %v926 = vpack.c.b16 %v590, %v586
    %v927 = vpack.c.b16 %v591, %v587
    %v928 = vpack.c.b16 %v592, %v588
    %v929 = vpack.c.b16 %v593, %v589
    %v930 = vpack.c.b16 %v598, %v594
    %v931 = vpack.c.b16 %v599, %v595
    %v932 = vpack.c.b16 %v600, %v596
    %v933 = vpack.c.b16 %v601, %v597
    %v934 = vpack.c.b16 %v606, %v602
    %v935 = vpack.c.b16 %v607, %v603
    %v936 = vpack.c.b16 %v608, %v604
    %v937 = vpack.c.b16 %v609, %v605
    %v938 = vpack.c.b16 %v614, %v610
    %v939 = vpack.c.b16 %v615, %v611
    %v940 = vpack.c.b16 %v616, %v612
    %v941 = vpack.c.b16 %v617, %v613
    %v942 = vpack.c.b16 %v622, %v618
    %v943 = vpack.c.b16 %v623, %v619
    %v944 = vpack.c.b16 %v624, %v620
    %v945 = vpack.c.b16 %v625, %v621
    %v946 = vpack.c.b16 %v630, %v626
    %v947 = vpack.c.b16 %v631, %v627
    %v948 = vpack.c.b16 %v632, %v628
    %v949 = vpack.c.b16 %v633, %v629
    %v950 = vpack.c.b16 %v638, %v634
    %v951 = vpack.c.b16 %v639, %v635
    %v952 = vpack.c.b16 %v640, %v636
    %v953 = vpack.c.b16 %v641, %v637
    %v954 = vpack.c.b16 %v646, %v642
    %v955 = vpack.c.b16 %v647, %v643
    %v956 = vpack.c.b16 %v648, %v644
    %v957 = vpack.c.b16 %v649, %v645
    %v958 = vpack.c.b16 %v654, %v650
    %v959 = vpack.c.b16 %v655, %v651
    %v960 = vpack.c.b16 %v656, %v652
    %v961 = vpack.c.b16 %v657, %v653
    %v962 = vpack.c.b16 %v662, %v658
    %v963 = vpack.c.b16 %v663, %v659
    %v964 = vpack.c.b16 %v664, %v660
    %v965 = vpack.c.b16 %v665, %v661
    %v966 = vpack.c.b16 %v670, %v666
    %v967 = vpack.c.b16 %v671, %v667
    %v968 = vpack.c.b16 %v672, %v668
    %v969 = vpack.c.b16 %v673, %v669
    %v970 = vpack.c.b16 %v678, %v674
    %v971 = vpack.c.b16 %v679, %v675
    %v972 = vpack.c.b16 %v680, %v676
    %v973 = vpack.c.b16 %v681, %v677
    %v974 = vpack.c.b16 %v686, %v682
    %v975 = vpack.c.b16 %v687, %v683
    %v976 = vpack.c.b16 %v688, %v684
    %v977 = vpack.c.b16 %v689, %v685
    %v978 = vpack.c.b16 %v694, %v690
    %v979 = vpack.c.b16 %v695, %v691
    %v980 = vpack.c.b16 %v696, %v692
    %v981 = vpack.c.b16 %v697, %v693
    %v982 = vpack.c.b16 %v702, %v698
    %v983 = vpack.c.b16 %v703, %v699
    %v984 = vpack.c.b16 %v704, %v700
    %v985 = vpack.c.b16 %v705, %v701
    %v986 = vpack.c.b16 %v710, %v706
    %v987 = vpack.c.b16 %v711, %v707
    %v988 = vpack.c.b16 %v712, %v708
    %v989 = vpack.c.b16 %v713, %v709
    %v990 = vpack.c.b16 %v718, %v714
    %v991 = vpack.c.b16 %v719, %v715
    %v992 = vpack.c.b16 %v720, %v716
    %v993 = vpack.c.b16 %v721, %v717
    %v994 = vpack.c.b16 %v726, %v722
    %v995 = vpack.c.b16 %v727, %v723
    %v996 = vpack.c.b16 %v728, %v724
    %v997 = vpack.c.b16 %v729, %v725
    %v998 = vpack.c.b16 %v734, %v730
    %v999 = vpack.c.b16 %v735, %v731
    %v1000 = vpack.c.b16 %v736, %v732
    %v1001 = vpack.c.b16 %v737, %v733
    %v1002 = vpack.c.b16 %v742, %v738
    %v1003 = vpack.c.b16 %v743, %v739
    %v1004 = vpack.c.b16 %v744, %v740
    %v1005 = vpack.c.b16 %v745, %v741
    %v1006 = vpack.c.b16 %v750, %v746
    %v1007 = vpack.c.b16 %v751, %v747
    %v1008 = vpack.c.b16 %v752, %v748
    %v1009 = vpack.c.b16 %v753, %v749
    %v1010 = vpack.c.b16 %v758, %v754
    %v1011 = vpack.c.b16 %v759, %v755
    %v1012 = vpack.c.b16 %v760, %v756
    %v1013 = vpack.c.b16 %v761, %v757
    %v1014 = vpack.c.b16 %v766, %v762
    %v1015 = vpack.c.b16 %v767, %v763
    %v1016 = vpack.c.b16 %v768, %v764
    %v1017 = vpack.c.b16 %v769, %v765
    %v1018 = vpack.c.b16 %v774, %v770
    %v1019 = vpack.c.b16 %v775, %v771
    %v1020 = vpack.c.b16 %v776, %v772
    %v1021 = vpack.c.b16 %v777, %v773
    %v1022 = vpack.c.b16 %v782, %v778
    %v1023 = vpack.c.b16 %v783, %v779
    %v1024 = vpack.c.b16 %v784, %v780
    %v1025 = vpack.c.b16 %v785, %v781
    %v1026 = vpack.c.b16 %v790, %v786
    %v1027 = vpack.c.b16 %v791, %v787
    %v1028 = vpack.c.b16 %v792, %v788
    %v1029 = vpack.c.b16 %v793, %v789
    %v1030 = vpack.c.b16 %v798, %v794
    %v1031 = vpack.c.b16 %v799, %v795
    %v1032 = vpack.c.b16 %v800, %v796
    %v1033 = vpack.c.b16 %v801, %v797
    %v1034 = vpack.c.b16 %v806, %v802
    %v1035 = vpack.c.b16 %v807, %v803
    %v1036 = vpack.c.b16 %v808, %v804
    %v1037 = vpack.c.b16 %v809, %v805
    %v1038 = vpack.c.b16 %v814, %v810
    %v1039 = vpack.c.b16 %v815, %v811
    %v1040 = vpack.c.b16 %v816, %v812
    %v1041 = vpack.c.b16 %v817, %v813
    %v1042 = vpack.c.b16 %v822, %v818
    %v1043 = vpack.c.b16 %v823, %v819
    %v1044 = vpack.c.b16 %v824, %v820
    %v1045 = vpack.c.b16 %v825, %v821
    %v1046 = vpack.c.b16 %v830, %v826
    %v1047 = vpack.c.b16 %v831, %v827
    %v1048 = vpack.c.b16 %v832, %v828
    %v1049 = vpack.c.b16 %v833, %v829
    %v1050 = vpack.c.b16 %v838, %v834
    %v1051 = vpack.c.b16 %v839, %v835
    %v1052 = vpack.c.b16 %v840, %v836
    %v1053 = vpack.c.b16 %v841, %v837
    %v1054 = vpack.c.b16 %v846, %v842
    %v1055 = vpack.c.b16 %v847, %v843
    %v1056 = vpack.c.b16 %v848, %v844
    %v1057 = vpack.c.b16 %v849, %v845
    %v1058 = vpack.c.b16 %v854, %v850
    %v1059 = vpack.c.b16 %v855, %v851
    %v1060 = vpack.c.b16 %v856, %v852
    %v1061 = vpack.c.b16 %v857, %v853
    %v1062 = vpack.c.b16 %v862, %v858
    %v1063 = vpack.c.b16 %v863, %v859
    %v1064 = vpack.c.b16 %v864, %v860
    %v1065 = vpack.c.b16 %v865, %v861
    %v1066 = vpack.c.b16 %v870, %v866
    %v1067 = vpack.c.b16 %v871, %v867
    %v1068 = vpack.c.b16 %v872, %v868
    %v1069 = vpack.c.b16 %v873, %v869
    %v1070 = vpack.c.b16 %v878, %v874
    %v1071 = vpack.c.b16 %v879, %v875
    %v1072 = vpack.c.b16 %v880, %v876
    %v1073 = vpack.c.b16 %v881, %v877
    %1266 = vmatprep.subr.bf16.mxu0 %v883
    %1267 = vmatpush1.bf16.msra.mxu0 %v882
    %1268 = vmatprep.subr.bf16.mxu0 %v887
    %1269 = vmatpush1.bf16.msra.mxu0 %v886
    %1270 = vmatprep.subr.bf16.mxu0 %v891
    %1271 = vmatpush1.bf16.msra.mxu0 %v890
    %1272 = vmatprep.subr.bf16.mxu0 %v895
    %1273 = vmatpush1.bf16.msra.mxu0 %v894
    %1274 = vmatprep.subr.bf16.mxu0 %v899
    %1275 = vmatpush1.bf16.msra.mxu0 %v898
    %1276 = vmatprep.subr.bf16.mxu0 %v903
    %1277 = vmatpush1.bf16.msra.mxu0 %v902
    %1278 = vmatprep.subr.bf16.mxu0 %v907
    %1279 = vmatpush1.bf16.msra.mxu0 %v906
    %1280 = vmatprep.subr.bf16.mxu0 %v911
    %1281 = vmatpush1.bf16.msra.mxu0 %v910
    %1282 = vmatprep.subr.bf16.mxu0 %v915
    %1283 = vmatpush1.bf16.msra.mxu0 %v914
    %1284 = vmatprep.subr.bf16.mxu0 %v919
    %1285 = vmatpush1.bf16.msra.mxu0 %v918
    %1286 = vmatprep.subr.bf16.mxu0 %v923
    %1287 = vmatpush1.bf16.msra.mxu0 %v922
    %1288 = vmatprep.subr.bf16.mxu0 %v927
    %1289 = vmatpush1.bf16.msra.mxu0 %v926
    %1290 = vmatprep.subr.bf16.mxu0 %v931
    %1291 = vmatpush1.bf16.msra.mxu0 %v930
    %1292 = vmatprep.subr.bf16.mxu0 %v935
    %1293 = vmatpush1.bf16.msra.mxu0 %v934
    %1294 = vmatprep.subr.bf16.mxu0 %v939
    %1295 = vmatpush1.bf16.msra.mxu0 %v938
    %1296 = vmatprep.subr.bf16.mxu0 %v943
    %1297 = vmatpush1.bf16.msra.mxu0 %v942
    %1298 = vmatprep.mubr.bf16.mxu0 %v87
    %1299 = vmatmul.mubr.bf16.gmra.mrb[0].mxu0 %v86
    %v1300 = vpop.f32.mrb[0].mxu0
    %v1301 = vadd.f32 %v289, %v1300
    %v1302 = vpop.f32.mrb[0].mxu0
    %v1303 = vadd.f32 %v293, %v1302
    %v1304 = vpop.f32.mrb[0].mxu0
    %v1305 = vadd.f32 %v289, %v1304
    %v1306 = vpop.f32.mrb[0].mxu0
    %v1307 = vadd.f32 %v293, %v1306
    %1308 = vdwg.mxu0
    %1309 = vmatprep.subr.bf16.mxu0 %v947
    %1310 = vmatpush1.bf16.msra.mxu0 %v946
    %1311 = vmatprep.subr.bf16.mxu0 %v951
    %1312 = vmatpush1.bf16.msra.mxu0 %v950
    %1313 = vmatprep.subr.bf16.mxu0 %v955
    %1314 = vmatpush1.bf16.msra.mxu0 %v954
    %1315 = vmatprep.subr.bf16.mxu0 %v959
    %1316 = vmatpush1.bf16.msra.mxu0 %v958
    %1317 = vmatprep.subr.bf16.mxu0 %v963
    %1318 = vmatpush1.bf16.msra.mxu0 %v962
    %1319 = vmatprep.subr.bf16.mxu0 %v967
    %1320 = vmatpush1.bf16.msra.mxu0 %v966
    %1321 = vmatprep.subr.bf16.mxu0 %v971
    %1322 = vmatpush1.bf16.msra.mxu0 %v970
    %1323 = vmatprep.subr.bf16.mxu0 %v975
    %1324 = vmatpush1.bf16.msra.mxu0 %v974
    %1325 = vmatprep.subr.bf16.mxu0 %v979
    %1326 = vmatpush1.bf16.msra.mxu0 %v978
    %1327 = vmatprep.subr.bf16.mxu0 %v983
    %1328 = vmatpush1.bf16.msra.mxu0 %v982
    %1329 = vmatprep.subr.bf16.mxu0 %v987
    %1330 = vmatpush1.bf16.msra.mxu0 %v986
    %1331 = vmatprep.subr.bf16.mxu0 %v991
    %1332 = vmatpush1.bf16.msra.mxu0 %v990
    %1333 = vmatprep.subr.bf16.mxu0 %v995
    %1334 = vmatpush1.bf16.msra.mxu0 %v994
    %1335 = vmatprep.subr.bf16.mxu0 %v999
    %1336 = vmatpush1.bf16.msra.mxu0 %v998
    %1337 = vmatprep.subr.bf16.mxu0 %v1003
    %1338 = vmatpush1.bf16.msra.mxu0 %v1002
    %1339 = vmatprep.subr.bf16.mxu0 %v1007
    %1340 = vmatpush1.bf16.msra.mxu0 %v1006
    %1341 = vmatprep.mubr.bf16.mxu0 %v89
    %1342 = vmatmul.mubr.bf16.gmra.mrb[0].mxu0 %v88
    %v1343 = vpop.f32.mrb[0].mxu0
    %v1344 = vadd.f32 %v1301, %v1343
    %v1345 = vpop.f32.mrb[0].mxu0
    %v1346 = vadd.f32 %v1303, %v1345
    %v1347 = vpop.f32.mrb[0].mxu0
    %v1348 = vadd.f32 %v1305, %v1347
    %v1349 = vpop.f32.mrb[0].mxu0
    %v1350 = vadd.f32 %v1307, %v1349
    %1351 = vdwg.mxu0
    %1352 = vmatprep.subr.bf16.mxu0 %v1011
    %1353 = vmatpush1.bf16.msra.mxu0 %v1010
    %1354 = vmatprep.subr.bf16.mxu0 %v1015
    %1355 = vmatpush1.bf16.msra.mxu0 %v1014
    %1356 = vmatprep.subr.bf16.mxu0 %v1019
    %1357 = vmatpush1.bf16.msra.mxu0 %v1018
    %1358 = vmatprep.subr.bf16.mxu0 %v1023
    %1359 = vmatpush1.bf16.msra.mxu0 %v1022
    %1360 = vmatprep.subr.bf16.mxu0 %v1027
    %1361 = vmatpush1.bf16.msra.mxu0 %v1026
    %1362 = vmatprep.subr.bf16.mxu0 %v1031
    %1363 = vmatpush1.bf16.msra.mxu0 %v1030
    %1364 = vmatprep.subr.bf16.mxu0 %v1035
    %1365 = vmatpush1.bf16.msra.mxu0 %v1034
    %1366 = vmatprep.subr.bf16.mxu0 %v1039
    %1367 = vmatpush1.bf16.msra.mxu0 %v1038
    %1368 = vmatprep.subr.bf16.mxu0 %v1043
    %1369 = vmatpush1.bf16.msra.mxu0 %v1042
    %1370 = vmatprep.subr.bf16.mxu0 %v1047
    %1371 = vmatpush1.bf16.msra.mxu0 %v1046
    %1372 = vmatprep.subr.bf16.mxu0 %v1051
    %1373 = vmatpush1.bf16.msra.mxu0 %v1050
    %1374 = vmatprep.subr.bf16.mxu0 %v1055
    %1375 = vmatpush1.bf16.msra.mxu0 %v1054
    %1376 = vmatprep.subr.bf16.mxu0 %v1059
    %1377 = vmatpush1.bf16.msra.mxu0 %v1058
    %1378 = vmatprep.subr.bf16.mxu0 %v1063
    %1379 = vmatpush1.bf16.msra.mxu0 %v1062
    %1380 = vmatprep.subr.bf16.mxu0 %v1067
    %1381 = vmatpush1.bf16.msra.mxu0 %v1066
    %1382 = vmatprep.subr.bf16.mxu0 %v1071
    %1383 = vmatpush1.bf16.msra.mxu0 %v1070
    %1384 = vmatprep.mubr.bf16.mxu0 %v91
    %1385 = vmatmul.mubr.bf16.gmra.mrb[0].mxu0 %v90
    %v1386 = vpop.f32.mrb[0].mxu0
    %v1387 = vadd.f32 %v1344, %v1386
    %v1388 = vpop.f32.mrb[0].mxu0
    %v1389 = vadd.f32 %v1346, %v1388
    %v1390 = vpop.f32.mrb[0].mxu0
    %v1391 = vadd.f32 %v1348, %v1390
    %v1392 = vpop.f32.mrb[0].mxu0
    %v1393 = vadd.f32 %v1350, %v1392
    %1394 = vdwg.mxu0
    %1395 = vmatprep.subr.bf16.mxu0 %v885
    %1396 = vmatpush1.bf16.msra.mxu0 %v884
    %1397 = vmatprep.subr.bf16.mxu0 %v889
    %1398 = vmatpush1.bf16.msra.mxu0 %v888
    %1399 = vmatprep.subr.bf16.mxu0 %v893
    %1400 = vmatpush1.bf16.msra.mxu0 %v892
    %1401 = vmatprep.subr.bf16.mxu0 %v897
    %1402 = vmatpush1.bf16.msra.mxu0 %v896
    %1403 = vmatprep.subr.bf16.mxu0 %v901
    %1404 = vmatpush1.bf16.msra.mxu0 %v900
    %1405 = vmatprep.subr.bf16.mxu0 %v905
    %1406 = vmatpush1.bf16.msra.mxu0 %v904
    %1407 = vmatprep.subr.bf16.mxu0 %v909
    %1408 = vmatpush1.bf16.msra.mxu0 %v908
    %1409 = vmatprep.subr.bf16.mxu0 %v913
    %1410 = vmatpush1.bf16.msra.mxu0 %v912
    %1411 = vmatprep.subr.bf16.mxu0 %v917
    %1412 = vmatpush1.bf16.msra.mxu0 %v916
    %1413 = vmatprep.subr.bf16.mxu0 %v921
    %1414 = vmatpush1.bf16.msra.mxu0 %v920
    %1415 = vmatprep.subr.bf16.mxu0 %v925
    %1416 = vmatpush1.bf16.msra.mxu0 %v924
    %1417 = vmatprep.subr.bf16.mxu0 %v929
    %1418 = vmatpush1.bf16.msra.mxu0 %v928
    %1419 = vmatprep.subr.bf16.mxu0 %v933
    %1420 = vmatpush1.bf16.msra.mxu0 %v932
    %1421 = vmatprep.subr.bf16.mxu0 %v937
    %1422 = vmatpush1.bf16.msra.mxu0 %v936
    %1423 = vmatprep.subr.bf16.mxu0 %v941
    %1424 = vmatpush1.bf16.msra.mxu0 %v940
    %1425 = vmatprep.subr.bf16.mxu0 %v945
    %1426 = vmatpush1.bf16.msra.mxu0 %v944
    %1427 = vmatprep.mubr.bf16.mxu0 %v87
    %1428 = vmatmul.mubr.bf16.gmra.mrb[0].mxu0 %v86
    %v1429 = vpop.f32.mrb[0].mxu0
    %v1430 = vadd.f32 %v297, %v1429
    %v1431 = vpop.f32.mrb[0].mxu0
    %v1432 = vadd.f32 %v301, %v1431
    %v1433 = vpop.f32.mrb[0].mxu0
    %v1434 = vadd.f32 %v297, %v1433
    %v1435 = vpop.f32.mrb[0].mxu0
    %v1436 = vadd.f32 %v301, %v1435
    %1437 = vdwg.mxu0
    %1438 = vmatprep.subr.bf16.mxu0 %v949
    %1439 = vmatpush1.bf16.msra.mxu0 %v948
    %1440 = vmatprep.subr.bf16.mxu0 %v953
    %1441 = vmatpush1.bf16.msra.mxu0 %v952
    %1442 = vmatprep.subr.bf16.mxu0 %v957
    %1443 = vmatpush1.bf16.msra.mxu0 %v956
    %1444 = vmatprep.subr.bf16.mxu0 %v961
    %1445 = vmatpush1.bf16.msra.mxu0 %v960
    %1446 = vmatprep.subr.bf16.mxu0 %v965
    %1447 = vmatpush1.bf16.msra.mxu0 %v964
    %1448 = vmatprep.subr.bf16.mxu0 %v969
    %1449 = vmatpush1.bf16.msra.mxu0 %v968
    %1450 = vmatprep.subr.bf16.mxu0 %v973
    %1451 = vmatpush1.bf16.msra.mxu0 %v972
    %1452 = vmatprep.subr.bf16.mxu0 %v977
    %1453 = vmatpush1.bf16.msra.mxu0 %v976
    %1454 = vmatprep.subr.bf16.mxu0 %v981
    %1455 = vmatpush1.bf16.msra.mxu0 %v980
    %1456 = vmatprep.subr.bf16.mxu0 %v985
    %1457 = vmatpush1.bf16.msra.mxu0 %v984
    %1458 = vmatprep.subr.bf16.mxu0 %v989
    %1459 = vmatpush1.bf16.msra.mxu0 %v988
    %1460 = vmatprep.subr.bf16.mxu0 %v993
    %1461 = vmatpush1.bf16.msra.mxu0 %v992
    %1462 = vmatprep.subr.bf16.mxu0 %v997
    %1463 = vmatpush1.bf16.msra.mxu0 %v996
    %1464 = vmatprep.subr.bf16.mxu0 %v1001
    %1465 = vmatpush1.bf16.msra.mxu0 %v1000
    %1466 = vmatprep.subr.bf16.mxu0 %v1005
    %1467 = vmatpush1.bf16.msra.mxu0 %v1004
    %1468 = vmatprep.subr.bf16.mxu0 %v1009
    %1469 = vmatpush1.bf16.msra.mxu0 %v1008
    %1470 = vmatprep.mubr.bf16.mxu0 %v89
    %1471 = vmatmul.mubr.bf16.gmra.mrb[0].mxu0 %v88
    %v1472 = vpop.f32.mrb[0].mxu0
    %v1473 = vadd.f32 %v1430, %v1472
    %v1474 = vpop.f32.mrb[0].mxu0
    %v1475 = vadd.f32 %v1432, %v1474
    %v1476 = vpop.f32.mrb[0].mxu0
    %v1477 = vadd.f32 %v1434, %v1476
    %v1478 = vpop.f32.mrb[0].mxu0
    %v1479 = vadd.f32 %v1436, %v1478
    %1480 = vdwg.mxu0
    %1481 = vmatprep.subr.bf16.mxu0 %v1013
    %1482 = vmatpush1.bf16.msra.mxu0 %v1012
    %1483 = vmatprep.subr.bf16.mxu0 %v1017
    %1484 = vmatpush1.bf16.msra.mxu0 %v1016
    %1485 = vmatprep.subr.bf16.mxu0 %v1021
    %1486 = vmatpush1.bf16.msra.mxu0 %v1020
    %1487 = vmatprep.subr.bf16.mxu0 %v1025
    %1488 = vmatpush1.bf16.msra.mxu0 %v1024
    %1489 = vmatprep.subr.bf16.mxu0 %v1029
    %1490 = vmatpush1.bf16.msra.mxu0 %v1028
    %1491 = vmatprep.subr.bf16.mxu0 %v1033
    %1492 = vmatpush1.bf16.msra.mxu0 %v1032
    %1493 = vmatprep.subr.bf16.mxu0 %v1037
    %1494 = vmatpush1.bf16.msra.mxu0 %v1036
    %1495 = vmatprep.subr.bf16.mxu0 %v1041
    %1496 = vmatpush1.bf16.msra.mxu0 %v1040
    %1497 = vmatprep.subr.bf16.mxu0 %v1045
    %1498 = vmatpush1.bf16.msra.mxu0 %v1044
    %1499 = vmatprep.subr.bf16.mxu0 %v1049
    %1500 = vmatpush1.bf16.msra.mxu0 %v1048
    %1501 = vmatprep.subr.bf16.mxu0 %v1053
    %1502 = vmatpush1.bf16.msra.mxu0 %v1052
    %1503 = vmatprep.subr.bf16.mxu0 %v1057
    %1504 = vmatpush1.bf16.msra.mxu0 %v1056
    %1505 = vmatprep.subr.bf16.mxu0 %v1061
    %1506 = vmatpush1.bf16.msra.mxu0 %v1060
    %1507 = vmatprep.subr.bf16.mxu0 %v1065
    %1508 = vmatpush1.bf16.msra.mxu0 %v1064
    %1509 = vmatprep.subr.bf16.mxu0 %v1069
    %1510 = vmatpush1.bf16.msra.mxu0 %v1068
    %1511 = vmatprep.subr.bf16.mxu0 %v1073
    %1512 = vmatpush1.bf16.msra.mxu0 %v1072
    %1513 = vmatprep.mubr.bf16.mxu0 %v91
    %1514 = vmatmul.mubr.bf16.gmra.mrb[0].mxu0 %v90
    %v1515 = vpop.f32.mrb[0].mxu0
    %v1516 = vadd.f32 %v1473, %v1515
    %v1517 = vpop.f32.mrb[0].mxu0
    %v1518 = vadd.f32 %v1475, %v1517
    %v1519 = vpop.f32.mrb[0].mxu0
    %v1520 = vadd.f32 %v1477, %v1519
    %v1521 = vpop.f32.mrb[0].mxu0
    %v1522 = vadd.f32 %v1479, %v1521
    %1523 = vdwg.mxu0
    %v1524 = vmax.f32 %v1387, 0.0
    %v1525 = vmax.f32 %v1389, 0.0
    %v1526 = vmax.f32 %v1516, 0.0
    %v1527 = vmax.f32 %v1518, 0.0
    %v1528 = vmax.f32 %v1391, 0.0
    %v1529 = vmax.f32 %v1393, 0.0
    %v1530 = vmax.f32 %v1520, 0.0
    %v1531 = vmax.f32 %v1522, 0.0
    %v1532 = vpack.c.bf16 %v1528, %v1524
    %v1533 = vpack.c.bf16 %v1529, %v1525
    %v1534 = vpack.c.bf16 %v1530, %v1526
    %v1535 = vpack.c.bf16 %v1531, %v1527
    %v1536 = vld [vmem:[#allocation4] sm:$0xff]
    %v1537 = vld [vmem:[#allocation4 + $0x8] sm:$0xff]
    %v1538 = vld [vmem:[#allocation4 + $0x10] sm:$0xff]
    %v1539 = vld [vmem:[#allocation4 + $0x18] sm:$0xff]
    %v1540 = vld [vmem:[#allocation4 + $0x20] sm:$0xff]
    %v1541 = vld [vmem:[#allocation4 + $0x28] sm:$0xff]
    %v1542 = vld [vmem:[#allocation4 + $0x30] sm:$0xff]
    %v1543 = vld [vmem:[#allocation4 + $0x38] sm:$0xff]
    %v1544 = vld [vmem:[#allocation4 + $0x40] sm:$0xff]
    %v1545 = vld [vmem:[#allocation4 + $0x48] sm:$0xff]
    %v1546 = vld [vmem:[#allocation4 + $0x50] sm:$0xff]
    %v1547 = vld [vmem:[#allocation4 + $0x58] sm:$0xff]
    %v1548 = vld [vmem:[#allocation4 + $0x60] sm:$0xff]
    %v1549 = vld [vmem:[#allocation4 + $0x68] sm:$0xff]
    %v1550 = vld [vmem:[#allocation4 + $0x70] sm:$0xff]
    %v1551 = vld [vmem:[#allocation4 + $0x78] sm:$0xff]
    %v1552 = vld [vmem:[#allocation4 + $0x80] sm:$0xff]
    %v1553 = vld [vmem:[#allocation4 + $0x88] sm:$0xff]
    %v1554 = vld [vmem:[#allocation4 + $0x90] sm:$0xff]
    %v1555 = vld [vmem:[#allocation4 + $0x98] sm:$0xff]
    %v1556 = vld [vmem:[#allocation4 + $0xa0] sm:$0xff]
    %v1557 = vld [vmem:[#allocation4 + $0xa8] sm:$0xff]
    %v1558 = vld [vmem:[#allocation4 + $0xb0] sm:$0xff]
    %v1559 = vld [vmem:[#allocation4 + $0xb8] sm:$0xff]
    %v1560 = vld [vmem:[#allocation4 + $0xc0] sm:$0xff]
    %v1561 = vld [vmem:[#allocation4 + $0xc8] sm:$0xff]
    %v1562 = vld [vmem:[#allocation4 + $0xd0] sm:$0xff]
    %v1563 = vld [vmem:[#allocation4 + $0xd8] sm:$0xff]
    %v1564 = vld [vmem:[#allocation4 + $0xe0] sm:$0xff]
    %v1565 = vld [vmem:[#allocation4 + $0xe8] sm:$0xff]
    %v1566 = vld [vmem:[#allocation4 + $0xf0] sm:$0xff]
    %v1567 = vld [vmem:[#allocation4 + $0xf8] sm:$0xff]
    %v1568 = vld [vmem:[#allocation4 + $0x100] sm:$0xff]
    %v1569 = vld [vmem:[#allocation4 + $0x108] sm:$0xff]
    %v1570 = vld [vmem:[#allocation4 + $0x110] sm:$0xff]
    %v1571 = vld [vmem:[#allocation4 + $0x118] sm:$0xff]
    %v1572 = vld [vmem:[#allocation4 + $0x120] sm:$0xff]
    %v1573 = vld [vmem:[#allocation4 + $0x128] sm:$0xff]
    %v1574 = vld [vmem:[#allocation4 + $0x130] sm:$0xff]
    %v1575 = vld [vmem:[#allocation4 + $0x138] sm:$0xff]
    %v1576 = vld [vmem:[#allocation4 + $0x140] sm:$0xff]
    %v1577 = vld [vmem:[#allocation4 + $0x148] sm:$0xff]
    %v1578 = vld [vmem:[#allocation4 + $0x150] sm:$0xff]
    %v1579 = vld [vmem:[#allocation4 + $0x158] sm:$0xff]
    %v1580 = vld [vmem:[#allocation4 + $0x160] sm:$0xff]
    %v1581 = vld [vmem:[#allocation4 + $0x168] sm:$0xff]
    %v1582 = vld [vmem:[#allocation4 + $0x170] sm:$0xff]
    %v1583 = vld [vmem:[#allocation4 + $0x178] sm:$0xff]
    %v1584 = vld [vmem:[#allocation4 + $0x180] sm:$0xff]
    %v1585 = vld [vmem:[#allocation4 + $0x188] sm:$0xff]
    %v1586 = vld [vmem:[#allocation4 + $0x190] sm:$0xff]
    %v1587 = vld [vmem:[#allocation4 + $0x198] sm:$0xff]
    %v1588 = vld [vmem:[#allocation4 + $0x1a0] sm:$0xff]
    %v1589 = vld [vmem:[#allocation4 + $0x1a8] sm:$0xff]
    %v1590 = vld [vmem:[#allocation4 + $0x1b0] sm:$0xff]
    %v1591 = vld [vmem:[#allocation4 + $0x1b8] sm:$0xff]
    %v1592 = vld [vmem:[#allocation4 + $0x1c0] sm:$0xff]
    %v1593 = vld [vmem:[#allocation4 + $0x1c8] sm:$0xff]
    %v1594 = vld [vmem:[#allocation4 + $0x1d0] sm:$0xff]
    %v1595 = vld [vmem:[#allocation4 + $0x1d8] sm:$0xff]
    %v1596 = vld [vmem:[#allocation4 + $0x1e0] sm:$0xff]
    %v1597 = vld [vmem:[#allocation4 + $0x1e8] sm:$0xff]
    %v1598 = vld [vmem:[#allocation4 + $0x1f0] sm:$0xff]
    %v1599 = vld [vmem:[#allocation4 + $0x1f8] sm:$0xff]
    %v1600 = vld [vmem:[%s4] sm:$0x3]
    %v1602 = vlaneseq
    %v1603 = vshrl.u32 %v1602, 7
    %v1604 = vsub.s32 0, %v1603
    %v1605 = vrot.slane %v1600, %v1604
    %v1606 = vlaneseq
    %v1607 = vshrl.u32 %v1606, 7
    %v1608 = vsub.s32 1, %v1607
    %v1609 = vrot.slane %v1600, %v1608
    %v1676 = vunpack.c.l.b16 %v1536
    %v1677 = vunpack.c.h.b16 %v1536
    %v1678 = vunpack.c.l.b16 %v1537
    %v1679 = vunpack.c.h.b16 %v1537
    %v1680 = vunpack.c.l.b16 %v1538
    %v1681 = vunpack.c.h.b16 %v1538
    %v1682 = vunpack.c.l.b16 %v1539
    %v1683 = vunpack.c.h.b16 %v1539
    %v1684 = vunpack.c.l.b16 %v1540
    %v1685 = vunpack.c.h.b16 %v1540
    %v1686 = vunpack.c.l.b16 %v1541
    %v1687 = vunpack.c.h.b16 %v1541
    %v1688 = vunpack.c.l.b16 %v1542
    %v1689 = vunpack.c.h.b16 %v1542
    %v1690 = vunpack.c.l.b16 %v1543
    %v1691 = vunpack.c.h.b16 %v1543
    %v1692 = vunpack.c.l.b16 %v1544
    %v1693 = vunpack.c.h.b16 %v1544
    %v1694 = vunpack.c.l.b16 %v1545
    %v1695 = vunpack.c.h.b16 %v1545
    %v1696 = vunpack.c.l.b16 %v1546
    %v1697 = vunpack.c.h.b16 %v1546
    %v1698 = vunpack.c.l.b16 %v1547
    %v1699 = vunpack.c.h.b16 %v1547
    %v1700 = vunpack.c.l.b16 %v1548
    %v1701 = vunpack.c.h.b16 %v1548
    %v1702 = vunpack.c.l.b16 %v1549
    %v1703 = vunpack.c.h.b16 %v1549
    %v1704 = vunpack.c.l.b16 %v1550
    %v1705 = vunpack.c.h.b16 %v1550
    %v1706 = vunpack.c.l.b16 %v1551
    %v1707 = vunpack.c.h.b16 %v1551
    %v1708 = vunpack.c.l.b16 %v1552
    %v1709 = vunpack.c.h.b16 %v1552
    %v1710 = vunpack.c.l.b16 %v1553
    %v1711 = vunpack.c.h.b16 %v1553
    %v1712 = vunpack.c.l.b16 %v1554
    %v1713 = vunpack.c.h.b16 %v1554
    %v1714 = vunpack.c.l.b16 %v1555
    %v1715 = vunpack.c.h.b16 %v1555
    %v1716 = vunpack.c.l.b16 %v1556
    %v1717 = vunpack.c.h.b16 %v1556
    %v1718 = vunpack.c.l.b16 %v1557
    %v1719 = vunpack.c.h.b16 %v1557
    %v1720 = vunpack.c.l.b16 %v1558
    %v1721 = vunpack.c.h.b16 %v1558
    %v1722 = vunpack.c.l.b16 %v1559
    %v1723 = vunpack.c.h.b16 %v1559
    %v1724 = vunpack.c.l.b16 %v1560
    %v1725 = vunpack.c.h.b16 %v1560
    %v1726 = vunpack.c.l.b16 %v1561
    %v1727 = vunpack.c.h.b16 %v1561
    %v1728 = vunpack.c.l.b16 %v1562
    %v1729 = vunpack.c.h.b16 %v1562
    %v1730 = vunpack.c.l.b16 %v1563
    %v1731 = vunpack.c.h.b16 %v1563
    %v1732 = vunpack.c.l.b16 %v1564
    %v1733 = vunpack.c.h.b16 %v1564
    %v1734 = vunpack.c.l.b16 %v1565
    %v1735 = vunpack.c.h.b16 %v1565
    %v1736 = vunpack.c.l.b16 %v1566
    %v1737 = vunpack.c.h.b16 %v1566
    %v1738 = vunpack.c.l.b16 %v1567
    %v1739 = vunpack.c.h.b16 %v1567
    %v1740 = vunpack.c.l.b16 %v1568
    %v1741 = vunpack.c.h.b16 %v1568
    %v1742 = vunpack.c.l.b16 %v1569
    %v1743 = vunpack.c.h.b16 %v1569
    %v1744 = vunpack.c.l.b16 %v1570
    %v1745 = vunpack.c.h.b16 %v1570
    %v1746 = vunpack.c.l.b16 %v1571
    %v1747 = vunpack.c.h.b16 %v1571
    %v1748 = vunpack.c.l.b16 %v1572
    %v1749 = vunpack.c.h.b16 %v1572
    %v1750 = vunpack.c.l.b16 %v1573
    %v1751 = vunpack.c.h.b16 %v1573
    %v1752 = vunpack.c.l.b16 %v1574
    %v1753 = vunpack.c.h.b16 %v1574
    %v1754 = vunpack.c.l.b16 %v1575
    %v1755 = vunpack.c.h.b16 %v1575
    %v1756 = vunpack.c.l.b16 %v1576
    %v1757 = vunpack.c.h.b16 %v1576
    %v1758 = vunpack.c.l.b16 %v1577
    %v1759 = vunpack.c.h.b16 %v1577
    %v1760 = vunpack.c.l.b16 %v1578
    %v1761 = vunpack.c.h.b16 %v1578
    %v1762 = vunpack.c.l.b16 %v1579
    %v1763 = vunpack.c.h.b16 %v1579
    %v1764 = vunpack.c.l.b16 %v1580
    %v1765 = vunpack.c.h.b16 %v1580
    %v1766 = vunpack.c.l.b16 %v1581
    %v1767 = vunpack.c.h.b16 %v1581
    %v1768 = vunpack.c.l.b16 %v1582
    %v1769 = vunpack.c.h.b16 %v1582
    %v1770 = vunpack.c.l.b16 %v1583
    %v1771 = vunpack.c.h.b16 %v1583
    %v1772 = vunpack.c.l.b16 %v1584
    %v1773 = vunpack.c.h.b16 %v1584
    %v1774 = vunpack.c.l.b16 %v1585
    %v1775 = vunpack.c.h.b16 %v1585
    %v1776 = vunpack.c.l.b16 %v1586
    %v1777 = vunpack.c.h.b16 %v1586
    %v1778 = vunpack.c.l.b16 %v1587
    %v1779 = vunpack.c.h.b16 %v1587
    %v1780 = vunpack.c.l.b16 %v1588
    %v1781 = vunpack.c.h.b16 %v1588
    %v1782 = vunpack.c.l.b16 %v1589
    %v1783 = vunpack.c.h.b16 %v1589
    %v1784 = vunpack.c.l.b16 %v1590
    %v1785 = vunpack.c.h.b16 %v1590
    %v1786 = vunpack.c.l.b16 %v1591
    %v1787 = vunpack.c.h.b16 %v1591
    %v1788 = vunpack.c.l.b16 %v1592
    %v1789 = vunpack.c.h.b16 %v1592
    %v1790 = vunpack.c.l.b16 %v1593
    %v1791 = vunpack.c.h.b16 %v1593
    %v1792 = vunpack.c.l.b16 %v1594
    %v1793 = vunpack.c.h.b16 %v1594
    %v1794 = vunpack.c.l.b16 %v1595
    %v1795 = vunpack.c.h.b16 %v1595
    %v1796 = vunpack.c.l.b16 %v1596
    %v1797 = vunpack.c.h.b16 %v1596
    %v1798 = vunpack.c.l.b16 %v1597
    %v1799 = vunpack.c.h.b16 %v1597
    %v1800 = vunpack.c.l.b16 %v1598
    %v1801 = vunpack.c.h.b16 %v1598
    %v1802 = vunpack.c.l.b16 %v1599
    %v1803 = vunpack.c.h.b16 %v1599
    %v1804 = vpack.c.b16 %v1678, %v1676
    %v1805 = vpack.c.b16 %v1679, %v1677
    %v1806 = vpack.c.b16 %v1682, %v1680
    %v1807 = vpack.c.b16 %v1683, %v1681
    %v1808 = vpack.c.b16 %v1686, %v1684
    %v1809 = vpack.c.b16 %v1687, %v1685
    %v1810 = vpack.c.b16 %v1690, %v1688
    %v1811 = vpack.c.b16 %v1691, %v1689
    %v1812 = vpack.c.b16 %v1694, %v1692
    %v1813 = vpack.c.b16 %v1695, %v1693
    %v1814 = vpack.c.b16 %v1698, %v1696
    %v1815 = vpack.c.b16 %v1699, %v1697
    %v1816 = vpack.c.b16 %v1702, %v1700
    %v1817 = vpack.c.b16 %v1703, %v1701
    %v1818 = vpack.c.b16 %v1706, %v1704
    %v1819 = vpack.c.b16 %v1707, %v1705
    %v1820 = vpack.c.b16 %v1710, %v1708
    %v1821 = vpack.c.b16 %v1711, %v1709
    %v1822 = vpack.c.b16 %v1714, %v1712
    %v1823 = vpack.c.b16 %v1715, %v1713
    %v1824 = vpack.c.b16 %v1718, %v1716
    %v1825 = vpack.c.b16 %v1719, %v1717
    %v1826 = vpack.c.b16 %v1722, %v1720
    %v1827 = vpack.c.b16 %v1723, %v1721
    %v1828 = vpack.c.b16 %v1726, %v1724
    %v1829 = vpack.c.b16 %v1727, %v1725
    %v1830 = vpack.c.b16 %v1730, %v1728
    %v1831 = vpack.c.b16 %v1731, %v1729
    %v1832 = vpack.c.b16 %v1734, %v1732
    %v1833 = vpack.c.b16 %v1735, %v1733
    %v1834 = vpack.c.b16 %v1738, %v1736
    %v1835 = vpack.c.b16 %v1739, %v1737
    %v1836 = vpack.c.b16 %v1742, %v1740
    %v1837 = vpack.c.b16 %v1743, %v1741
    %v1838 = vpack.c.b16 %v1746, %v1744
    %v1839 = vpack.c.b16 %v1747, %v1745
    %v1840 = vpack.c.b16 %v1750, %v1748
    %v1841 = vpack.c.b16 %v1751, %v1749
    %v1842 = vpack.c.b16 %v1754, %v1752
    %v1843 = vpack.c.b16 %v1755, %v1753
    %v1844 = vpack.c.b16 %v1758, %v1756
    %v1845 = vpack.c.b16 %v1759, %v1757
    %v1846 = vpack.c.b16 %v1762, %v1760
    %v1847 = vpack.c.b16 %v1763, %v1761
    %v1848 = vpack.c.b16 %v1766, %v1764
    %v1849 = vpack.c.b16 %v1767, %v1765
    %v1850 = vpack.c.b16 %v1770, %v1768
    %v1851 = vpack.c.b16 %v1771, %v1769
    %v1852 = vpack.c.b16 %v1774, %v1772
    %v1853 = vpack.c.b16 %v1775, %v1773
    %v1854 = vpack.c.b16 %v1778, %v1776
    %v1855 = vpack.c.b16 %v1779, %v1777
    %v1856 = vpack.c.b16 %v1782, %v1780
    %v1857 = vpack.c.b16 %v1783, %v1781
    %v1858 = vpack.c.b16 %v1786, %v1784
    %v1859 = vpack.c.b16 %v1787, %v1785
    %v1860 = vpack.c.b16 %v1790, %v1788
    %v1861 = vpack.c.b16 %v1791, %v1789
    %v1862 = vpack.c.b16 %v1794, %v1792
    %v1863 = vpack.c.b16 %v1795, %v1793
    %v1864 = vpack.c.b16 %v1798, %v1796
    %v1865 = vpack.c.b16 %v1799, %v1797
    %v1866 = vpack.c.b16 %v1802, %v1800
    %v1867 = vpack.c.b16 %v1803, %v1801
    %1932 = vmatprep.subr.bf16.mxu0 %v1805
    %1933 = vmatpush1.bf16.msra.mxu0 %v1804
    %1934 = vmatprep.subr.bf16.mxu0 %v1807
    %1935 = vmatpush1.bf16.msra.mxu0 %v1806
    %1936 = vmatprep.subr.bf16.mxu0 %v1809
    %1937 = vmatpush1.bf16.msra.mxu0 %v1808
    %1938 = vmatprep.subr.bf16.mxu0 %v1811
    %1939 = vmatpush1.bf16.msra.mxu0 %v1810
    %1940 = vmatprep.subr.bf16.mxu0 %v1813
    %1941 = vmatpush1.bf16.msra.mxu0 %v1812
    %1942 = vmatprep.subr.bf16.mxu0 %v1815
    %1943 = vmatpush1.bf16.msra.mxu0 %v1814
    %1944 = vmatprep.subr.bf16.mxu0 %v1817
    %1945 = vmatpush1.bf16.msra.mxu0 %v1816
    %1946 = vmatprep.subr.bf16.mxu0 %v1819
    %1947 = vmatpush1.bf16.msra.mxu0 %v1818
    %1948 = vmatprep.subr.bf16.mxu0 %v1821
    %1949 = vmatpush1.bf16.msra.mxu0 %v1820
    %1950 = vmatprep.subr.bf16.mxu0 %v1823
    %1951 = vmatpush1.bf16.msra.mxu0 %v1822
    %1952 = vmatprep.subr.bf16.mxu0 %v1825
    %1953 = vmatpush1.bf16.msra.mxu0 %v1824
    %1954 = vmatprep.subr.bf16.mxu0 %v1827
    %1955 = vmatpush1.bf16.msra.mxu0 %v1826
    %1956 = vmatprep.subr.bf16.mxu0 %v1829
    %1957 = vmatpush1.bf16.msra.mxu0 %v1828
    %1958 = vmatprep.subr.bf16.mxu0 %v1831
    %1959 = vmatpush1.bf16.msra.mxu0 %v1830
    %1960 = vmatprep.subr.bf16.mxu0 %v1833
    %1961 = vmatpush1.bf16.msra.mxu0 %v1832
    %1962 = vmatprep.subr.bf16.mxu0 %v1835
    %1963 = vmatpush1.bf16.msra.mxu0 %v1834
    %1964 = vmatprep.mubr.bf16.mxu0 %v1533
    %1965 = vmatmul.mubr.bf16.gmra.mrb[0].mxu0 %v1532
    %v1966 = vpop.f32.mrb[0].mxu0
    %v1967 = vadd.f32 %v1605, %v1966
    %v1968 = vpop.f32.mrb[0].mxu0
    %v1969 = vadd.f32 %v1609, %v1968
    %v1970 = vpop.f32.mrb[0].mxu0
    %v1971 = vadd.f32 %v1605, %v1970
    %v1972 = vpop.f32.mrb[0].mxu0
    %v1973 = vadd.f32 %v1609, %v1972
    %1974 = vdwg.mxu0
    %1975 = vmatprep.subr.bf16.mxu0 %v1837
    %1976 = vmatpush1.bf16.msra.mxu0 %v1836
    %1977 = vmatprep.subr.bf16.mxu0 %v1839
    %1978 = vmatpush1.bf16.msra.mxu0 %v1838
    %1979 = vmatprep.subr.bf16.mxu0 %v1841
    %1980 = vmatpush1.bf16.msra.mxu0 %v1840
    %1981 = vmatprep.subr.bf16.mxu0 %v1843
    %1982 = vmatpush1.bf16.msra.mxu0 %v1842
    %1983 = vmatprep.subr.bf16.mxu0 %v1845
    %1984 = vmatpush1.bf16.msra.mxu0 %v1844
    %1985 = vmatprep.subr.bf16.mxu0 %v1847
    %1986 = vmatpush1.bf16.msra.mxu0 %v1846
    %1987 = vmatprep.subr.bf16.mxu0 %v1849
    %1988 = vmatpush1.bf16.msra.mxu0 %v1848
    %1989 = vmatprep.subr.bf16.mxu0 %v1851
    %1990 = vmatpush1.bf16.msra.mxu0 %v1850
    %1991 = vmatprep.subr.bf16.mxu0 %v1853
    %1992 = vmatpush1.bf16.msra.mxu0 %v1852
    %1993 = vmatprep.subr.bf16.mxu0 %v1855
    %1994 = vmatpush1.bf16.msra.mxu0 %v1854
    %1995 = vmatprep.subr.bf16.mxu0 %v1857
    %1996 = vmatpush1.bf16.msra.mxu0 %v1856
    %1997 = vmatprep.subr.bf16.mxu0 %v1859
    %1998 = vmatpush1.bf16.msra.mxu0 %v1858
    %1999 = vmatprep.subr.bf16.mxu0 %v1861
    %2000 = vmatpush1.bf16.msra.mxu0 %v1860
    %2001 = vmatprep.subr.bf16.mxu0 %v1863
    %2002 = vmatpush1.bf16.msra.mxu0 %v1862
    %2003 = vmatprep.subr.bf16.mxu0 %v1865
    %2004 = vmatpush1.bf16.msra.mxu0 %v1864
    %2005 = vmatprep.subr.bf16.mxu0 %v1867
    %2006 = vmatpush1.bf16.msra.mxu0 %v1866
    %2007 = vmatprep.mubr.bf16.mxu0 %v1535
    %2008 = vmatmul.mubr.bf16.gmra.mrb[0].mxu0 %v1534
    %v2009 = vpop.f32.mrb[0].mxu0
    %v2010 = vadd.f32 %v1967, %v2009
    %v2011 = vpop.f32.mrb[0].mxu0
    %v2012 = vadd.f32 %v1969, %v2011
    %v2013 = vpop.f32.mrb[0].mxu0
    %v2014 = vadd.f32 %v1971, %v2013
    %v2015 = vpop.f32.mrb[0].mxu0
    %v2016 = vadd.f32 %v1973, %v2015
    %2017 = vdwg.mxu0
    %v2018 = vmax.f32 %v2010, 0.0
    %v2019 = vmax.f32 %v2012, 0.0
    %v2020 = vmax.f32 %v2014, 0.0
    %v2021 = vmax.f32 %v2016, 0.0
    %v2022 = vpack.c.bf16 %v2020, %v2018
    %v2023 = vpack.c.bf16 %v2021, %v2019
    %v2024 = vld [vmem:[%s5] sm:$0xf]
    %v2025 = vld [vmem:[%s5 + $0x4] sm:$0xf]
    %v2026 = vld [vmem:[%s5 + $0x8] sm:$0xf]
    %v2027 = vld [vmem:[%s5 + $0xc] sm:$0xf]
    %v2028 = vld [vmem:[%s5 + $0x10] sm:$0xf]
    %v2029 = vld [vmem:[%s5 + $0x14] sm:$0xf]
    %v2030 = vld [vmem:[%s5 + $0x18] sm:$0xf]
    %v2031 = vld [vmem:[%s5 + $0x1c] sm:$0xf]
    %v2032 = vld [vmem:[%s5 + $0x20] sm:$0xf]
    %v2033 = vld [vmem:[%s5 + $0x24] sm:$0xf]
    %v2034 = vld [vmem:[%s5 + $0x28] sm:$0xf]
    %v2035 = vld [vmem:[%s5 + $0x2c] sm:$0xf]
    %v2036 = vld [vmem:[%s5 + $0x30] sm:$0xf]
    %v2037 = vld [vmem:[%s5 + $0x34] sm:$0xf]
    %v2038 = vld [vmem:[%s5 + $0x38] sm:$0xf]
    %v2039 = vld [vmem:[%s5 + $0x3c] sm:$0xf]
    %v2040 = vld [vmem:[%s5 + $0x40] sm:$0xf]
    %v2041 = vld [vmem:[%s5 + $0x44] sm:$0xf]
    %v2042 = vld [vmem:[%s5 + $0x48] sm:$0xf]
    %v2043 = vld [vmem:[%s5 + $0x4c] sm:$0xf]
    %v2044 = vld [vmem:[%s5 + $0x50] sm:$0xf]
    %v2045 = vld [vmem:[%s5 + $0x54] sm:$0xf]
    %v2046 = vld [vmem:[%s5 + $0x58] sm:$0xf]
    %v2047 = vld [vmem:[%s5 + $0x5c] sm:$0xf]
    %v2048 = vld [vmem:[%s5 + $0x60] sm:$0xf]
    %v2049 = vld [vmem:[%s5 + $0x64] sm:$0xf]
    %v2050 = vld [vmem:[%s5 + $0x68] sm:$0xf]
    %v2051 = vld [vmem:[%s5 + $0x6c] sm:$0xf]
    %v2052 = vld [vmem:[%s5 + $0x70] sm:$0xf]
    %v2053 = vld [vmem:[%s5 + $0x74] sm:$0xf]
    %v2054 = vld [vmem:[%s5 + $0x78] sm:$0xf]
    %v2055 = vld [vmem:[%s5 + $0x7c] sm:$0xf]
    %v2056 = vld [vmem:[%s6] sm:$0x1]
    %v2058 = vlaneseq
    %v2059 = vshrl.u32 %v2058, 7
    %v2060 = vsub.s32 0, %v2059
    %v2061 = vrot.slane %v2056, %v2060
    %v2095 = vunpack.c.l.b16 %v2024
    %v2096 = vunpack.c.l.b16 %v2025
    %v2097 = vunpack.c.l.b16 %v2026
    %v2098 = vunpack.c.l.b16 %v2027
    %v2099 = vunpack.c.l.b16 %v2028
    %v2100 = vunpack.c.l.b16 %v2029
    %v2101 = vunpack.c.l.b16 %v2030
    %v2102 = vunpack.c.l.b16 %v2031
    %v2103 = vunpack.c.l.b16 %v2032
    %v2104 = vunpack.c.l.b16 %v2033
    %v2105 = vunpack.c.l.b16 %v2034
    %v2106 = vunpack.c.l.b16 %v2035
    %v2107 = vunpack.c.l.b16 %v2036
    %v2108 = vunpack.c.l.b16 %v2037
    %v2109 = vunpack.c.l.b16 %v2038
    %v2110 = vunpack.c.l.b16 %v2039
    %v2111 = vunpack.c.l.b16 %v2040
    %v2112 = vunpack.c.l.b16 %v2041
    %v2113 = vunpack.c.l.b16 %v2042
    %v2114 = vunpack.c.l.b16 %v2043
    %v2115 = vunpack.c.l.b16 %v2044
    %v2116 = vunpack.c.l.b16 %v2045
    %v2117 = vunpack.c.l.b16 %v2046
    %v2118 = vunpack.c.l.b16 %v2047
    %v2119 = vunpack.c.l.b16 %v2048
    %v2120 = vunpack.c.l.b16 %v2049
    %v2121 = vunpack.c.l.b16 %v2050
    %v2122 = vunpack.c.l.b16 %v2051
    %v2123 = vunpack.c.l.b16 %v2052
    %v2124 = vunpack.c.l.b16 %v2053
    %v2125 = vunpack.c.l.b16 %v2054
    %v2126 = vunpack.c.l.b16 %v2055
    %v2127 = vpack.c.b16 %v2096, %v2095
    %v2128 = vpack.c.b16 %v2098, %v2097
    %v2129 = vpack.c.b16 %v2100, %v2099
    %v2130 = vpack.c.b16 %v2102, %v2101
    %v2131 = vpack.c.b16 %v2104, %v2103
    %v2132 = vpack.c.b16 %v2106, %v2105
    %v2133 = vpack.c.b16 %v2108, %v2107
    %v2134 = vpack.c.b16 %v2110, %v2109
    %v2135 = vpack.c.b16 %v2112, %v2111
    %v2136 = vpack.c.b16 %v2114, %v2113
    %v2137 = vpack.c.b16 %v2116, %v2115
    %v2138 = vpack.c.b16 %v2118, %v2117
    %v2139 = vpack.c.b16 %v2120, %v2119
    %v2140 = vpack.c.b16 %v2122, %v2121
    %v2141 = vpack.c.b16 %v2124, %v2123
    %v2142 = vpack.c.b16 %v2126, %v2125
    %2159 = vmatprep.subr.bf16.mxu0 0
    %2160 = vmatpush1.bf16.msra.mxu0 %v2127
    %2161 = vmatprep.subr.bf16.mxu0 0
    %2162 = vmatpush1.bf16.msra.mxu0 %v2128
    %2163 = vmatprep.subr.bf16.mxu0 0
    %2164 = vmatpush1.bf16.msra.mxu0 %v2129
    %2165 = vmatprep.subr.bf16.mxu0 0
    %2166 = vmatpush1.bf16.msra.mxu0 %v2130
    %2167 = vmatprep.subr.bf16.mxu0 0
    %2168 = vmatpush1.bf16.msra.mxu0 %v2131
    %2169 = vmatprep.subr.bf16.mxu0 0
    %2170 = vmatpush1.bf16.msra.mxu0 %v2132
    %2171 = vmatprep.subr.bf16.mxu0 0
    %2172 = vmatpush1.bf16.msra.mxu0 %v2133
    %2173 = vmatprep.subr.bf16.mxu0 0
    %2174 = vmatpush1.bf16.msra.mxu0 %v2134
    %2175 = vmatprep.subr.bf16.mxu0 0
    %2176 = vmatpush1.bf16.msra.mxu0 %v2135
    %2177 = vmatprep.subr.bf16.mxu0 0
    %2178 = vmatpush1.bf16.msra.mxu0 %v2136
    %2179 = vmatprep.subr.bf16.mxu0 0
    %2180 = vmatpush1.bf16.msra.mxu0 %v2137
    %2181 = vmatprep.subr.bf16.mxu0 0
    %2182 = vmatpush1.bf16.msra.mxu0 %v2138
    %2183 = vmatprep.subr.bf16.mxu0 0
    %2184 = vmatpush1.bf16.msra.mxu0 %v2139
    %2185 = vmatprep.subr.bf16.mxu0 0
    %2186 = vmatpush1.bf16.msra.mxu0 %v2140
    %2187 = vmatprep.subr.bf16.mxu0 0
    %2188 = vmatpush1.bf16.msra.mxu0 %v2141
    %2189 = vmatprep.subr.bf16.mxu0 0
    %2190 = vmatpush1.bf16.msra.mxu0 %v2142
    %2191 = vmatprep.mubr.bf16.mxu0 %v2023
    %2192 = vmatmul.mubr.bf16.gmra.mrb[0].mxu0 %v2022
    %v2193 = vpop.f32.mrb[0].mxu0
    %v2194 = vadd.f32 %v2061, %v2193
    %v2195 = vpop.f32.mrb[0].mxu0
    %v2196 = vpop.f32.mrb[0].mxu0
    %v2197 = vadd.f32 %v2061, %v2196
    %v2198 = vpop.f32.mrb[0].mxu0
    %2199 = vdwg.mxu0
    %v2200 = vmax.f32 %v2194, 0.0
    %v2201 = vmax.f32 %v2197, 0.0
    %v2202 = vpack.c.bf16 %v2201, %v2200
    %v2203 = vld [vmem:[#allocation6] sm:$0xf]
    %v2204 = vld [vmem:[#allocation6 + $0x4] sm:$0xf]
    %v2205 = vld [vmem:[#allocation6 + $0x8] sm:$0xf]
    %v2206 = vld [vmem:[#allocation6 + $0xc] sm:$0xf]
    %v2207 = vld [vmem:[#allocation6 + $0x10] sm:$0xf]
    %v2208 = vld [vmem:[#allocation6 + $0x14] sm:$0xf]
    %v2209 = vld [vmem:[#allocation6 + $0x18] sm:$0xf]
    %v2210 = vld [vmem:[#allocation6 + $0x1c] sm:$0xf]
    %v2211 = vld [vmem:[#allocation6 + $0x20] sm:$0xf]
    %v2212 = vld [vmem:[#allocation6 + $0x24] sm:$0xf]
    %v2213 = vld [vmem:[#allocation6 + $0x28] sm:$0xf]
    %v2214 = vld [vmem:[#allocation6 + $0x2c] sm:$0xf]
    %v2215 = vld [vmem:[#allocation6 + $0x30] sm:$0xf]
    %v2216 = vld [vmem:[#allocation6 + $0x34] sm:$0xf]
    %v2217 = vld [vmem:[#allocation6 + $0x38] sm:$0xf]
    %v2218 = vld [vmem:[#allocation6 + $0x3c] sm:$0xf]
    %v2219 = vld [vmem:[%s8] sm:$0x1]
    %v2221 = vlaneseq
    %v2222 = vshrl.u32 %v2221, 7
    %v2223 = vsub.s32 0, %v2222
    %v2224 = vrot.slane %v2219, %v2223
    %v2242 = vunpack.c.l.b16 %v2203
    %v2243 = vunpack.c.l.b16 %v2204
    %v2244 = vunpack.c.l.b16 %v2205
    %v2245 = vunpack.c.l.b16 %v2206
    %v2246 = vunpack.c.l.b16 %v2207
    %v2247 = vunpack.c.l.b16 %v2208
    %v2248 = vunpack.c.l.b16 %v2209
    %v2249 = vunpack.c.l.b16 %v2210
    %v2250 = vunpack.c.l.b16 %v2211
    %v2251 = vunpack.c.l.b16 %v2212
    %v2252 = vunpack.c.l.b16 %v2213
    %v2253 = vunpack.c.l.b16 %v2214
    %v2254 = vunpack.c.l.b16 %v2215
    %v2255 = vunpack.c.l.b16 %v2216
    %v2256 = vunpack.c.l.b16 %v2217
    %v2257 = vunpack.c.l.b16 %v2218
    %v2258 = vpack.c.b16 %v2243, %v2242
    %v2259 = vpack.c.b16 %v2245, %v2244
    %v2260 = vpack.c.b16 %v2247, %v2246
    %v2261 = vpack.c.b16 %v2249, %v2248
    %v2262 = vpack.c.b16 %v2251, %v2250
    %v2263 = vpack.c.b16 %v2253, %v2252
    %v2264 = vpack.c.b16 %v2255, %v2254
    %v2265 = vpack.c.b16 %v2257, %v2256
    %2274 = vmatprep.subr.bf16.mxu0 0
    %2275 = vmatpush1.bf16.msra.mxu0 %v2258
    %2276 = vmatprep.subr.bf16.mxu0 0
    %2277 = vmatpush1.bf16.msra.mxu0 %v2259
    %2278 = vmatprep.subr.bf16.mxu0 0
    %2279 = vmatpush1.bf16.msra.mxu0 %v2260
    %2280 = vmatprep.subr.bf16.mxu0 0
    %2281 = vmatpush1.bf16.msra.mxu0 %v2261
    %2282 = vmatprep.subr.bf16.mxu0 0
    %2283 = vmatpush1.bf16.msra.mxu0 %v2262
    %2284 = vmatprep.subr.bf16.mxu0 0
    %2285 = vmatpush1.bf16.msra.mxu0 %v2263
    %2286 = vmatprep.subr.bf16.mxu0 0
    %2287 = vmatpush1.bf16.msra.mxu0 %v2264
    %2288 = vmatprep.subr.bf16.mxu0 0
    %2289 = vmatpush1.bf16.msra.mxu0 %v2265
    %2290 = vmatprep.subr.bf16.mxu0 0
    %2291 = vmatpush1.bf16.msra.mxu0 0
    %2292 = vmatprep.subr.bf16.mxu0 0
    %2293 = vmatpush1.bf16.msra.mxu0 0
    %2294 = vmatprep.subr.bf16.mxu0 0
    %2295 = vmatpush1.bf16.msra.mxu0 0
    %2296 = vmatprep.subr.bf16.mxu0 0
    %2297 = vmatpush1.bf16.msra.mxu0 0
    %2298 = vmatprep.subr.bf16.mxu0 0
    %2299 = vmatpush1.bf16.msra.mxu0 0
    %2300 = vmatprep.subr.bf16.mxu0 0
    %2301 = vmatpush1.bf16.msra.mxu0 0
    %2302 = vmatprep.subr.bf16.mxu0 0
    %2303 = vmatpush1.bf16.msra.mxu0 0
    %2304 = vmatprep.subr.bf16.mxu0 0
    %2305 = vmatpush1.bf16.msra.mxu0 0
    %2306 = vmatprep.mubr.bf16.mxu0 0
    %2307 = vmatmul.mubr.bf16.gmra.mrb[0].mxu0 %v2202
    %v2308 = vpop.f32.mrb[0].mxu0
    %v2309 = vadd.f32 %v2224, %v2308
    %v2310 = vpop.f32.mrb[0].mxu0
    %v2311 = vpop.f32.mrb[0].mxu0
    %v2312 = vadd.f32 %v2224, %v2311
    %v2313 = vpop.f32.mrb[0].mxu0
    %2314 = vdwg.mxu0
    %2315 = vst [vmem:[%s9] sm:$0xff] %v2309
    %2316 = vst [vmem:[%s9 + $0x8] sm:$0xff] %v2312
    // Predicated region
    $region50: #{_mlp_forward_impl.1} parent=1 // pred_check
      _
    $region51: #{_mlp_forward_impl.1} parent=1 // pred_check_branch
      %2318 = sbr.rel (0) target = $region53
    $region52: #{_mlp_forward_impl.1} parent=1 // pred_region
      _
    $region53: #{_mlp_forward_impl.1} parent=1 // pred_fallthru
      _
    // Predicated region
    $region54: #{_mlp_forward_impl.1} parent=1 // pred_check
      _
    $region55: #{_mlp_forward_impl.1} parent=1 // pred_check_branch
      %2320 = sbr.rel (0) target = $region57
    $region56: #{_mlp_forward_impl.1} parent=1 // pred_region
      _
    $region57: #{_mlp_forward_impl.1} parent=1 // pred_fallthru
      _
    %2321 = vsyncpa [#allocation3], 1
    %2322 = vsyncpa [#allocation5], 1

</llo_original>
